<compile_context>
chip_gen: v7x
topology: tpu7x:2x2x1
jax: 0.10.0
libtpu: 0.0.40
codegen_flags: <defaults>
</compile_context>

<pallas_src>
import math
import functools

import jax
import jax.numpy as jnp
from jax.experimental import pallas as pl
from jax.experimental.pallas import tpu as pltpu

SIZE_PUZZLE_TOKENS = 1 + 26 + 1  # 28


def _layernorm(v, w, b, eps=1e-5):
    mu = jnp.mean(v, axis=-1, keepdims=True)
    var = jnp.mean((v - mu) ** 2, axis=-1, keepdims=True)
    return (v - mu) * jax.lax.rsqrt(var + eps) * w + b


def _new_gelu(x):
    return 0.5 * x * (1.0 + jnp.tanh(math.sqrt(2.0 / math.pi) * (x + 0.044715 * x ** 3)))


def block_kernel(n_head, size_puzzle,
                 x_ref, ln1w_ref, ln1b_ref,
                 wq_ref, bq_ref, wk_ref, bk_ref, wv_ref, bv_ref,
                 wproj_ref, bproj_ref,
                 ln2w_ref, ln2b_ref,
                 wfc_ref, bfc_ref, wfc2_ref, bfc2_ref,
                 o_ref):
    BB, T, C = x_ref.shape
    D = wq_ref.shape[-1]          # head dim (wq pre-split host-side: (n_head, C, D))
    N = BB * T

    # Fold batch into the matmul M dimension (leading-dim merge: free, no relayout).
    x2 = x_ref[...].reshape(N, C)

    # Additive mask bias, computed once in-kernel (no (T, T) DMA, no per-head select),
    # and broadcast ONCE so the statically-unrolled head loop reuses it.
    rows = jax.lax.broadcasted_iota(jnp.int32, (T, T), 0)
    cols = jax.lax.broadcasted_iota(jnp.int32, (T, T), 1)
    keep = jnp.logical_or(rows >= cols, cols < size_puzzle)
    bias = jnp.where(keep, 0.0, -1e30).astype(jnp.float32)   # finite => no NaN hazard
    bias_b = jnp.broadcast_to(bias[None], (BB, T, T))

    # ---------------- attention branch: x + attn(ln_1(x)) ----------------
    h1 = _layernorm(x2, ln1w_ref[0], ln1b_ref[0])

    # Per-head q/k/v projections (1/sqrt(D) already folded into wq/bq host-side).
    # No in-kernel lane slicing, no lane-dim concat: the output projection is
    # accumulated per head against its own (D, C) slice of wproj.
    attn_acc = jnp.zeros((N, C), jnp.float32)
    for h in range(n_head):       # static unroll over heads; batched over BB inside
        qh = (jnp.dot(h1, wq_ref[h], preferred_element_type=jnp.float32)
              + bq_ref[h]).reshape(BB, T, D)
        kh = (jnp.dot(h1, wk_ref[h], preferred_element_type=jnp.float32)
              + bk_ref[h]).reshape(BB, T, D)
        vh = (jnp.dot(h1, wv_ref[h], preferred_element_type=jnp.float32)
              + bv_ref[h]).reshape(BB, T, D)
        att = jnp.einsum('bqd,bkd->bqk', qh, kh,
                         preferred_element_type=jnp.float32) + bias_b
        m = jnp.max(att, axis=-1, keepdims=True)
        e = jnp.exp(att - m)
        s = jnp.sum(e, axis=-1, keepdims=True)
        # Normalize AFTER the PV matmul: softmax is linear in the numerator, so scale
        # the (BB,T,D) output instead of the (BB,T,T) matrix (EUP reciprocal, no divide).
        yh = jnp.einsum('bqk,bkd->bqd', e, vh, preferred_element_type=jnp.float32)
        yh = yh * pl.reciprocal(s, approx=True)
        attn_acc = attn_acc + jnp.dot(yh.reshape(N, D), wproj_ref[h],
                                      preferred_element_type=jnp.float32)
    x1 = x2 + attn_acc + bproj_ref[0]

    # ---------------- MLP branch: x + mlp(ln_2(x)) ----------------
    h2 = _layernorm(x1, ln2w_ref[0], ln2b_ref[0])
    fc = jnp.dot(h2, wfc_ref[...], preferred_element_type=jnp.float32) + bfc_ref[0]
    g = _new_gelu(fc)
    mlp_out = jnp.dot(g, wfc2_ref[...], preferred_element_type=jnp.float32) + bfc2_ref[0]

    o_ref[...] = (x1 + mlp_out).reshape(BB, T, C).astype(o_ref.dtype)


def gpt_block(x, params, n_head, *, batch_block=None):
    """x: (B, T, C); params: the 12 Block parameter arrays (PyTorch layout, W as (in, out))."""
    (ln1w, ln1b, wattn, battn, wproj, bproj,
     ln2w, ln2b, wfc, bfc, wfc2, bfc2) = params
    B, T, C = x.shape
    D = C // n_head
    scale = 1.0 / math.sqrt(D)

    # Default: fold the whole batch into one grid step (best for single-TC v5e/v6e).
    # On v7x (2 TensorCores) pass batch_block=B // 2 to shard the batch across cores.
    if batch_block is None:
        batch_block = B
    assert B % batch_block == 0
    grid = (B // batch_block,)

    # Host-side (free) weight preparation:
    #   * split the fused qkv weight/bias per head -> (n_head, C, D) / (n_head, 1, D),
    #   * fold the 1/sqrt(D) attention scale into wq / bq,
    #   * split the output projection into per-head (n_head, D, C) slices.
    wq = (wattn[:, :C] * scale).reshape(C, n_head, D).transpose(1, 0, 2)
    wk = wattn[:, C:2 * C].reshape(C, n_head, D).transpose(1, 0, 2)
    wv = wattn[:, 2 * C:].reshape(C, n_head, D).transpose(1, 0, 2)
    bq = (battn[:, :C] * scale).reshape(1, n_head, D).transpose(1, 0, 2)
    bk = battn[:, C:2 * C].reshape(1, n_head, D).transpose(1, 0, 2)
    bv = battn[:, 2 * C:].reshape(1, n_head, D).transpose(1, 0, 2)
    wproj_h = wproj.reshape(n_head, D, C)

    def full(a):
        nd = a.ndim
        return pl.BlockSpec(a.shape, lambda b, _nd=nd: (0,) * _nd)

    in_specs = [
        pl.BlockSpec((batch_block, T, C), lambda b: (b, 0, 0)),   # x
        full(ln1w), full(ln1b),                                   # ln_1
        full(wq), full(bq), full(wk), full(bk), full(wv), full(bv),
        full(wproj_h), full(bproj),                               # attn c_proj
        full(ln2w), full(ln2b),                                   # ln_2
        full(wfc), full(bfc), full(wfc2), full(bfc2),             # mlp
    ]
    # TODO(synk): at real GPT sizes (C >= 1024) the fully-resident f32 weight strategy
    # must become: bf16 dot inputs (keep LN/softmax f32), a K-reduction "arbitrary" grid
    # axis with a pl.when-initialized f32 accumulator for wfc/wfc2/c_attn/c_proj,
    # pipeline_mode=pl.Buffered(1) on the invariant weight BlockSpecs, an explicit
    # vmem_limit_bytes (v7x has only 64 MiB physical VMEM, v5e a 16 MiB scoped default),
    # and an x-tile of >= ~512 rows per step so DMA overlaps compute.
    return pl.pallas_call(
        functools.partial(block_kernel, n_head, SIZE_PUZZLE_TOKENS),
        out_shape=jax.ShapeDtypeStruct((B, T, C), x.dtype),
        grid=grid,
        in_specs=in_specs,
        out_specs=pl.BlockSpec((batch_block, T, C), lambda b: (b, 0, 0)),
        compiler_params=pltpu.CompilerParams(dimension_semantics=("parallel",)),
    )(x, ln1w, ln1b, wq, bq, wk, bk, wv, bv, wproj_h, bproj,
      ln2w, ln2b, wfc, bfc, wfc2, bfc2)


def reference_block(x, params, mask, n_head):
    """Pure-JAX reference mirroring the PyTorch forward, for verification."""
    (ln1w, ln1b, wattn, battn, wproj, bproj,
     ln2w, ln2b, wfc, bfc, wfc2, bfc2) = params
    B, T, C = x.shape
    D = C // n_head

    h1 = _layernorm(x, ln1w[0], ln1b[0])
    qkv = h1 @ wattn + battn[0]
    q, k, v = jnp.split(qkv, 3, axis=-1)
    q = q.reshape(B, T, n_head, D).transpose(0, 2, 1, 3)
    k = k.reshape(B, T, n_head, D).transpose(0, 2, 1, 3)
    v = v.reshape(B, T, n_head, D).transpose(0, 2, 1, 3)
    att = (q @ jnp.swapaxes(k, -2, -1)) * (1.0 / math.sqrt(D))
    att = jnp.where(mask[None, None] == 0.0, -jnp.inf, att)
    att = jax.nn.softmax(att, axis=-1)
    y = (att @ v).transpose(0, 2, 1, 3).reshape(B, T, C)
    x1 = x + (y @ wproj + bproj[0])

    h2 = _layernorm(x1, ln2w[0], ln2b[0])
    mlp = _new_gelu(h2 @ wfc + bfc[0]) @ wfc2 + bfc2[0]
    return x1 + mlp


if __name__ == "__main__":
    B, T, C, n_head = 2, 32, 32, 4       # block_size = T = 32, n_embd = 32

    key = jax.random.PRNGKey(0)
    keys = jax.random.split(key, 8)

    x = jax.random.normal(keys[0], (B, T, C), jnp.float32)

    # Deterministic parameter init (synthetic, GPT-style small normal init; bias=True).
    ln1w = jnp.ones((1, C), jnp.float32)
    ln1b = jnp.zeros((1, C), jnp.float32)
    ln2w = jnp.ones((1, C), jnp.float32)
    ln2b = jnp.zeros((1, C), jnp.float32)
    wattn = 0.02 * jax.random.normal(keys[1], (C, 3 * C), jnp.float32)
    battn = 0.02 * jax.random.normal(keys[2], (1, 3 * C), jnp.float32)
    wproj = 0.02 * jax.random.normal(keys[3], (C, C), jnp.float32)
    bproj = 0.02 * jax.random.normal(keys[4], (1, C), jnp.float32)
    wfc = 0.02 * jax.random.normal(keys[5], (C, 4 * C), jnp.float32)
    bfc = 0.02 * jax.random.normal(keys[6], (1, 4 * C), jnp.float32)
    wfc2 = 0.02 * jax.random.normal(keys[7], (4 * C, C), jnp.float32)
    bfc2 = jnp.zeros((1, C), jnp.float32)

    params = (ln1w, ln1b, wattn, battn, wproj, bproj,
              ln2w, ln2b, wfc, bfc, wfc2, bfc2)

    out = gpt_block(x, params, n_head)
    out = jax.block_until_ready(out)

    # Reference mask: causal (lower-triangular) with first 28 columns always visible.
    mask = jnp.tril(jnp.ones((T, T), jnp.float32))
    mask = mask.at[:, :min(SIZE_PUZZLE_TOKENS, T)].set(1.0)
    ref = jax.block_until_ready(reference_block(x, params, mask, n_head))

    assert out.shape == (B, T, C)
    # Slightly relaxed atol vs. the f32 reference because of pl.reciprocal(approx=True).
    assert jnp.allclose(out, ref, rtol=2e-3, atol=2e-4), "mismatch vs pure-JAX reference"

    print("KERNEL_OK")
</pallas_src>

<mosaic_0001>
module attributes {stable_mosaic.version = 11 : i64} {
  func.func @block_kernel(%arg0: i32, %arg1: memref<2x32x32xf32, #tpu.memory_space<vmem>>, %arg2: memref<1x32xf32, #tpu.memory_space<vmem>>, %arg3: memref<1x32xf32, #tpu.memory_space<vmem>>, %arg4: memref<4x32x8xf32, #tpu.memory_space<vmem>>, %arg5: memref<4x1x8xf32, #tpu.memory_space<vmem>>, %arg6: memref<4x32x8xf32, #tpu.memory_space<vmem>>, %arg7: memref<4x1x8xf32, #tpu.memory_space<vmem>>, %arg8: memref<4x32x8xf32, #tpu.memory_space<vmem>>, %arg9: memref<4x1x8xf32, #tpu.memory_space<vmem>>, %arg10: memref<4x8x32xf32, #tpu.memory_space<vmem>>, %arg11: memref<1x32xf32, #tpu.memory_space<vmem>>, %arg12: memref<1x32xf32, #tpu.memory_space<vmem>>, %arg13: memref<1x32xf32, #tpu.memory_space<vmem>>, %arg14: memref<32x128xf32, #tpu.memory_space<vmem>>, %arg15: memref<1x128xf32, #tpu.memory_space<vmem>>, %arg16: memref<128x32xf32, #tpu.memory_space<vmem>>, %arg17: memref<1x32xf32, #tpu.memory_space<vmem>>, %arg18: memref<2x32x32xf32, #tpu.memory_space<vmem>>) attributes {dimension_semantics = [#tpu.dimension_semantics<parallel>], iteration_bounds = array<i64: 1>, scalar_prefetch = 0 : i64, scratch_operands = 0 : i64, tpu.core_type = #tpu.core_type<tc>, window_params = [{transform_indices = @transform_0, window_bounds = array<i64: 2, 32, 32>}, {pipeline_mode = #tpu.pipeline_mode<synchronous>, transform_indices = @transform_1, window_bounds = array<i64: 1, 32>}, {pipeline_mode = #tpu.pipeline_mode<synchronous>, transform_indices = @transform_2, window_bounds = array<i64: 1, 32>}, {pipeline_mode = #tpu.pipeline_mode<synchronous>, transform_indices = @transform_3, window_bounds = array<i64: 4, 32, 8>}, {pipeline_mode = #tpu.pipeline_mode<synchronous>, transform_indices = @transform_4, window_bounds = array<i64: 4, 1, 8>}, {pipeline_mode = #tpu.pipeline_mode<synchronous>, transform_indices = @transform_5, window_bounds = array<i64: 4, 32, 8>}, {pipeline_mode = #tpu.pipeline_mode<synchronous>, transform_indices = @transform_6, window_bounds = array<i64: 4, 1, 8>}, {pipeline_mode = #tpu.pipeline_mode<synchronous>, transform_indices = @transform_7, window_bounds = array<i64: 4, 32, 8>}, {pipeline_mode = #tpu.pipeline_mode<synchronous>, transform_indices = @transform_8, window_bounds = array<i64: 4, 1, 8>}, {pipeline_mode = #tpu.pipeline_mode<synchronous>, transform_indices = @transform_9, window_bounds = array<i64: 4, 8, 32>}, {pipeline_mode = #tpu.pipeline_mode<synchronous>, transform_indices = @transform_10, window_bounds = array<i64: 1, 32>}, {pipeline_mode = #tpu.pipeline_mode<synchronous>, transform_indices = @transform_11, window_bounds = array<i64: 1, 32>}, {pipeline_mode = #tpu.pipeline_mode<synchronous>, transform_indices = @transform_12, window_bounds = array<i64: 1, 32>}, {pipeline_mode = #tpu.pipeline_mode<synchronous>, transform_indices = @transform_13, window_bounds = array<i64: 32, 128>}, {pipeline_mode = #tpu.pipeline_mode<synchronous>, transform_indices = @transform_14, window_bounds = array<i64: 1, 128>}, {pipeline_mode = #tpu.pipeline_mode<synchronous>, transform_indices = @transform_15, window_bounds = array<i64: 128, 32>}, {pipeline_mode = #tpu.pipeline_mode<synchronous>, transform_indices = @transform_16, window_bounds = array<i64: 1, 32>}, {transform_indices = @transform_17, window_bounds = array<i64: 2, 32, 32>}]} {
    %c0 = arith.constant 0 : index
    %c0_0 = arith.constant 0 : index
    %c0_1 = arith.constant 0 : index
    %0 = vector.load %arg1[%c0, %c0_0, %c0_1] : memref<2x32x32xf32, #tpu.memory_space<vmem>>, vector<2x32x32xf32>
    %1 = vector.shape_cast %0 : vector<2x32x32xf32> to vector<64x32xf32>
    %2 = tpu.iota {dimensions = array<i32: 0>} : vector<32x32xi32>
    %3 = tpu.iota {dimensions = array<i32: 1>} : vector<32x32xi32>
    %4 = arith.cmpi sge, %2, %3 : vector<32x32xi32>
    %c28_i32 = arith.constant 28 : i32
    %5 = vector.broadcast %c28_i32 : i32 to vector<32x32xi32>
    %6 = arith.cmpi slt, %3, %5 : vector<32x32xi32>
    %7 = arith.ori %4, %6 : vector<32x32xi1>
    %cst = arith.constant 0.000000e+00 : f32
    %cst_2 = arith.constant -1.000000e+30 : f32
    %8 = vector.broadcast %cst : f32 to vector<32x32xf32>
    %9 = vector.broadcast %cst_2 : f32 to vector<32x32xf32>
    %10 = arith.select %7, %8, %9 : vector<32x32xi1>, vector<32x32xf32>
    %11 = vector.shape_cast %10 : vector<32x32xf32> to vector<1x32x32xf32>
    %12 = vector.shape_cast %11 : vector<1x32x32xf32> to vector<1x32x32xf32>
    %13 = vector.broadcast %12 : vector<1x32x32xf32> to vector<2x32x32xf32>
    %c0_3 = arith.constant 0 : index
    %c0_4 = arith.constant 0 : index
    %14 = vector.load %arg2[%c0_3, %c0_4] : memref<1x32xf32, #tpu.memory_space<vmem>>, vector<1x32xf32>
    %15 = vector.shape_cast %14 : vector<1x32xf32> to vector<32xf32>
    %c0_5 = arith.constant 0 : index
    %c0_6 = arith.constant 0 : index
    %16 = vector.load %arg3[%c0_5, %c0_6] : memref<1x32xf32, #tpu.memory_space<vmem>>, vector<1x32xf32>
    %17 = vector.shape_cast %16 : vector<1x32xf32> to vector<32xf32>
    %cst_7 = arith.constant dense<0.000000e+00> : vector<64xf32>
    %18 = vector.multi_reduction <add>, %1, %cst_7 [1] : vector<64x32xf32> to vector<64xf32>
    %19 = vector.shape_cast %18 : vector<64xf32> to vector<64x1xf32>
    %cst_8 = arith.constant 3.200000e+01 : f32
    %20 = vector.broadcast %cst_8 : f32 to vector<64x1xf32>
    %21 = arith.divf %19, %20 : vector<64x1xf32>
    %22 = vector.broadcast %21 : vector<64x1xf32> to vector<64x32xf32>
    %23 = arith.subf %1, %22 : vector<64x32xf32>
    %24 = arith.mulf %23, %23 : vector<64x32xf32>
    %cst_9 = arith.constant dense<0.000000e+00> : vector<64xf32>
    %25 = vector.multi_reduction <add>, %24, %cst_9 [1] : vector<64x32xf32> to vector<64xf32>
    %26 = vector.shape_cast %25 : vector<64xf32> to vector<64x1xf32>
    %cst_10 = arith.constant 3.200000e+01 : f32
    %27 = vector.broadcast %cst_10 : f32 to vector<64x1xf32>
    %28 = arith.divf %26, %27 : vector<64x1xf32>
    %29 = vector.broadcast %21 : vector<64x1xf32> to vector<64x32xf32>
    %30 = arith.subf %1, %29 : vector<64x32xf32>
    %cst_11 = arith.constant 9.99999974E-6 : f32
    %31 = vector.broadcast %cst_11 : f32 to vector<64x1xf32>
    %32 = arith.addf %28, %31 : vector<64x1xf32>
    %33 = math.rsqrt %32 : vector<64x1xf32>
    %34 = vector.broadcast %33 : vector<64x1xf32> to vector<64x32xf32>
    %35 = arith.mulf %30, %34 : vector<64x32xf32>
    %36 = vector.shape_cast %15 : vector<32xf32> to vector<1x32xf32>
    %37 = vector.broadcast %36 : vector<1x32xf32> to vector<64x32xf32>
    %38 = arith.mulf %35, %37 : vector<64x32xf32>
    %39 = vector.shape_cast %17 : vector<32xf32> to vector<1x32xf32>
    %40 = vector.broadcast %39 : vector<1x32xf32> to vector<64x32xf32>
    %41 = arith.addf %38, %40 : vector<64x32xf32>
    %cst_12 = arith.constant 0.000000e+00 : f32
    %42 = vector.broadcast %cst_12 : f32 to vector<64x32xf32>
    %c0_13 = arith.constant 0 : index
    %c0_14 = arith.constant 0 : index
    %c0_15 = arith.constant 0 : index
    %43 = vector.load %arg4[%c0_13, %c0_14, %c0_15] : memref<4x32x8xf32, #tpu.memory_space<vmem>>, vector<1x32x8xf32>
    %44 = vector.shape_cast %43 : vector<1x32x8xf32> to vector<32x8xf32>
    %cst_16 = arith.constant dense<0.000000e+00> : vector<64x8xf32>
    %45 = tpu.matmul %41, %44, %cst_16 {dimension_numbers = #tpu.dot_dimension_numbers<[1], [0], [0], [1], [0, 0, 1, 1], [], []>} : vector<64x32xf32>, vector<32x8xf32>, vector<64x8xf32> -> vector<64x8xf32>
    %c0_17 = arith.constant 0 : index
    %c0_18 = arith.constant 0 : index
    %c0_19 = arith.constant 0 : index
    %46 = vector.load %arg5[%c0_17, %c0_18, %c0_19] : memref<4x1x8xf32, #tpu.memory_space<vmem>>, vector<1x1x8xf32>
    %47 = vector.shape_cast %46 : vector<1x1x8xf32> to vector<1x8xf32>
    %48 = vector.broadcast %47 : vector<1x8xf32> to vector<64x8xf32>
    %49 = arith.addf %45, %48 : vector<64x8xf32>
    %50 = vector.shape_cast %49 : vector<64x8xf32> to vector<2x32x8xf32>
    %c0_20 = arith.constant 0 : index
    %c0_21 = arith.constant 0 : index
    %c0_22 = arith.constant 0 : index
    %51 = vector.load %arg6[%c0_20, %c0_21, %c0_22] : memref<4x32x8xf32, #tpu.memory_space<vmem>>, vector<1x32x8xf32>
    %52 = vector.shape_cast %51 : vector<1x32x8xf32> to vector<32x8xf32>
    %cst_23 = arith.constant dense<0.000000e+00> : vector<64x8xf32>
    %53 = tpu.matmul %41, %52, %cst_23 {dimension_numbers = #tpu.dot_dimension_numbers<[1], [0], [0], [1], [0, 0, 1, 1], [], []>} : vector<64x32xf32>, vector<32x8xf32>, vector<64x8xf32> -> vector<64x8xf32>
    %c0_24 = arith.constant 0 : index
    %c0_25 = arith.constant 0 : index
    %c0_26 = arith.constant 0 : index
    %54 = vector.load %arg7[%c0_24, %c0_25, %c0_26] : memref<4x1x8xf32, #tpu.memory_space<vmem>>, vector<1x1x8xf32>
    %55 = vector.shape_cast %54 : vector<1x1x8xf32> to vector<1x8xf32>
    %56 = vector.broadcast %55 : vector<1x8xf32> to vector<64x8xf32>
    %57 = arith.addf %53, %56 : vector<64x8xf32>
    %58 = vector.shape_cast %57 : vector<64x8xf32> to vector<2x32x8xf32>
    %c0_27 = arith.constant 0 : index
    %c0_28 = arith.constant 0 : index
    %c0_29 = arith.constant 0 : index
    %59 = vector.load %arg8[%c0_27, %c0_28, %c0_29] : memref<4x32x8xf32, #tpu.memory_space<vmem>>, vector<1x32x8xf32>
    %60 = vector.shape_cast %59 : vector<1x32x8xf32> to vector<32x8xf32>
    %cst_30 = arith.constant dense<0.000000e+00> : vector<64x8xf32>
    %61 = tpu.matmul %41, %60, %cst_30 {dimension_numbers = #tpu.dot_dimension_numbers<[1], [0], [0], [1], [0, 0, 1, 1], [], []>} : vector<64x32xf32>, vector<32x8xf32>, vector<64x8xf32> -> vector<64x8xf32>
    %c0_31 = arith.constant 0 : index
    %c0_32 = arith.constant 0 : index
    %c0_33 = arith.constant 0 : index
    %62 = vector.load %arg9[%c0_31, %c0_32, %c0_33] : memref<4x1x8xf32, #tpu.memory_space<vmem>>, vector<1x1x8xf32>
    %63 = vector.shape_cast %62 : vector<1x1x8xf32> to vector<1x8xf32>
    %64 = vector.broadcast %63 : vector<1x8xf32> to vector<64x8xf32>
    %65 = arith.addf %61, %64 : vector<64x8xf32>
    %66 = vector.shape_cast %65 : vector<64x8xf32> to vector<2x32x8xf32>
    "tpu.trace_start"() <{level = 10 : i32, message = "bqd,bkd->bqk"}> : () -> ()
    %cst_34 = arith.constant dense<0.000000e+00> : vector<2x32x32xf32>
    %67 = tpu.matmul %50, %58, %cst_34 {dimension_numbers = #tpu.dot_dimension_numbers<[2], [2], [1], [1], [0, 0, 0, 1, 1, 1], [0], [0]>} : vector<2x32x8xf32>, vector<2x32x8xf32>, vector<2x32x32xf32> -> vector<2x32x32xf32>
    "tpu.trace_stop"() : () -> ()
    %68 = arith.addf %67, %13 : vector<2x32x32xf32>
    %cst_35 = arith.constant dense<0xFF800000> : vector<2x32xf32>
    %69 = vector.multi_reduction <maximumf>, %68, %cst_35 [2] : vector<2x32x32xf32> to vector<2x32xf32>
    %70 = vector.shape_cast %69 : vector<2x32xf32> to vector<2x32x1xf32>
    %71 = vector.broadcast %70 : vector<2x32x1xf32> to vector<2x32x32xf32>
    %72 = arith.subf %68, %71 : vector<2x32x32xf32>
    %73 = math.exp %72 : vector<2x32x32xf32>
    %cst_36 = arith.constant dense<0.000000e+00> : vector<2x32xf32>
    %74 = vector.multi_reduction <add>, %73, %cst_36 [2] : vector<2x32x32xf32> to vector<2x32xf32>
    %75 = vector.shape_cast %74 : vector<2x32xf32> to vector<2x32x1xf32>
    "tpu.trace_start"() <{level = 10 : i32, message = "bqk,bkd->bqd"}> : () -> ()
    %cst_37 = arith.constant dense<0.000000e+00> : vector<2x32x8xf32>
    %76 = tpu.matmul %73, %66, %cst_37 {dimension_numbers = #tpu.dot_dimension_numbers<[2], [1], [1], [2], [0, 0, 0, 1, 1, 2], [0], [0]>} : vector<2x32x32xf32>, vector<2x32x8xf32>, vector<2x32x8xf32> -> vector<2x32x8xf32>
    "tpu.trace_stop"() : () -> ()
    %77 = tpu.reciprocal %75 {approx = true} : vector<2x32x1xf32> -> vector<2x32x1xf32>
    %78 = vector.broadcast %77 : vector<2x32x1xf32> to vector<2x32x8xf32>
    %79 = arith.mulf %76, %78 : vector<2x32x8xf32>
    %80 = vector.shape_cast %79 : vector<2x32x8xf32> to vector<64x8xf32>
    %c0_38 = arith.constant 0 : index
    %c0_39 = arith.constant 0 : index
    %c0_40 = arith.constant 0 : index
    %81 = vector.load %arg10[%c0_38, %c0_39, %c0_40] : memref<4x8x32xf32, #tpu.memory_space<vmem>>, vector<1x8x32xf32>
    %82 = vector.shape_cast %81 : vector<1x8x32xf32> to vector<8x32xf32>
    %cst_41 = arith.constant dense<0.000000e+00> : vector<64x32xf32>
    %83 = tpu.matmul %80, %82, %cst_41 {dimension_numbers = #tpu.dot_dimension_numbers<[1], [0], [0], [1], [0, 0, 1, 1], [], []>} : vector<64x8xf32>, vector<8x32xf32>, vector<64x32xf32> -> vector<64x32xf32>
    %84 = arith.addf %42, %83 : vector<64x32xf32>
    %c1 = arith.constant 1 : index
    %c0_42 = arith.constant 0 : index
    %c0_43 = arith.constant 0 : index
    %85 = vector.load %arg4[%c1, %c0_42, %c0_43] : memref<4x32x8xf32, #tpu.memory_space<vmem>>, vector<1x32x8xf32>
    %86 = vector.shape_cast %85 : vector<1x32x8xf32> to vector<32x8xf32>
    %cst_44 = arith.constant dense<0.000000e+00> : vector<64x8xf32>
    %87 = tpu.matmul %41, %86, %cst_44 {dimension_numbers = #tpu.dot_dimension_numbers<[1], [0], [0], [1], [0, 0, 1, 1], [], []>} : vector<64x32xf32>, vector<32x8xf32>, vector<64x8xf32> -> vector<64x8xf32>
    %c1_45 = arith.constant 1 : index
    %c0_46 = arith.constant 0 : index
    %c0_47 = arith.constant 0 : index
    %88 = vector.load %arg5[%c1_45, %c0_46, %c0_47] : memref<4x1x8xf32, #tpu.memory_space<vmem>>, vector<1x1x8xf32>
    %89 = vector.shape_cast %88 : vector<1x1x8xf32> to vector<1x8xf32>
    %90 = vector.broadcast %89 : vector<1x8xf32> to vector<64x8xf32>
    %91 = arith.addf %87, %90 : vector<64x8xf32>
    %92 = vector.shape_cast %91 : vector<64x8xf32> to vector<2x32x8xf32>
    %c1_48 = arith.constant 1 : index
    %c0_49 = arith.constant 0 : index
    %c0_50 = arith.constant 0 : index
    %93 = vector.load %arg6[%c1_48, %c0_49, %c0_50] : memref<4x32x8xf32, #tpu.memory_space<vmem>>, vector<1x32x8xf32>
    %94 = vector.shape_cast %93 : vector<1x32x8xf32> to vector<32x8xf32>
    %cst_51 = arith.constant dense<0.000000e+00> : vector<64x8xf32>
    %95 = tpu.matmul %41, %94, %cst_51 {dimension_numbers = #tpu.dot_dimension_numbers<[1], [0], [0], [1], [0, 0, 1, 1], [], []>} : vector<64x32xf32>, vector<32x8xf32>, vector<64x8xf32> -> vector<64x8xf32>
    %c1_52 = arith.constant 1 : index
    %c0_53 = arith.constant 0 : index
    %c0_54 = arith.constant 0 : index
    %96 = vector.load %arg7[%c1_52, %c0_53, %c0_54] : memref<4x1x8xf32, #tpu.memory_space<vmem>>, vector<1x1x8xf32>
    %97 = vector.shape_cast %96 : vector<1x1x8xf32> to vector<1x8xf32>
    %98 = vector.broadcast %97 : vector<1x8xf32> to vector<64x8xf32>
    %99 = arith.addf %95, %98 : vector<64x8xf32>
    %100 = vector.shape_cast %99 : vector<64x8xf32> to vector<2x32x8xf32>
    %c1_55 = arith.constant 1 : index
    %c0_56 = arith.constant 0 : index
    %c0_57 = arith.constant 0 : index
    %101 = vector.load %arg8[%c1_55, %c0_56, %c0_57] : memref<4x32x8xf32, #tpu.memory_space<vmem>>, vector<1x32x8xf32>
    %102 = vector.shape_cast %101 : vector<1x32x8xf32> to vector<32x8xf32>
    %cst_58 = arith.constant dense<0.000000e+00> : vector<64x8xf32>
    %103 = tpu.matmul %41, %102, %cst_58 {dimension_numbers = #tpu.dot_dimension_numbers<[1], [0], [0], [1], [0, 0, 1, 1], [], []>} : vector<64x32xf32>, vector<32x8xf32>, vector<64x8xf32> -> vector<64x8xf32>
    %c1_59 = arith.constant 1 : index
    %c0_60 = arith.constant 0 : index
    %c0_61 = arith.constant 0 : index
    %104 = vector.load %arg9[%c1_59, %c0_60, %c0_61] : memref<4x1x8xf32, #tpu.memory_space<vmem>>, vector<1x1x8xf32>
    %105 = vector.shape_cast %104 : vector<1x1x8xf32> to vector<1x8xf32>
    %106 = vector.broadcast %105 : vector<1x8xf32> to vector<64x8xf32>
    %107 = arith.addf %103, %106 : vector<64x8xf32>
    %108 = vector.shape_cast %107 : vector<64x8xf32> to vector<2x32x8xf32>
    "tpu.trace_start"() <{level = 10 : i32, message = "bqd,bkd->bqk"}> : () -> ()
    %cst_62 = arith.constant dense<0.000000e+00> : vector<2x32x32xf32>
    %109 = tpu.matmul %92, %100, %cst_62 {dimension_numbers = #tpu.dot_dimension_numbers<[2], [2], [1], [1], [0, 0, 0, 1, 1, 1], [0], [0]>} : vector<2x32x8xf32>, vector<2x32x8xf32>, vector<2x32x32xf32> -> vector<2x32x32xf32>
    "tpu.trace_stop"() : () -> ()
    %110 = arith.addf %109, %13 : vector<2x32x32xf32>
    %cst_63 = arith.constant dense<0xFF800000> : vector<2x32xf32>
    %111 = vector.multi_reduction <maximumf>, %110, %cst_63 [2] : vector<2x32x32xf32> to vector<2x32xf32>
    %112 = vector.shape_cast %111 : vector<2x32xf32> to vector<2x32x1xf32>
    %113 = vector.broadcast %112 : vector<2x32x1xf32> to vector<2x32x32xf32>
    %114 = arith.subf %110, %113 : vector<2x32x32xf32>
    %115 = math.exp %114 : vector<2x32x32xf32>
    %cst_64 = arith.constant dense<0.000000e+00> : vector<2x32xf32>
    %116 = vector.multi_reduction <add>, %115, %cst_64 [2] : vector<2x32x32xf32> to vector<2x32xf32>
    %117 = vector.shape_cast %116 : vector<2x32xf32> to vector<2x32x1xf32>
    "tpu.trace_start"() <{level = 10 : i32, message = "bqk,bkd->bqd"}> : () -> ()
    %cst_65 = arith.constant dense<0.000000e+00> : vector<2x32x8xf32>
    %118 = tpu.matmul %115, %108, %cst_65 {dimension_numbers = #tpu.dot_dimension_numbers<[2], [1], [1], [2], [0, 0, 0, 1, 1, 2], [0], [0]>} : vector<2x32x32xf32>, vector<2x32x8xf32>, vector<2x32x8xf32> -> vector<2x32x8xf32>
    "tpu.trace_stop"() : () -> ()
    %119 = tpu.reciprocal %117 {approx = true} : vector<2x32x1xf32> -> vector<2x32x1xf32>
    %120 = vector.broadcast %119 : vector<2x32x1xf32> to vector<2x32x8xf32>
    %121 = arith.mulf %118, %120 : vector<2x32x8xf32>
    %122 = vector.shape_cast %121 : vector<2x32x8xf32> to vector<64x8xf32>
    %c1_66 = arith.constant 1 : index
    %c0_67 = arith.constant 0 : index
    %c0_68 = arith.constant 0 : index
    %123 = vector.load %arg10[%c1_66, %c0_67, %c0_68] : memref<4x8x32xf32, #tpu.memory_space<vmem>>, vector<1x8x32xf32>
    %124 = vector.shape_cast %123 : vector<1x8x32xf32> to vector<8x32xf32>
    %cst_69 = arith.constant dense<0.000000e+00> : vector<64x32xf32>
    %125 = tpu.matmul %122, %124, %cst_69 {dimension_numbers = #tpu.dot_dimension_numbers<[1], [0], [0], [1], [0, 0, 1, 1], [], []>} : vector<64x8xf32>, vector<8x32xf32>, vector<64x32xf32> -> vector<64x32xf32>
    %126 = arith.addf %84, %125 : vector<64x32xf32>
    %c2 = arith.constant 2 : index
    %c0_70 = arith.constant 0 : index
    %c0_71 = arith.constant 0 : index
    %127 = vector.load %arg4[%c2, %c0_70, %c0_71] : memref<4x32x8xf32, #tpu.memory_space<vmem>>, vector<1x32x8xf32>
    %128 = vector.shape_cast %127 : vector<1x32x8xf32> to vector<32x8xf32>
    %cst_72 = arith.constant dense<0.000000e+00> : vector<64x8xf32>
    %129 = tpu.matmul %41, %128, %cst_72 {dimension_numbers = #tpu.dot_dimension_numbers<[1], [0], [0], [1], [0, 0, 1, 1], [], []>} : vector<64x32xf32>, vector<32x8xf32>, vector<64x8xf32> -> vector<64x8xf32>
    %c2_73 = arith.constant 2 : index
    %c0_74 = arith.constant 0 : index
    %c0_75 = arith.constant 0 : index
    %130 = vector.load %arg5[%c2_73, %c0_74, %c0_75] : memref<4x1x8xf32, #tpu.memory_space<vmem>>, vector<1x1x8xf32>
    %131 = vector.shape_cast %130 : vector<1x1x8xf32> to vector<1x8xf32>
    %132 = vector.broadcast %131 : vector<1x8xf32> to vector<64x8xf32>
    %133 = arith.addf %129, %132 : vector<64x8xf32>
    %134 = vector.shape_cast %133 : vector<64x8xf32> to vector<2x32x8xf32>
    %c2_76 = arith.constant 2 : index
    %c0_77 = arith.constant 0 : index
    %c0_78 = arith.constant 0 : index
    %135 = vector.load %arg6[%c2_76, %c0_77, %c0_78] : memref<4x32x8xf32, #tpu.memory_space<vmem>>, vector<1x32x8xf32>
    %136 = vector.shape_cast %135 : vector<1x32x8xf32> to vector<32x8xf32>
    %cst_79 = arith.constant dense<0.000000e+00> : vector<64x8xf32>
    %137 = tpu.matmul %41, %136, %cst_79 {dimension_numbers = #tpu.dot_dimension_numbers<[1], [0], [0], [1], [0, 0, 1, 1], [], []>} : vector<64x32xf32>, vector<32x8xf32>, vector<64x8xf32> -> vector<64x8xf32>
    %c2_80 = arith.constant 2 : index
    %c0_81 = arith.constant 0 : index
    %c0_82 = arith.constant 0 : index
    %138 = vector.load %arg7[%c2_80, %c0_81, %c0_82] : memref<4x1x8xf32, #tpu.memory_space<vmem>>, vector<1x1x8xf32>
    %139 = vector.shape_cast %138 : vector<1x1x8xf32> to vector<1x8xf32>
    %140 = vector.broadcast %139 : vector<1x8xf32> to vector<64x8xf32>
    %141 = arith.addf %137, %140 : vector<64x8xf32>
    %142 = vector.shape_cast %141 : vector<64x8xf32> to vector<2x32x8xf32>
    %c2_83 = arith.constant 2 : index
    %c0_84 = arith.constant 0 : index
    %c0_85 = arith.constant 0 : index
    %143 = vector.load %arg8[%c2_83, %c0_84, %c0_85] : memref<4x32x8xf32, #tpu.memory_space<vmem>>, vector<1x32x8xf32>
    %144 = vector.shape_cast %143 : vector<1x32x8xf32> to vector<32x8xf32>
    %cst_86 = arith.constant dense<0.000000e+00> : vector<64x8xf32>
    %145 = tpu.matmul %41, %144, %cst_86 {dimension_numbers = #tpu.dot_dimension_numbers<[1], [0], [0], [1], [0, 0, 1, 1], [], []>} : vector<64x32xf32>, vector<32x8xf32>, vector<64x8xf32> -> vector<64x8xf32>
    %c2_87 = arith.constant 2 : index
    %c0_88 = arith.constant 0 : index
    %c0_89 = arith.constant 0 : index
    %146 = vector.load %arg9[%c2_87, %c0_88, %c0_89] : memref<4x1x8xf32, #tpu.memory_space<vmem>>, vector<1x1x8xf32>
    %147 = vector.shape_cast %146 : vector<1x1x8xf32> to vector<1x8xf32>
    %148 = vector.broadcast %147 : vector<1x8xf32> to vector<64x8xf32>
    %149 = arith.addf %145, %148 : vector<64x8xf32>
    %150 = vector.shape_cast %149 : vector<64x8xf32> to vector<2x32x8xf32>
    "tpu.trace_start"() <{level = 10 : i32, message = "bqd,bkd->bqk"}> : () -> ()
    %cst_90 = arith.constant dense<0.000000e+00> : vector<2x32x32xf32>
    %151 = tpu.matmul %134, %142, %cst_90 {dimension_numbers = #tpu.dot_dimension_numbers<[2], [2], [1], [1], [0, 0, 0, 1, 1, 1], [0], [0]>} : vector<2x32x8xf32>, vector<2x32x8xf32>, vector<2x32x32xf32> -> vector<2x32x32xf32>
    "tpu.trace_stop"() : () -> ()
    %152 = arith.addf %151, %13 : vector<2x32x32xf32>
    %cst_91 = arith.constant dense<0xFF800000> : vector<2x32xf32>
    %153 = vector.multi_reduction <maximumf>, %152, %cst_91 [2] : vector<2x32x32xf32> to vector<2x32xf32>
    %154 = vector.shape_cast %153 : vector<2x32xf32> to vector<2x32x1xf32>
    %155 = vector.broadcast %154 : vector<2x32x1xf32> to vector<2x32x32xf32>
    %156 = arith.subf %152, %155 : vector<2x32x32xf32>
    %157 = math.exp %156 : vector<2x32x32xf32>
    %cst_92 = arith.constant dense<0.000000e+00> : vector<2x32xf32>
    %158 = vector.multi_reduction <add>, %157, %cst_92 [2] : vector<2x32x32xf32> to vector<2x32xf32>
    %159 = vector.shape_cast %158 : vector<2x32xf32> to vector<2x32x1xf32>
    "tpu.trace_start"() <{level = 10 : i32, message = "bqk,bkd->bqd"}> : () -> ()
    %cst_93 = arith.constant dense<0.000000e+00> : vector<2x32x8xf32>
    %160 = tpu.matmul %157, %150, %cst_93 {dimension_numbers = #tpu.dot_dimension_numbers<[2], [1], [1], [2], [0, 0, 0, 1, 1, 2], [0], [0]>} : vector<2x32x32xf32>, vector<2x32x8xf32>, vector<2x32x8xf32> -> vector<2x32x8xf32>
    "tpu.trace_stop"() : () -> ()
    %161 = tpu.reciprocal %159 {approx = true} : vector<2x32x1xf32> -> vector<2x32x1xf32>
    %162 = vector.broadcast %161 : vector<2x32x1xf32> to vector<2x32x8xf32>
    %163 = arith.mulf %160, %162 : vector<2x32x8xf32>
    %164 = vector.shape_cast %163 : vector<2x32x8xf32> to vector<64x8xf32>
    %c2_94 = arith.constant 2 : index
    %c0_95 = arith.constant 0 : index
    %c0_96 = arith.constant 0 : index
    %165 = vector.load %arg10[%c2_94, %c0_95, %c0_96] : memref<4x8x32xf32, #tpu.memory_space<vmem>>, vector<1x8x32xf32>
    %166 = vector.shape_cast %165 : vector<1x8x32xf32> to vector<8x32xf32>
    %cst_97 = arith.constant dense<0.000000e+00> : vector<64x32xf32>
    %167 = tpu.matmul %164, %166, %cst_97 {dimension_numbers = #tpu.dot_dimension_numbers<[1], [0], [0], [1], [0, 0, 1, 1], [], []>} : vector<64x8xf32>, vector<8x32xf32>, vector<64x32xf32> -> vector<64x32xf32>
    %168 = arith.addf %126, %167 : vector<64x32xf32>
    %c3 = arith.constant 3 : index
    %c0_98 = arith.constant 0 : index
    %c0_99 = arith.constant 0 : index
    %169 = vector.load %arg4[%c3, %c0_98, %c0_99] : memref<4x32x8xf32, #tpu.memory_space<vmem>>, vector<1x32x8xf32>
    %170 = vector.shape_cast %169 : vector<1x32x8xf32> to vector<32x8xf32>
    %cst_100 = arith.constant dense<0.000000e+00> : vector<64x8xf32>
    %171 = tpu.matmul %41, %170, %cst_100 {dimension_numbers = #tpu.dot_dimension_numbers<[1], [0], [0], [1], [0, 0, 1, 1], [], []>} : vector<64x32xf32>, vector<32x8xf32>, vector<64x8xf32> -> vector<64x8xf32>
    %c3_101 = arith.constant 3 : index
    %c0_102 = arith.constant 0 : index
    %c0_103 = arith.constant 0 : index
    %172 = vector.load %arg5[%c3_101, %c0_102, %c0_103] : memref<4x1x8xf32, #tpu.memory_space<vmem>>, vector<1x1x8xf32>
    %173 = vector.shape_cast %172 : vector<1x1x8xf32> to vector<1x8xf32>
    %174 = vector.broadcast %173 : vector<1x8xf32> to vector<64x8xf32>
    %175 = arith.addf %171, %174 : vector<64x8xf32>
    %176 = vector.shape_cast %175 : vector<64x8xf32> to vector<2x32x8xf32>
    %c3_104 = arith.constant 3 : index
    %c0_105 = arith.constant 0 : index
    %c0_106 = arith.constant 0 : index
    %177 = vector.load %arg6[%c3_104, %c0_105, %c0_106] : memref<4x32x8xf32, #tpu.memory_space<vmem>>, vector<1x32x8xf32>
    %178 = vector.shape_cast %177 : vector<1x32x8xf32> to vector<32x8xf32>
    %cst_107 = arith.constant dense<0.000000e+00> : vector<64x8xf32>
    %179 = tpu.matmul %41, %178, %cst_107 {dimension_numbers = #tpu.dot_dimension_numbers<[1], [0], [0], [1], [0, 0, 1, 1], [], []>} : vector<64x32xf32>, vector<32x8xf32>, vector<64x8xf32> -> vector<64x8xf32>
    %c3_108 = arith.constant 3 : index
    %c0_109 = arith.constant 0 : index
    %c0_110 = arith.constant 0 : index
    %180 = vector.load %arg7[%c3_108, %c0_109, %c0_110] : memref<4x1x8xf32, #tpu.memory_space<vmem>>, vector<1x1x8xf32>
    %181 = vector.shape_cast %180 : vector<1x1x8xf32> to vector<1x8xf32>
    %182 = vector.broadcast %181 : vector<1x8xf32> to vector<64x8xf32>
    %183 = arith.addf %179, %182 : vector<64x8xf32>
    %184 = vector.shape_cast %183 : vector<64x8xf32> to vector<2x32x8xf32>
    %c3_111 = arith.constant 3 : index
    %c0_112 = arith.constant 0 : index
    %c0_113 = arith.constant 0 : index
    %185 = vector.load %arg8[%c3_111, %c0_112, %c0_113] : memref<4x32x8xf32, #tpu.memory_space<vmem>>, vector<1x32x8xf32>
    %186 = vector.shape_cast %185 : vector<1x32x8xf32> to vector<32x8xf32>
    %cst_114 = arith.constant dense<0.000000e+00> : vector<64x8xf32>
    %187 = tpu.matmul %41, %186, %cst_114 {dimension_numbers = #tpu.dot_dimension_numbers<[1], [0], [0], [1], [0, 0, 1, 1], [], []>} : vector<64x32xf32>, vector<32x8xf32>, vector<64x8xf32> -> vector<64x8xf32>
    %c3_115 = arith.constant 3 : index
    %c0_116 = arith.constant 0 : index
    %c0_117 = arith.constant 0 : index
    %188 = vector.load %arg9[%c3_115, %c0_116, %c0_117] : memref<4x1x8xf32, #tpu.memory_space<vmem>>, vector<1x1x8xf32>
    %189 = vector.shape_cast %188 : vector<1x1x8xf32> to vector<1x8xf32>
    %190 = vector.broadcast %189 : vector<1x8xf32> to vector<64x8xf32>
    %191 = arith.addf %187, %190 : vector<64x8xf32>
    %192 = vector.shape_cast %191 : vector<64x8xf32> to vector<2x32x8xf32>
    "tpu.trace_start"() <{level = 10 : i32, message = "bqd,bkd->bqk"}> : () -> ()
    %cst_118 = arith.constant dense<0.000000e+00> : vector<2x32x32xf32>
    %193 = tpu.matmul %176, %184, %cst_118 {dimension_numbers = #tpu.dot_dimension_numbers<[2], [2], [1], [1], [0, 0, 0, 1, 1, 1], [0], [0]>} : vector<2x32x8xf32>, vector<2x32x8xf32>, vector<2x32x32xf32> -> vector<2x32x32xf32>
    "tpu.trace_stop"() : () -> ()
    %194 = arith.addf %193, %13 : vector<2x32x32xf32>
    %cst_119 = arith.constant dense<0xFF800000> : vector<2x32xf32>
    %195 = vector.multi_reduction <maximumf>, %194, %cst_119 [2] : vector<2x32x32xf32> to vector<2x32xf32>
    %196 = vector.shape_cast %195 : vector<2x32xf32> to vector<2x32x1xf32>
    %197 = vector.broadcast %196 : vector<2x32x1xf32> to vector<2x32x32xf32>
    %198 = arith.subf %194, %197 : vector<2x32x32xf32>
    %199 = math.exp %198 : vector<2x32x32xf32>
    %cst_120 = arith.constant dense<0.000000e+00> : vector<2x32xf32>
    %200 = vector.multi_reduction <add>, %199, %cst_120 [2] : vector<2x32x32xf32> to vector<2x32xf32>
    %201 = vector.shape_cast %200 : vector<2x32xf32> to vector<2x32x1xf32>
    "tpu.trace_start"() <{level = 10 : i32, message = "bqk,bkd->bqd"}> : () -> ()
    %cst_121 = arith.constant dense<0.000000e+00> : vector<2x32x8xf32>
    %202 = tpu.matmul %199, %192, %cst_121 {dimension_numbers = #tpu.dot_dimension_numbers<[2], [1], [1], [2], [0, 0, 0, 1, 1, 2], [0], [0]>} : vector<2x32x32xf32>, vector<2x32x8xf32>, vector<2x32x8xf32> -> vector<2x32x8xf32>
    "tpu.trace_stop"() : () -> ()
    %203 = tpu.reciprocal %201 {approx = true} : vector<2x32x1xf32> -> vector<2x32x1xf32>
    %204 = vector.broadcast %203 : vector<2x32x1xf32> to vector<2x32x8xf32>
    %205 = arith.mulf %202, %204 : vector<2x32x8xf32>
    %206 = vector.shape_cast %205 : vector<2x32x8xf32> to vector<64x8xf32>
    %c3_122 = arith.constant 3 : index
    %c0_123 = arith.constant 0 : index
    %c0_124 = arith.constant 0 : index
    %207 = vector.load %arg10[%c3_122, %c0_123, %c0_124] : memref<4x8x32xf32, #tpu.memory_space<vmem>>, vector<1x8x32xf32>
    %208 = vector.shape_cast %207 : vector<1x8x32xf32> to vector<8x32xf32>
    %cst_125 = arith.constant dense<0.000000e+00> : vector<64x32xf32>
    %209 = tpu.matmul %206, %208, %cst_125 {dimension_numbers = #tpu.dot_dimension_numbers<[1], [0], [0], [1], [0, 0, 1, 1], [], []>} : vector<64x8xf32>, vector<8x32xf32>, vector<64x32xf32> -> vector<64x32xf32>
    %210 = arith.addf %168, %209 : vector<64x32xf32>
    %211 = arith.addf %1, %210 : vector<64x32xf32>
    %c0_126 = arith.constant 0 : index
    %c0_127 = arith.constant 0 : index
    %212 = vector.load %arg11[%c0_126, %c0_127] : memref<1x32xf32, #tpu.memory_space<vmem>>, vector<1x32xf32>
    %213 = vector.shape_cast %212 : vector<1x32xf32> to vector<32xf32>
    %214 = vector.shape_cast %213 : vector<32xf32> to vector<1x32xf32>
    %215 = vector.broadcast %214 : vector<1x32xf32> to vector<64x32xf32>
    %216 = arith.addf %211, %215 : vector<64x32xf32>
    %c0_128 = arith.constant 0 : index
    %c0_129 = arith.constant 0 : index
    %217 = vector.load %arg12[%c0_128, %c0_129] : memref<1x32xf32, #tpu.memory_space<vmem>>, vector<1x32xf32>
    %218 = vector.shape_cast %217 : vector<1x32xf32> to vector<32xf32>
    %c0_130 = arith.constant 0 : index
    %c0_131 = arith.constant 0 : index
    %219 = vector.load %arg13[%c0_130, %c0_131] : memref<1x32xf32, #tpu.memory_space<vmem>>, vector<1x32xf32>
    %220 = vector.shape_cast %219 : vector<1x32xf32> to vector<32xf32>
    %cst_132 = arith.constant dense<0.000000e+00> : vector<64xf32>
    %221 = vector.multi_reduction <add>, %216, %cst_132 [1] : vector<64x32xf32> to vector<64xf32>
    %222 = vector.shape_cast %221 : vector<64xf32> to vector<64x1xf32>
    %cst_133 = arith.constant 3.200000e+01 : f32
    %223 = vector.broadcast %cst_133 : f32 to vector<64x1xf32>
    %224 = arith.divf %222, %223 : vector<64x1xf32>
    %225 = vector.broadcast %224 : vector<64x1xf32> to vector<64x32xf32>
    %226 = arith.subf %216, %225 : vector<64x32xf32>
    %227 = arith.mulf %226, %226 : vector<64x32xf32>
    %cst_134 = arith.constant dense<0.000000e+00> : vector<64xf32>
    %228 = vector.multi_reduction <add>, %227, %cst_134 [1] : vector<64x32xf32> to vector<64xf32>
    %229 = vector.shape_cast %228 : vector<64xf32> to vector<64x1xf32>
    %cst_135 = arith.constant 3.200000e+01 : f32
    %230 = vector.broadcast %cst_135 : f32 to vector<64x1xf32>
    %231 = arith.divf %229, %230 : vector<64x1xf32>
    %232 = vector.broadcast %224 : vector<64x1xf32> to vector<64x32xf32>
    %233 = arith.subf %216, %232 : vector<64x32xf32>
    %cst_136 = arith.constant 9.99999974E-6 : f32
    %234 = vector.broadcast %cst_136 : f32 to vector<64x1xf32>
    %235 = arith.addf %231, %234 : vector<64x1xf32>
    %236 = math.rsqrt %235 : vector<64x1xf32>
    %237 = vector.broadcast %236 : vector<64x1xf32> to vector<64x32xf32>
    %238 = arith.mulf %233, %237 : vector<64x32xf32>
    %239 = vector.shape_cast %218 : vector<32xf32> to vector<1x32xf32>
    %240 = vector.broadcast %239 : vector<1x32xf32> to vector<64x32xf32>
    %241 = arith.mulf %238, %240 : vector<64x32xf32>
    %242 = vector.shape_cast %220 : vector<32xf32> to vector<1x32xf32>
    %243 = vector.broadcast %242 : vector<1x32xf32> to vector<64x32xf32>
    %244 = arith.addf %241, %243 : vector<64x32xf32>
    %c0_137 = arith.constant 0 : index
    %c0_138 = arith.constant 0 : index
    %245 = vector.load %arg14[%c0_137, %c0_138] : memref<32x128xf32, #tpu.memory_space<vmem>>, vector<32x128xf32>
    %cst_139 = arith.constant dense<0.000000e+00> : vector<64x128xf32>
    %246 = tpu.matmul %244, %245, %cst_139 {dimension_numbers = #tpu.dot_dimension_numbers<[1], [0], [0], [1], [0, 0, 1, 1], [], []>} : vector<64x32xf32>, vector<32x128xf32>, vector<64x128xf32> -> vector<64x128xf32>
    %c0_140 = arith.constant 0 : index
    %c0_141 = arith.constant 0 : index
    %247 = vector.load %arg15[%c0_140, %c0_141] : memref<1x128xf32, #tpu.memory_space<vmem>>, vector<1x128xf32>
    %248 = vector.shape_cast %247 : vector<1x128xf32> to vector<128xf32>
    %249 = vector.shape_cast %248 : vector<128xf32> to vector<1x128xf32>
    %250 = vector.broadcast %249 : vector<1x128xf32> to vector<64x128xf32>
    %251 = arith.addf %246, %250 : vector<64x128xf32>
    %cst_142 = arith.constant 5.000000e-01 : f32
    %252 = vector.broadcast %cst_142 : f32 to vector<64x128xf32>
    %253 = arith.mulf %252, %251 : vector<64x128xf32>
    %254 = arith.mulf %251, %251 : vector<64x128xf32>
    %255 = arith.mulf %251, %254 : vector<64x128xf32>
    %cst_143 = arith.constant 4.471500e-02 : f32
    %256 = vector.broadcast %cst_143 : f32 to vector<64x128xf32>
    %257 = arith.mulf %256, %255 : vector<64x128xf32>
    %258 = arith.addf %251, %257 : vector<64x128xf32>
    %cst_144 = arith.constant 0.797884583 : f32
    %259 = vector.broadcast %cst_144 : f32 to vector<64x128xf32>
    %260 = arith.mulf %259, %258 : vector<64x128xf32>
    %261 = math.tanh %260 : vector<64x128xf32>
    %cst_145 = arith.constant 1.000000e+00 : f32
    %262 = vector.broadcast %cst_145 : f32 to vector<64x128xf32>
    %263 = arith.addf %262, %261 : vector<64x128xf32>
    %264 = arith.mulf %253, %263 : vector<64x128xf32>
    %c0_146 = arith.constant 0 : index
    %c0_147 = arith.constant 0 : index
    %265 = vector.load %arg16[%c0_146, %c0_147] : memref<128x32xf32, #tpu.memory_space<vmem>>, vector<128x32xf32>
    %cst_148 = arith.constant dense<0.000000e+00> : vector<64x32xf32>
    %266 = tpu.matmul %264, %265, %cst_148 {dimension_numbers = #tpu.dot_dimension_numbers<[1], [0], [0], [1], [0, 0, 1, 1], [], []>} : vector<64x128xf32>, vector<128x32xf32>, vector<64x32xf32> -> vector<64x32xf32>
    %c0_149 = arith.constant 0 : index
    %c0_150 = arith.constant 0 : index
    %267 = vector.load %arg17[%c0_149, %c0_150] : memref<1x32xf32, #tpu.memory_space<vmem>>, vector<1x32xf32>
    %268 = vector.shape_cast %267 : vector<1x32xf32> to vector<32xf32>
    %269 = vector.shape_cast %268 : vector<32xf32> to vector<1x32xf32>
    %270 = vector.broadcast %269 : vector<1x32xf32> to vector<64x32xf32>
    %271 = arith.addf %266, %270 : vector<64x32xf32>
    %272 = arith.addf %216, %271 : vector<64x32xf32>
    %273 = vector.shape_cast %272 : vector<64x32xf32> to vector<2x32x32xf32>
    %c0_151 = arith.constant 0 : index
    %c0_152 = arith.constant 0 : index
    %c0_153 = arith.constant 0 : index
    %274 = vector.load %arg18[%c0_151, %c0_152, %c0_153] : memref<2x32x32xf32, #tpu.memory_space<vmem>>, vector<2x32x32xf32>
    tpu.vector_store %arg18[%c0_151, %c0_152, %c0_153], %273 {strides = array<i32>} : memref<2x32x32xf32, #tpu.memory_space<vmem>>, vector<2x32x32xf32>,
    return
  }
  func.func @transform_0(%arg0: i32) -> (i32, i32, i32) {
    %c0_i32 = arith.constant 0 : i32
    %c0_i32_0 = arith.constant 0 : i32
    %c0_i32_1 = arith.constant 0 : i32
    return %arg0, %c0_i32, %c0_i32_0 : i32, i32, i32
  }
  func.func @transform_1(%arg0: i32) -> (i32, i32) {
    %c0_i32 = arith.constant 0 : i32
    %c0_i32_0 = arith.constant 0 : i32
    %c0_i32_1 = arith.constant 0 : i32
    return %c0_i32, %c0_i32_0 : i32, i32
  }
  func.func @transform_2(%arg0: i32) -> (i32, i32) {
    %c0_i32 = arith.constant 0 : i32
    %c0_i32_0 = arith.constant 0 : i32
    %c0_i32_1 = arith.constant 0 : i32
    return %c0_i32, %c0_i32_0 : i32, i32
  }
  func.func @transform_3(%arg0: i32) -> (i32, i32, i32) {
    %c0_i32 = arith.constant 0 : i32
    %c0_i32_0 = arith.constant 0 : i32
    %c0_i32_1 = arith.constant 0 : i32
    %c0_i32_2 = arith.constant 0 : i32
    return %c0_i32, %c0_i32_0, %c0_i32_1 : i32, i32, i32
  }
  func.func @transform_4(%arg0: i32) -> (i32, i32, i32) {
    %c0_i32 = arith.constant 0 : i32
    %c0_i32_0 = arith.constant 0 : i32
    %c0_i32_1 = arith.constant 0 : i32
    %c0_i32_2 = arith.constant 0 : i32
    return %c0_i32, %c0_i32_0, %c0_i32_1 : i32, i32, i32
  }
  func.func @transform_5(%arg0: i32) -> (i32, i32, i32) {
    %c0_i32 = arith.constant 0 : i32
    %c0_i32_0 = arith.constant 0 : i32
    %c0_i32_1 = arith.constant 0 : i32
    %c0_i32_2 = arith.constant 0 : i32
    return %c0_i32, %c0_i32_0, %c0_i32_1 : i32, i32, i32
  }
  func.func @transform_6(%arg0: i32) -> (i32, i32, i32) {
    %c0_i32 = arith.constant 0 : i32
    %c0_i32_0 = arith.constant 0 : i32
    %c0_i32_1 = arith.constant 0 : i32
    %c0_i32_2 = arith.constant 0 : i32
    return %c0_i32, %c0_i32_0, %c0_i32_1 : i32, i32, i32
  }
  func.func @transform_7(%arg0: i32) -> (i32, i32, i32) {
    %c0_i32 = arith.constant 0 : i32
    %c0_i32_0 = arith.constant 0 : i32
    %c0_i32_1 = arith.constant 0 : i32
    %c0_i32_2 = arith.constant 0 : i32
    return %c0_i32, %c0_i32_0, %c0_i32_1 : i32, i32, i32
  }
  func.func @transform_8(%arg0: i32) -> (i32, i32, i32) {
    %c0_i32 = arith.constant 0 : i32
    %c0_i32_0 = arith.constant 0 : i32
    %c0_i32_1 = arith.constant 0 : i32
    %c0_i32_2 = arith.constant 0 : i32
    return %c0_i32, %c0_i32_0, %c0_i32_1 : i32, i32, i32
  }
  func.func @transform_9(%arg0: i32) -> (i32, i32, i32) {
    %c0_i32 = arith.constant 0 : i32
    %c0_i32_0 = arith.constant 0 : i32
    %c0_i32_1 = arith.constant 0 : i32
    %c0_i32_2 = arith.constant 0 : i32
    return %c0_i32, %c0_i32_0, %c0_i32_1 : i32, i32, i32
  }
  func.func @transform_10(%arg0: i32) -> (i32, i32) {
    %c0_i32 = arith.constant 0 : i32
    %c0_i32_0 = arith.constant 0 : i32
    %c0_i32_1 = arith.constant 0 : i32
    return %c0_i32, %c0_i32_0 : i32, i32
  }
  func.func @transform_11(%arg0: i32) -> (i32, i32) {
    %c0_i32 = arith.constant 0 : i32
    %c0_i32_0 = arith.constant 0 : i32
    %c0_i32_1 = arith.constant 0 : i32
    return %c0_i32, %c0_i32_0 : i32, i32
  }
  func.func @transform_12(%arg0: i32) -> (i32, i32) {
    %c0_i32 = arith.constant 0 : i32
    %c0_i32_0 = arith.constant 0 : i32
    %c0_i32_1 = arith.constant 0 : i32
    return %c0_i32, %c0_i32_0 : i32, i32
  }
  func.func @transform_13(%arg0: i32) -> (i32, i32) {
    %c0_i32 = arith.constant 0 : i32
    %c0_i32_0 = arith.constant 0 : i32
    %c0_i32_1 = arith.constant 0 : i32
    return %c0_i32, %c0_i32_0 : i32, i32
  }
  func.func @transform_14(%arg0: i32) -> (i32, i32) {
    %c0_i32 = arith.constant 0 : i32
    %c0_i32_0 = arith.constant 0 : i32
    %c0_i32_1 = arith.constant 0 : i32
    return %c0_i32, %c0_i32_0 : i32, i32
  }
  func.func @transform_15(%arg0: i32) -> (i32, i32) {
    %c0_i32 = arith.constant 0 : i32
    %c0_i32_0 = arith.constant 0 : i32
    %c0_i32_1 = arith.constant 0 : i32
    return %c0_i32, %c0_i32_0 : i32, i32
  }
  func.func @transform_16(%arg0: i32) -> (i32, i32) {
    %c0_i32 = arith.constant 0 : i32
    %c0_i32_0 = arith.constant 0 : i32
    %c0_i32_1 = arith.constant 0 : i32
    return %c0_i32, %c0_i32_0 : i32, i32
  }
  func.func @transform_17(%arg0: i32) -> (i32, i32, i32) {
    %c0_i32 = arith.constant 0 : i32
    %c0_i32_0 = arith.constant 0 : i32
    %c0_i32_1 = arith.constant 0 : i32
    return %arg0, %c0_i32, %c0_i32_0 : i32, i32, i32
  }
}

</mosaic_0001>

<llo_original>
// kernel: tpu_custom_call.1
$region0: #{tpu_custom_call.1}
  #allocation0 [shape = 'u32[]', space=smem, size = 0x4, offset = 0x4, fixed_abs, tag = 'smem constant byte address 0x4 - core index']
  #allocation1 [shape = 'u32[144,128]{1,0:T(1,128)}', space=vmem, size = 0x12000, scoped, tag = 'internal scratch']
  %s0 = inlined_call_operand.vmem [shape: f32[2,32,32], index: 0, kind: input, shape index: {}]
  %s1 = inlined_call_operand.vmem [shape: f32[1,32], index: 1, kind: input, shape index: {}]
  %s2 = inlined_call_operand.vmem [shape: f32[1,32], index: 2, kind: input, shape index: {}]
  %s3 = inlined_call_operand.vmem [shape: f32[4,32,8], index: 3, kind: input, shape index: {}]
  %s4 = inlined_call_operand.vmem [shape: f32[4,1,8], index: 4, kind: input, shape index: {}]
  %s5 = inlined_call_operand.vmem [shape: f32[4,32,8], index: 5, kind: input, shape index: {}]
  %s6 = inlined_call_operand.vmem [shape: f32[4,1,8], index: 6, kind: input, shape index: {}]
  %s7 = inlined_call_operand.vmem [shape: f32[4,32,8], index: 7, kind: input, shape index: {}]
  %s8 = inlined_call_operand.vmem [shape: f32[4,1,8], index: 8, kind: input, shape index: {}]
  %s9 = inlined_call_operand.vmem [shape: f32[4,8,32], index: 9, kind: input, shape index: {}]
  %s10 = inlined_call_operand.vmem [shape: f32[1,32], index: 10, kind: input, shape index: {}]
  %s11 = inlined_call_operand.vmem [shape: f32[1,32], index: 11, kind: input, shape index: {}]
  %s12 = inlined_call_operand.vmem [shape: f32[1,32], index: 12, kind: input, shape index: {}]
  %s13 = inlined_call_operand.vmem [shape: f32[32,128], index: 13, kind: input, shape index: {}]
  %s14 = inlined_call_operand.vmem [shape: f32[1,128], index: 14, kind: input, shape index: {}]
  %s15 = inlined_call_operand.vmem [shape: f32[128,32], index: 15, kind: input, shape index: {}]
  %s16 = inlined_call_operand.vmem [shape: f32[1,32], index: 16, kind: input, shape index: {}]
  %s17 = inlined_call_operand.hbm [shape: f32[2,32,32], index: 17, kind: output, shape index: {}]
  %s18 = sld [smem:[#allocation0]]
  $region78: #{tpu_custom_call.1} parent=0
    _
  %s20 = ssub.s32 1, %s18
  %s21 = scalar_select 0, %s20, %s18
  $region1: #{tpu_custom_call.1} parent=0
    #allocation2 [shape = 'u8[32768]{0}', space=vmem, size = 0x8000, scoped, tag = 'output window, operand 0, single buffered']
    #allocation3 [shape = 's32[1]{0}', space=sflag, size = 0x4, scoped, tag = 'scoped memory for tpu_custom_call.1']
    %22 = vsyncpa [#allocation3], 0
    // Predicated region
    $region2: #{tpu_custom_call.1} parent=1 // pred_check
      _
    $region3: #{tpu_custom_call.1} parent=1 // pred_check_branch
      %24 = sbr.rel (0) target = $region5
    $region4: #{tpu_custom_call.1} parent=1 // pred_region
      _
    $region5: #{tpu_custom_call.1} parent=1 // pred_fallthru
      _
    // Predicated region
    $region6: #{tpu_custom_call.1} parent=1 // pred_check
      _
    $region7: #{tpu_custom_call.1} parent=1 // pred_check_branch
      %26 = sbr.rel (0) target = $region9
    $region8: #{tpu_custom_call.1} parent=1 // pred_region
      _
    $region9: #{tpu_custom_call.1} parent=1 // pred_fallthru
      _
    // Predicated region
    $region10: #{tpu_custom_call.1} parent=1 // pred_check
      _
    $region11: #{tpu_custom_call.1} parent=1 // pred_check_branch
      %28 = sbr.rel (0) target = $region13
    $region12: #{tpu_custom_call.1} parent=1 // pred_region
      _
    $region13: #{tpu_custom_call.1} parent=1 // pred_fallthru
      _
    // Predicated region
    $region14: #{tpu_custom_call.1} parent=1 // pred_check
      _
    $region15: #{tpu_custom_call.1} parent=1 // pred_check_branch
      %30 = sbr.rel (0) target = $region17
    $region16: #{tpu_custom_call.1} parent=1 // pred_region
      _
    $region17: #{tpu_custom_call.1} parent=1 // pred_fallthru
      _
    // Predicated region
    $region18: #{tpu_custom_call.1} parent=1 // pred_check
      _
    $region19: #{tpu_custom_call.1} parent=1 // pred_check_branch
      %32 = sbr.rel (0) target = $region21
    $region20: #{tpu_custom_call.1} parent=1 // pred_region
      _
    $region21: #{tpu_custom_call.1} parent=1 // pred_fallthru
      _
    // Predicated region
    $region22: #{tpu_custom_call.1} parent=1 // pred_check
      _
    $region23: #{tpu_custom_call.1} parent=1 // pred_check_branch
      %34 = sbr.rel (0) target = $region25
    $region24: #{tpu_custom_call.1} parent=1 // pred_region
      _
    $region25: #{tpu_custom_call.1} parent=1 // pred_fallthru
      _
    // Predicated region
    $region26: #{tpu_custom_call.1} parent=1 // pred_check
      _
    $region27: #{tpu_custom_call.1} parent=1 // pred_check_branch
      %36 = sbr.rel (0) target = $region29
    $region28: #{tpu_custom_call.1} parent=1 // pred_region
      _
    $region29: #{tpu_custom_call.1} parent=1 // pred_fallthru
      _
    // Predicated region
    $region30: #{tpu_custom_call.1} parent=1 // pred_check
      _
    $region31: #{tpu_custom_call.1} parent=1 // pred_check_branch
      %38 = sbr.rel (0) target = $region33
    $region32: #{tpu_custom_call.1} parent=1 // pred_region
      _
    $region33: #{tpu_custom_call.1} parent=1 // pred_fallthru
      _
    // Predicated region
    $region34: #{tpu_custom_call.1} parent=1 // pred_check
      _
    $region35: #{tpu_custom_call.1} parent=1 // pred_check_branch
      %40 = sbr.rel (0) target = $region37
    $region36: #{tpu_custom_call.1} parent=1 // pred_region
      _
    $region37: #{tpu_custom_call.1} parent=1 // pred_fallthru
      _
    // Predicated region
    $region38: #{tpu_custom_call.1} parent=1 // pred_check
      _
    $region39: #{tpu_custom_call.1} parent=1 // pred_check_branch
      %42 = sbr.rel (0) target = $region41
    $region40: #{tpu_custom_call.1} parent=1 // pred_region
      _
    $region41: #{tpu_custom_call.1} parent=1 // pred_fallthru
      _
    // Predicated region
    $region42: #{tpu_custom_call.1} parent=1 // pred_check
      _
    $region43: #{tpu_custom_call.1} parent=1 // pred_check_branch
      %44 = sbr.rel (0) target = $region45
    $region44: #{tpu_custom_call.1} parent=1 // pred_region
      _
    $region45: #{tpu_custom_call.1} parent=1 // pred_fallthru
      _
    // Predicated region
    $region46: #{tpu_custom_call.1} parent=1 // pred_check
      _
    $region47: #{tpu_custom_call.1} parent=1 // pred_check_branch
      %46 = sbr.rel (0) target = $region49
    $region48: #{tpu_custom_call.1} parent=1 // pred_region
      _
    $region49: #{tpu_custom_call.1} parent=1 // pred_fallthru
      _
    // Predicated region
    $region50: #{tpu_custom_call.1} parent=1 // pred_check
      _
    $region51: #{tpu_custom_call.1} parent=1 // pred_check_branch
      %48 = sbr.rel (0) target = $region53
    $region52: #{tpu_custom_call.1} parent=1 // pred_region
      _
    $region53: #{tpu_custom_call.1} parent=1 // pred_fallthru
      _
    // Predicated region
    $region54: #{tpu_custom_call.1} parent=1 // pred_check
      _
    $region55: #{tpu_custom_call.1} parent=1 // pred_check_branch
      %50 = sbr.rel (0) target = $region57
    $region56: #{tpu_custom_call.1} parent=1 // pred_region
      _
    $region57: #{tpu_custom_call.1} parent=1 // pred_fallthru
      _
    // Predicated region
    $region58: #{tpu_custom_call.1} parent=1 // pred_check
      _
    $region59: #{tpu_custom_call.1} parent=1 // pred_check_branch
      %52 = sbr.rel (0) target = $region61
    $region60: #{tpu_custom_call.1} parent=1 // pred_region
      _
    $region61: #{tpu_custom_call.1} parent=1 // pred_fallthru
      _
    // Predicated region
    $region62: #{tpu_custom_call.1} parent=1 // pred_check
      _
    $region63: #{tpu_custom_call.1} parent=1 // pred_check_branch
      %54 = sbr.rel (0) target = $region65
    $region64: #{tpu_custom_call.1} parent=1 // pred_region
      _
    $region65: #{tpu_custom_call.1} parent=1 // pred_fallthru
      _
    // Predicated region
    $region66: #{tpu_custom_call.1} parent=1 // pred_check
      _
    $region67: #{tpu_custom_call.1} parent=1 // pred_check_branch
      %56 = sbr.rel (0) target = $region69
    $region68: #{tpu_custom_call.1} parent=1 // pred_region
      _
    $region69: #{tpu_custom_call.1} parent=1 // pred_fallthru
      _
    %v57 = vld [vmem:[%s0] sm:$0xff]
    %v58 = vld [vmem:[%s0 + $0x8] sm:$0xff]
    %v59 = vld [vmem:[%s0 + $0x10] sm:$0xff]
    %v60 = vld [vmem:[%s0 + $0x18] sm:$0xff]
    %v61 = vld [vmem:[%s0 + $0x20] sm:$0xff]
    %v62 = vld [vmem:[%s0 + $0x28] sm:$0xff]
    %v63 = vld [vmem:[%s0 + $0x30] sm:$0xff]
    %v64 = vld [vmem:[%s0 + $0x38] sm:$0xff]
    %v65 = vlaneseq
    %v66 = vshrl.u32 %v65, 7
    %v67 = vadd.s32 %v66, 8
    %v68 = vadd.s32 %v66, 16
    %v69 = vadd.s32 %v66, 24
    %v70 = vlaneseq
    %v71 = vand.u32 %v70, 127
    %vm72 = vcmp.ge.s32.totalorder %v66, %v71
    %vm73 = vcmp.ge.s32.totalorder %v67, %v71
    %vm74 = vcmp.ge.s32.totalorder %v68, %v71
    %vm75 = vcmp.ge.s32.totalorder %v69, %v71
    %vm76 = vcmp.lt.s32.totalorder %v71, 28
    %vm77 = vmor %vm72, %vm76
    %vm78 = vmor %vm73, %vm76
    %vm79 = vmor %vm74, %vm76
    %vm80 = vmor %vm75, %vm76
    %v81 = vsel %vm77, 0.0, -1e+30
    %v82 = vsel %vm78, 0.0, -1e+30
    %v83 = vsel %vm79, 0.0, -1e+30
    %v84 = vsel %vm80, 0.0, -1e+30
    %v85 = vld [vmem:[%s1] sm:$0x1]
    %v86 = vld [vmem:[%s2] sm:$0x1]
    %vm87 = vcmask 261120
    %v88 = vsel %vm87, %v57, 0.0
    %89 = vadd.xlane.f32.xlu0 %v88
    %v90 = vpop.xlane.xlu0 %89
    %v91 = vsel %vm87, %v58, 0.0
    %92 = vadd.xlane.f32.xlu0 %v91
    %v93 = vpop.xlane.xlu0 %92
    %v94 = vsel %vm87, %v59, 0.0
    %95 = vadd.xlane.f32.xlu0 %v94
    %v96 = vpop.xlane.xlu0 %95
    %v97 = vsel %vm87, %v60, 0.0
    %98 = vadd.xlane.f32.xlu0 %v97
    %v99 = vpop.xlane.xlu0 %98
    %v100 = vsel %vm87, %v61, 0.0
    %101 = vadd.xlane.f32.xlu0 %v100
    %v102 = vpop.xlane.xlu0 %101
    %v103 = vsel %vm87, %v62, 0.0
    %104 = vadd.xlane.f32.xlu0 %v103
    %v105 = vpop.xlane.xlu0 %104
    %v106 = vsel %vm87, %v63, 0.0
    %107 = vadd.xlane.f32.xlu0 %v106
    %v108 = vpop.xlane.xlu0 %107
    %v109 = vsel %vm87, %v64, 0.0
    %110 = vadd.xlane.f32.xlu0 %v109
    %v111 = vpop.xlane.xlu0 %110
    %v112 = vrcp.pop 32.0
    %v113 = vmul.f32 %v90, %v112
    %v114 = vmul.f32 %v93, %v112
    %v115 = vmul.f32 %v96, %v112
    %v116 = vmul.f32 %v99, %v112
    %v117 = vmul.f32 %v102, %v112
    %v118 = vmul.f32 %v105, %v112
    %v119 = vmul.f32 %v108, %v112
    %v120 = vmul.f32 %v111, %v112
    %v121 = vsub.f32 %v57, %v113
    %v122 = vsub.f32 %v58, %v114
    %v123 = vsub.f32 %v59, %v115
    %v124 = vsub.f32 %v60, %v116
    %v125 = vsub.f32 %v61, %v117
    %v126 = vsub.f32 %v62, %v118
    %v127 = vsub.f32 %v63, %v119
    %v128 = vsub.f32 %v64, %v120
    %v129 = vmul.f32 %v121, %v121
    %v130 = vmul.f32 %v122, %v122
    %v131 = vmul.f32 %v123, %v123
    %v132 = vmul.f32 %v124, %v124
    %v133 = vmul.f32 %v125, %v125
    %v134 = vmul.f32 %v126, %v126
    %v135 = vmul.f32 %v127, %v127
    %v136 = vmul.f32 %v128, %v128
    %v137 = vsel %vm87, %v129, 0.0
    %138 = vadd.xlane.f32.xlu0 %v137
    %v139 = vpop.xlane.xlu0 %138
    %v140 = vsel %vm87, %v130, 0.0
    %141 = vadd.xlane.f32.xlu0 %v140
    %v142 = vpop.xlane.xlu0 %141
    %v143 = vsel %vm87, %v131, 0.0
    %144 = vadd.xlane.f32.xlu0 %v143
    %v145 = vpop.xlane.xlu0 %144
    %v146 = vsel %vm87, %v132, 0.0
    %147 = vadd.xlane.f32.xlu0 %v146
    %v148 = vpop.xlane.xlu0 %147
    %v149 = vsel %vm87, %v133, 0.0
    %150 = vadd.xlane.f32.xlu0 %v149
    %v151 = vpop.xlane.xlu0 %150
    %v152 = vsel %vm87, %v134, 0.0
    %153 = vadd.xlane.f32.xlu0 %v152
    %v154 = vpop.xlane.xlu0 %153
    %v155 = vsel %vm87, %v135, 0.0
    %156 = vadd.xlane.f32.xlu0 %v155
    %v157 = vpop.xlane.xlu0 %156
    %v158 = vsel %vm87, %v136, 0.0
    %159 = vadd.xlane.f32.xlu0 %v158
    %v160 = vpop.xlane.xlu0 %159
    %v161 = vmul.f32 %v139, %v112
    %v162 = vmul.f32 %v142, %v112
    %v163 = vmul.f32 %v145, %v112
    %v164 = vmul.f32 %v148, %v112
    %v165 = vmul.f32 %v151, %v112
    %v166 = vmul.f32 %v154, %v112
    %v167 = vmul.f32 %v157, %v112
    %v168 = vmul.f32 %v160, %v112
    %v169 = vadd.f32 %v161, 1e-05
    %v170 = vadd.f32 %v162, 1e-05
    %v171 = vadd.f32 %v163, 1e-05
    %v172 = vadd.f32 %v164, 1e-05
    %v173 = vadd.f32 %v165, 1e-05
    %v174 = vadd.f32 %v166, 1e-05
    %v175 = vadd.f32 %v167, 1e-05
    %v176 = vadd.f32 %v168, 1e-05
    %v177 = vrsqrt.pop %v169
    %v178 = vrsqrt.pop %v170
    %v179 = vrsqrt.pop %v171
    %v180 = vrsqrt.pop %v172
    %v181 = vrsqrt.pop %v173
    %v182 = vrsqrt.pop %v174
    %v183 = vrsqrt.pop %v175
    %v184 = vrsqrt.pop %v176
    %v185 = vmul.f32 %v121, %v177
    %v186 = vmul.f32 %v122, %v178
    %v187 = vmul.f32 %v123, %v179
    %v188 = vmul.f32 %v124, %v180
    %v189 = vmul.f32 %v125, %v181
    %v190 = vmul.f32 %v126, %v182
    %v191 = vmul.f32 %v127, %v183
    %v192 = vmul.f32 %v128, %v184
    %v194 = vlaneseq
    %v195 = vshrl.u32 %v194, 7
    %v196 = vsub.s32 0, %v195
    %v197 = vrot.slane %v85, %v196
    %v199 = vmul.f32 %v185, %v197
    %v200 = vmul.f32 %v186, %v197
    %v201 = vmul.f32 %v187, %v197
    %v202 = vmul.f32 %v188, %v197
    %v203 = vmul.f32 %v189, %v197
    %v204 = vmul.f32 %v190, %v197
    %v205 = vmul.f32 %v191, %v197
    %v206 = vmul.f32 %v192, %v197
    %v208 = vlaneseq
    %v209 = vshrl.u32 %v208, 7
    %v210 = vsub.s32 0, %v209
    %v211 = vrot.slane %v86, %v210
    %v213 = vadd.f32 %v199, %v211
    %v214 = vadd.f32 %v200, %v211
    %v215 = vadd.f32 %v201, %v211
    %v216 = vadd.f32 %v202, %v211
    %v217 = vadd.f32 %v203, %v211
    %v218 = vadd.f32 %v204, %v211
    %v219 = vadd.f32 %v205, %v211
    %v220 = vadd.f32 %v206, %v211
    %v221 = vld [vmem:[%s3] sm:$0xff]
    %v222 = vld [vmem:[%s3 + $0x8] sm:$0xff]
    %v223 = vld [vmem:[%s3 + $0x10] sm:$0xff]
    %v224 = vld [vmem:[%s3 + $0x18] sm:$0xff]
    %v225 = vld [vmem:[%s4] sm:$0x1]
    %v227 = vlaneseq
    %v228 = vshrl.u32 %v227, 7
    %v229 = vsub.s32 0, %v228
    %v230 = vrot.slane %v225, %v229
    %v233 = vsel %vm87, %v213, 0
    %v236 = vsel %vm87, %v214, 0
    %v239 = vsel %vm87, %v215, 0
    %v242 = vsel %vm87, %v216, 0
    %v245 = vsel %vm87, %v217, 0
    %v248 = vsel %vm87, %v218, 0
    %v251 = vsel %vm87, %v219, 0
    %v254 = vsel %vm87, %v220, 0
    %256 = vmatprep.subr.mxu0 0.0
    %257 = vmatpush1.msra.mxu0 %v221
    %258 = vmatprep.subr.mxu0 0.0
    %259 = vmatpush1.msra.mxu0 %v222
    %260 = vmatprep.subr.mxu0 0.0
    %261 = vmatpush1.msra.mxu0 %v223
    %262 = vmatprep.subr.mxu0 0.0
    %263 = vmatpush1.msra.mxu0 %v224
    %264 = vmatprep.subr.mxu0 0.0
    %265 = vmatpush1.msra.mxu0 0.0
    %266 = vmatprep.subr.mxu0 0.0
    %267 = vmatpush1.msra.mxu0 0.0
    %268 = vmatprep.subr.mxu0 0.0
    %269 = vmatpush1.msra.mxu0 0.0
    %270 = vmatprep.subr.mxu0 0.0
    %271 = vmatpush1.msra.mxu0 0.0
    %272 = vmatprep.subr.mxu0 0.0
    %273 = vmatpush1.msra.mxu0 0.0
    %274 = vmatprep.subr.mxu0 0.0
    %275 = vmatpush1.msra.mxu0 0.0
    %276 = vmatprep.subr.mxu0 0.0
    %277 = vmatpush1.msra.mxu0 0.0
    %278 = vmatprep.subr.mxu0 0.0
    %279 = vmatpush1.msra.mxu0 0.0
    %280 = vmatprep.subr.mxu0 0.0
    %281 = vmatpush1.msra.mxu0 0.0
    %282 = vmatprep.subr.mxu0 0.0
    %283 = vmatpush1.msra.mxu0 0.0
    %284 = vmatprep.subr.mxu0 0.0
    %285 = vmatpush1.msra.mxu0 0.0
    %286 = vmatprep.subr.mxu0 0.0
    %287 = vmatpush1.msra.mxu0 0.0
    %288 = vmatprep.subr.mxu0 0.0
    %289 = vmatpush1.msra.mxu0 0.0
    %290 = vmatprep.subr.mxu0 0.0
    %291 = vmatpush1.msra.mxu0 0.0
    %292 = vmatprep.subr.mxu0 0.0
    %293 = vmatpush1.msra.mxu0 0.0
    %294 = vmatprep.subr.mxu0 0.0
    %295 = vmatpush1.msra.mxu0 0.0
    %296 = vmatprep.subr.mxu0 0.0
    %297 = vmatpush1.msra.mxu0 0.0
    %298 = vmatprep.subr.mxu0 0.0
    %299 = vmatpush1.msra.mxu0 0.0
    %300 = vmatprep.subr.mxu0 0.0
    %301 = vmatpush1.msra.mxu0 0.0
    %302 = vmatprep.subr.mxu0 0.0
    %303 = vmatpush1.msra.mxu0 0.0
    %304 = vmatprep.subr.mxu0 0.0
    %305 = vmatpush1.msra.mxu0 0.0
    %306 = vmatprep.subr.mxu0 0.0
    %307 = vmatpush1.msra.mxu0 0.0
    %308 = vmatprep.subr.mxu0 0.0
    %309 = vmatpush1.msra.mxu0 0.0
    %310 = vmatprep.subr.mxu0 0.0
    %311 = vmatpush1.msra.mxu0 0.0
    %312 = vmatprep.subr.mxu0 0.0
    %313 = vmatpush1.msra.mxu0 0.0
    %314 = vmatprep.subr.mxu0 0.0
    %315 = vmatpush1.msra.mxu0 0.0
    %316 = vmatprep.subr.mxu0 0.0
    %317 = vmatpush1.msra.mxu0 0.0
    %318 = vmatprep.subr.mxu0 0.0
    %319 = vmatpush1.msra.mxu0 0.0
    %320 = vmatprep.mubr.f32.mxu0 0.0
    %321 = vmatmul.mubr.f32.gmra.mrb[0].mxu0 %v233
    %v322 = vpop.f32.mrb[0].mxu0
    %v323 = vadd.f32 %v230, %v322
    %v324 = vpop.f32.mrb[0].mxu0
    %325 = vmatprep.mubr.f32.mxu0 0.0
    %326 = vmatmul.mubr.f32.gmra.mrb[0].mxu0 %v236
    %v327 = vpop.f32.mrb[0].mxu0
    %v328 = vadd.f32 %v230, %v327
    %v329 = vpop.f32.mrb[0].mxu0
    %330 = vmatprep.mubr.f32.mxu0 0.0
    %331 = vmatmul.mubr.f32.gmra.mrb[0].mxu0 %v239
    %v332 = vpop.f32.mrb[0].mxu0
    %v333 = vadd.f32 %v230, %v332
    %v334 = vpop.f32.mrb[0].mxu0
    %335 = vmatprep.mubr.f32.mxu0 0.0
    %336 = vmatmul.mubr.f32.gmra.mrb[0].mxu0 %v242
    %v337 = vpop.f32.mrb[0].mxu0
    %v338 = vadd.f32 %v230, %v337
    %v339 = vpop.f32.mrb[0].mxu0
    %340 = vmatprep.mubr.f32.mxu0 0.0
    %341 = vmatmul.mubr.f32.gmra.mrb[0].mxu0 %v245
    %v342 = vpop.f32.mrb[0].mxu0
    %v343 = vadd.f32 %v230, %v342
    %v344 = vpop.f32.mrb[0].mxu0
    %345 = vmatprep.mubr.f32.mxu0 0.0
    %346 = vmatmul.mubr.f32.gmra.mrb[0].mxu0 %v248
    %v347 = vpop.f32.mrb[0].mxu0
    %v348 = vadd.f32 %v230, %v347
    %v349 = vpop.f32.mrb[0].mxu0
    %350 = vmatprep.mubr.f32.mxu0 0.0
    %351 = vmatmul.mubr.f32.gmra.mrb[0].mxu0 %v251
    %v352 = vpop.f32.mrb[0].mxu0
    %v353 = vadd.f32 %v230, %v352
    %v354 = vpop.f32.mrb[0].mxu0
    %355 = vmatprep.mubr.f32.mxu0 0.0
    %356 = vmatmul.mubr.f32.gmra.mrb[0].mxu0 %v254
    %v357 = vpop.f32.mrb[0].mxu0
    %v358 = vadd.f32 %v230, %v357
    %v359 = vpop.f32.mrb[0].mxu0
    %360 = vdwg.mxu0
    %v361 = vld [vmem:[%s5] sm:$0xff]
    %v362 = vld [vmem:[%s5 + $0x8] sm:$0xff]
    %v363 = vld [vmem:[%s5 + $0x10] sm:$0xff]
    %v364 = vld [vmem:[%s5 + $0x18] sm:$0xff]
    %v365 = vld [vmem:[%s6] sm:$0x1]
    %v367 = vlaneseq
    %v368 = vshrl.u32 %v367, 7
    %v369 = vsub.s32 0, %v368
    %v370 = vrot.slane %v365, %v369
    %372 = vmatprep.subr.mxu0 0.0
    %373 = vmatpush1.msra.mxu0 %v361
    %374 = vmatprep.subr.mxu0 0.0
    %375 = vmatpush1.msra.mxu0 %v362
    %376 = vmatprep.subr.mxu0 0.0
    %377 = vmatpush1.msra.mxu0 %v363
    %378 = vmatprep.subr.mxu0 0.0
    %379 = vmatpush1.msra.mxu0 %v364
    %380 = vmatprep.subr.mxu0 0.0
    %381 = vmatpush1.msra.mxu0 0.0
    %382 = vmatprep.subr.mxu0 0.0
    %383 = vmatpush1.msra.mxu0 0.0
    %384 = vmatprep.subr.mxu0 0.0
    %385 = vmatpush1.msra.mxu0 0.0
    %386 = vmatprep.subr.mxu0 0.0
    %387 = vmatpush1.msra.mxu0 0.0
    %388 = vmatprep.subr.mxu0 0.0
    %389 = vmatpush1.msra.mxu0 0.0
    %390 = vmatprep.subr.mxu0 0.0
    %391 = vmatpush1.msra.mxu0 0.0
    %392 = vmatprep.subr.mxu0 0.0
    %393 = vmatpush1.msra.mxu0 0.0
    %394 = vmatprep.subr.mxu0 0.0
    %395 = vmatpush1.msra.mxu0 0.0
    %396 = vmatprep.subr.mxu0 0.0
    %397 = vmatpush1.msra.mxu0 0.0
    %398 = vmatprep.subr.mxu0 0.0
    %399 = vmatpush1.msra.mxu0 0.0
    %400 = vmatprep.subr.mxu0 0.0
    %401 = vmatpush1.msra.mxu0 0.0
    %402 = vmatprep.subr.mxu0 0.0
    %403 = vmatpush1.msra.mxu0 0.0
    %404 = vmatprep.subr.mxu0 0.0
    %405 = vmatpush1.msra.mxu0 0.0
    %406 = vmatprep.subr.mxu0 0.0
    %407 = vmatpush1.msra.mxu0 0.0
    %408 = vmatprep.subr.mxu0 0.0
    %409 = vmatpush1.msra.mxu0 0.0
    %410 = vmatprep.subr.mxu0 0.0
    %411 = vmatpush1.msra.mxu0 0.0
    %412 = vmatprep.subr.mxu0 0.0
    %413 = vmatpush1.msra.mxu0 0.0
    %414 = vmatprep.subr.mxu0 0.0
    %415 = vmatpush1.msra.mxu0 0.0
    %416 = vmatprep.subr.mxu0 0.0
    %417 = vmatpush1.msra.mxu0 0.0
    %418 = vmatprep.subr.mxu0 0.0
    %419 = vmatpush1.msra.mxu0 0.0
    %420 = vmatprep.subr.mxu0 0.0
    %421 = vmatpush1.msra.mxu0 0.0
    %422 = vmatprep.subr.mxu0 0.0
    %423 = vmatpush1.msra.mxu0 0.0
    %424 = vmatprep.subr.mxu0 0.0
    %425 = vmatpush1.msra.mxu0 0.0
    %426 = vmatprep.subr.mxu0 0.0
    %427 = vmatpush1.msra.mxu0 0.0
    %428 = vmatprep.subr.mxu0 0.0
    %429 = vmatpush1.msra.mxu0 0.0
    %430 = vmatprep.subr.mxu0 0.0
    %431 = vmatpush1.msra.mxu0 0.0
    %432 = vmatprep.subr.mxu0 0.0
    %433 = vmatpush1.msra.mxu0 0.0
    %434 = vmatprep.subr.mxu0 0.0
    %435 = vmatpush1.msra.mxu0 0.0
    %436 = vmatprep.mubr.f32.mxu0 0.0
    %437 = vmatmul.mubr.f32.gmra.mrb[0].mxu0 %v233
    %v438 = vpop.f32.mrb[0].mxu0
    %v439 = vadd.f32 %v370, %v438
    %v440 = vpop.f32.mrb[0].mxu0
    %441 = vmatprep.mubr.f32.mxu0 0.0
    %442 = vmatmul.mubr.f32.gmra.mrb[0].mxu0 %v236
    %v443 = vpop.f32.mrb[0].mxu0
    %v444 = vadd.f32 %v370, %v443
    %v445 = vpop.f32.mrb[0].mxu0
    %446 = vmatprep.mubr.f32.mxu0 0.0
    %447 = vmatmul.mubr.f32.gmra.mrb[0].mxu0 %v239
    %v448 = vpop.f32.mrb[0].mxu0
    %v449 = vadd.f32 %v370, %v448
    %v450 = vpop.f32.mrb[0].mxu0
    %451 = vmatprep.mubr.f32.mxu0 0.0
    %452 = vmatmul.mubr.f32.gmra.mrb[0].mxu0 %v242
    %v453 = vpop.f32.mrb[0].mxu0
    %v454 = vadd.f32 %v370, %v453
    %v455 = vpop.f32.mrb[0].mxu0
    %456 = vmatprep.mubr.f32.mxu0 0.0
    %457 = vmatmul.mubr.f32.gmra.mrb[0].mxu0 %v245
    %v458 = vpop.f32.mrb[0].mxu0
    %v459 = vadd.f32 %v370, %v458
    %v460 = vpop.f32.mrb[0].mxu0
    %461 = vmatprep.mubr.f32.mxu0 0.0
    %462 = vmatmul.mubr.f32.gmra.mrb[0].mxu0 %v248
    %v463 = vpop.f32.mrb[0].mxu0
    %v464 = vadd.f32 %v370, %v463
    %v465 = vpop.f32.mrb[0].mxu0
    %466 = vmatprep.mubr.f32.mxu0 0.0
    %467 = vmatmul.mubr.f32.gmra.mrb[0].mxu0 %v251
    %v468 = vpop.f32.mrb[0].mxu0
    %v469 = vadd.f32 %v370, %v468
    %v470 = vpop.f32.mrb[0].mxu0
    %471 = vmatprep.mubr.f32.mxu0 0.0
    %472 = vmatmul.mubr.f32.gmra.mrb[0].mxu0 %v254
    %v473 = vpop.f32.mrb[0].mxu0
    %v474 = vadd.f32 %v370, %v473
    %v475 = vpop.f32.mrb[0].mxu0
    %476 = vdwg.mxu0
    %v477 = vld [vmem:[%s7] sm:$0xff]
    %v478 = vld [vmem:[%s7 + $0x8] sm:$0xff]
    %v479 = vld [vmem:[%s7 + $0x10] sm:$0xff]
    %v480 = vld [vmem:[%s7 + $0x18] sm:$0xff]
    %v481 = vld [vmem:[%s8] sm:$0x1]
    %v483 = vlaneseq
    %v484 = vshrl.u32 %v483, 7
    %v485 = vsub.s32 0, %v484
    %v486 = vrot.slane %v481, %v485
    %488 = vmatprep.subr.mxu0 0.0
    %489 = vmatpush1.msra.mxu0 %v477
    %490 = vmatprep.subr.mxu0 0.0
    %491 = vmatpush1.msra.mxu0 %v478
    %492 = vmatprep.subr.mxu0 0.0
    %493 = vmatpush1.msra.mxu0 %v479
    %494 = vmatprep.subr.mxu0 0.0
    %495 = vmatpush1.msra.mxu0 %v480
    %496 = vmatprep.subr.mxu0 0.0
    %497 = vmatpush1.msra.mxu0 0.0
    %498 = vmatprep.subr.mxu0 0.0
    %499 = vmatpush1.msra.mxu0 0.0
    %500 = vmatprep.subr.mxu0 0.0
    %501 = vmatpush1.msra.mxu0 0.0
    %502 = vmatprep.subr.mxu0 0.0
    %503 = vmatpush1.msra.mxu0 0.0
    %504 = vmatprep.subr.mxu0 0.0
    %505 = vmatpush1.msra.mxu0 0.0
    %506 = vmatprep.subr.mxu0 0.0
    %507 = vmatpush1.msra.mxu0 0.0
    %508 = vmatprep.subr.mxu0 0.0
    %509 = vmatpush1.msra.mxu0 0.0
    %510 = vmatprep.subr.mxu0 0.0
    %511 = vmatpush1.msra.mxu0 0.0
    %512 = vmatprep.subr.mxu0 0.0
    %513 = vmatpush1.msra.mxu0 0.0
    %514 = vmatprep.subr.mxu0 0.0
    %515 = vmatpush1.msra.mxu0 0.0
    %516 = vmatprep.subr.mxu0 0.0
    %517 = vmatpush1.msra.mxu0 0.0
    %518 = vmatprep.subr.mxu0 0.0
    %519 = vmatpush1.msra.mxu0 0.0
    %520 = vmatprep.subr.mxu0 0.0
    %521 = vmatpush1.msra.mxu0 0.0
    %522 = vmatprep.subr.mxu0 0.0
    %523 = vmatpush1.msra.mxu0 0.0
    %524 = vmatprep.subr.mxu0 0.0
    %525 = vmatpush1.msra.mxu0 0.0
    %526 = vmatprep.subr.mxu0 0.0
    %527 = vmatpush1.msra.mxu0 0.0
    %528 = vmatprep.subr.mxu0 0.0
    %529 = vmatpush1.msra.mxu0 0.0
    %530 = vmatprep.subr.mxu0 0.0
    %531 = vmatpush1.msra.mxu0 0.0
    %532 = vmatprep.subr.mxu0 0.0
    %533 = vmatpush1.msra.mxu0 0.0
    %534 = vmatprep.subr.mxu0 0.0
    %535 = vmatpush1.msra.mxu0 0.0
    %536 = vmatprep.subr.mxu0 0.0
    %537 = vmatpush1.msra.mxu0 0.0
    %538 = vmatprep.subr.mxu0 0.0
    %539 = vmatpush1.msra.mxu0 0.0
    %540 = vmatprep.subr.mxu0 0.0
    %541 = vmatpush1.msra.mxu0 0.0
    %542 = vmatprep.subr.mxu0 0.0
    %543 = vmatpush1.msra.mxu0 0.0
    %544 = vmatprep.subr.mxu0 0.0
    %545 = vmatpush1.msra.mxu0 0.0
    %546 = vmatprep.subr.mxu0 0.0
    %547 = vmatpush1.msra.mxu0 0.0
    %548 = vmatprep.subr.mxu0 0.0
    %549 = vmatpush1.msra.mxu0 0.0
    %550 = vmatprep.subr.mxu0 0.0
    %551 = vmatpush1.msra.mxu0 0.0
    %552 = vmatprep.mubr.f32.mxu0 0.0
    %553 = vmatmul.mubr.f32.gmra.mrb[0].mxu0 %v233
    %v554 = vpop.f32.mrb[0].mxu0
    %v555 = vadd.f32 %v486, %v554
    %v556 = vpop.f32.mrb[0].mxu0
    %557 = vmatprep.mubr.f32.mxu0 0.0
    %558 = vmatmul.mubr.f32.gmra.mrb[0].mxu0 %v236
    %v559 = vpop.f32.mrb[0].mxu0
    %v560 = vadd.f32 %v486, %v559
    %v561 = vpop.f32.mrb[0].mxu0
    %562 = vmatprep.mubr.f32.mxu0 0.0
    %563 = vmatmul.mubr.f32.gmra.mrb[0].mxu0 %v239
    %v564 = vpop.f32.mrb[0].mxu0
    %v565 = vadd.f32 %v486, %v564
    %v566 = vpop.f32.mrb[0].mxu0
    %567 = vmatprep.mubr.f32.mxu0 0.0
    %568 = vmatmul.mubr.f32.gmra.mrb[0].mxu0 %v242
    %v569 = vpop.f32.mrb[0].mxu0
    %v570 = vadd.f32 %v486, %v569
    %v571 = vpop.f32.mrb[0].mxu0
    %572 = vmatprep.mubr.f32.mxu0 0.0
    %573 = vmatmul.mubr.f32.gmra.mrb[0].mxu0 %v245
    %v574 = vpop.f32.mrb[0].mxu0
    %v575 = vadd.f32 %v486, %v574
    %v576 = vpop.f32.mrb[0].mxu0
    %577 = vmatprep.mubr.f32.mxu0 0.0
    %578 = vmatmul.mubr.f32.gmra.mrb[0].mxu0 %v248
    %v579 = vpop.f32.mrb[0].mxu0
    %v580 = vadd.f32 %v486, %v579
    %v581 = vpop.f32.mrb[0].mxu0
    %582 = vmatprep.mubr.f32.mxu0 0.0
    %583 = vmatmul.mubr.f32.gmra.mrb[0].mxu0 %v251
    %v584 = vpop.f32.mrb[0].mxu0
    %v585 = vadd.f32 %v486, %v584
    %v586 = vpop.f32.mrb[0].mxu0
    %587 = vmatprep.mubr.f32.mxu0 0.0
    %588 = vmatmul.mubr.f32.gmra.mrb[0].mxu0 %v254
    %v589 = vpop.f32.mrb[0].mxu0
    %v590 = vadd.f32 %v486, %v589
    %v591 = vpop.f32.mrb[0].mxu0
    %592 = vdwg.mxu0
    %vm593 = vcmask 64512
    %v595 = vsel %vm593, %v323, 0
    %v598 = vsel %vm593, %v328, 0
    %v601 = vsel %vm593, %v333, 0
    %v604 = vsel %vm593, %v338, 0
    %v607 = vsel %vm593, %v439, 0
    %v610 = vsel %vm593, %v444, 0
    %v613 = vsel %vm593, %v449, 0
    %v616 = vsel %vm593, %v454, 0
    %618 = vmatprep.subr.mxu0 0.0
    %619 = vmatpush1.xpose.msra.mxu0 %v607
    %620 = vmatprep.subr.mxu0 0.0
    %621 = vmatpush1.xpose.msra.mxu0 %v610
    %622 = vmatprep.subr.mxu0 0.0
    %623 = vmatpush1.xpose.msra.mxu0 %v613
    %624 = vmatprep.subr.mxu0 0.0
    %625 = vmatpush1.xpose.msra.mxu0 %v616
    %626 = vmatprep.subr.mxu0 0.0
    %627 = vmatpush1.xpose.msra.mxu0 0.0
    %628 = vmatprep.subr.mxu0 0.0
    %629 = vmatpush1.xpose.msra.mxu0 0.0
    %630 = vmatprep.subr.mxu0 0.0
    %631 = vmatpush1.xpose.msra.mxu0 0.0
    %632 = vmatprep.subr.mxu0 0.0
    %633 = vmatpush1.xpose.msra.mxu0 0.0
    %634 = vmatprep.subr.mxu0 0.0
    %635 = vmatpush1.xpose.msra.mxu0 0.0
    %636 = vmatprep.subr.mxu0 0.0
    %637 = vmatpush1.xpose.msra.mxu0 0.0
    %638 = vmatprep.subr.mxu0 0.0
    %639 = vmatpush1.xpose.msra.mxu0 0.0
    %640 = vmatprep.subr.mxu0 0.0
    %641 = vmatpush1.xpose.msra.mxu0 0.0
    %642 = vmatprep.subr.mxu0 0.0
    %643 = vmatpush1.xpose.msra.mxu0 0.0
    %644 = vmatprep.subr.mxu0 0.0
    %645 = vmatpush1.xpose.msra.mxu0 0.0
    %646 = vmatprep.subr.mxu0 0.0
    %647 = vmatpush1.xpose.msra.mxu0 0.0
    %648 = vmatprep.subr.mxu0 0.0
    %649 = vmatpush1.xpose.msra.mxu0 0.0
    %650 = vmatprep.subr.mxu0 0.0
    %651 = vmatpush1.xpose.msra.mxu0 0.0
    %652 = vmatprep.subr.mxu0 0.0
    %653 = vmatpush1.xpose.msra.mxu0 0.0
    %654 = vmatprep.subr.mxu0 0.0
    %655 = vmatpush1.xpose.msra.mxu0 0.0
    %656 = vmatprep.subr.mxu0 0.0
    %657 = vmatpush1.xpose.msra.mxu0 0.0
    %658 = vmatprep.subr.mxu0 0.0
    %659 = vmatpush1.xpose.msra.mxu0 0.0
    %660 = vmatprep.subr.mxu0 0.0
    %661 = vmatpush1.xpose.msra.mxu0 0.0
    %662 = vmatprep.subr.mxu0 0.0
    %663 = vmatpush1.xpose.msra.mxu0 0.0
    %664 = vmatprep.subr.mxu0 0.0
    %665 = vmatpush1.xpose.msra.mxu0 0.0
    %666 = vmatprep.subr.mxu0 0.0
    %667 = vmatpush1.xpose.msra.mxu0 0.0
    %668 = vmatprep.subr.mxu0 0.0
    %669 = vmatpush1.xpose.msra.mxu0 0.0
    %670 = vmatprep.subr.mxu0 0.0
    %671 = vmatpush1.xpose.msra.mxu0 0.0
    %672 = vmatprep.subr.mxu0 0.0
    %673 = vmatpush1.xpose.msra.mxu0 0.0
    %674 = vmatprep.subr.mxu0 0.0
    %675 = vmatpush1.xpose.msra.mxu0 0.0
    %676 = vmatprep.subr.mxu0 0.0
    %677 = vmatpush1.xpose.msra.mxu0 0.0
    %678 = vmatprep.subr.mxu0 0.0
    %679 = vmatpush1.xpose.msra.mxu0 0.0
    %680 = vmatprep.subr.mxu0 0.0
    %681 = vmatpush1.xpose.msra.mxu0 0.0
    %682 = vmatprep.mubr.f32.mxu0 0.0
    %683 = vmatmul.mubr.f32.gmra.mrb[0].mxu0 %v595
    %v684 = vpop.f32.mrb[0].mxu0
    %v685 = vadd.f32 %v81, %v684
    %v686 = vpop.f32.mrb[0].mxu0
    %687 = vmatprep.mubr.f32.mxu0 0.0
    %688 = vmatmul.mubr.f32.gmra.mrb[0].mxu0 %v598
    %v689 = vpop.f32.mrb[0].mxu0
    %v690 = vadd.f32 %v82, %v689
    %v691 = vpop.f32.mrb[0].mxu0
    %692 = vmatprep.mubr.f32.mxu0 0.0
    %693 = vmatmul.mubr.f32.gmra.mrb[0].mxu0 %v601
    %v694 = vpop.f32.mrb[0].mxu0
    %v695 = vadd.f32 %v83, %v694
    %v696 = vpop.f32.mrb[0].mxu0
    %697 = vmatprep.mubr.f32.mxu0 0.0
    %698 = vmatmul.mubr.f32.gmra.mrb[0].mxu0 %v604
    %v699 = vpop.f32.mrb[0].mxu0
    %v700 = vadd.f32 %v84, %v699
    %v701 = vpop.f32.mrb[0].mxu0
    %702 = vdwg.mxu0
    %v704 = vsel %vm593, %v343, 0
    %v707 = vsel %vm593, %v348, 0
    %v710 = vsel %vm593, %v353, 0
    %v713 = vsel %vm593, %v358, 0
    %v716 = vsel %vm593, %v459, 0
    %v719 = vsel %vm593, %v464, 0
    %v722 = vsel %vm593, %v469, 0
    %v725 = vsel %vm593, %v474, 0
    %727 = vmatprep.subr.mxu0 0.0
    %728 = vmatpush1.xpose.msra.mxu0 %v716
    %729 = vmatprep.subr.mxu0 0.0
    %730 = vmatpush1.xpose.msra.mxu0 %v719
    %731 = vmatprep.subr.mxu0 0.0
    %732 = vmatpush1.xpose.msra.mxu0 %v722
    %733 = vmatprep.subr.mxu0 0.0
    %734 = vmatpush1.xpose.msra.mxu0 %v725
    %735 = vmatprep.subr.mxu0 0.0
    %736 = vmatpush1.xpose.msra.mxu0 0.0
    %737 = vmatprep.subr.mxu0 0.0
    %738 = vmatpush1.xpose.msra.mxu0 0.0
    %739 = vmatprep.subr.mxu0 0.0
    %740 = vmatpush1.xpose.msra.mxu0 0.0
    %741 = vmatprep.subr.mxu0 0.0
    %742 = vmatpush1.xpose.msra.mxu0 0.0
    %743 = vmatprep.subr.mxu0 0.0
    %744 = vmatpush1.xpose.msra.mxu0 0.0
    %745 = vmatprep.subr.mxu0 0.0
    %746 = vmatpush1.xpose.msra.mxu0 0.0
    %747 = vmatprep.subr.mxu0 0.0
    %748 = vmatpush1.xpose.msra.mxu0 0.0
    %749 = vmatprep.subr.mxu0 0.0
    %750 = vmatpush1.xpose.msra.mxu0 0.0
    %751 = vmatprep.subr.mxu0 0.0
    %752 = vmatpush1.xpose.msra.mxu0 0.0
    %753 = vmatprep.subr.mxu0 0.0
    %754 = vmatpush1.xpose.msra.mxu0 0.0
    %755 = vmatprep.subr.mxu0 0.0
    %756 = vmatpush1.xpose.msra.mxu0 0.0
    %757 = vmatprep.subr.mxu0 0.0
    %758 = vmatpush1.xpose.msra.mxu0 0.0
    %759 = vmatprep.subr.mxu0 0.0
    %760 = vmatpush1.xpose.msra.mxu0 0.0
    %761 = vmatprep.subr.mxu0 0.0
    %762 = vmatpush1.xpose.msra.mxu0 0.0
    %763 = vmatprep.subr.mxu0 0.0
    %764 = vmatpush1.xpose.msra.mxu0 0.0
    %765 = vmatprep.subr.mxu0 0.0
    %766 = vmatpush1.xpose.msra.mxu0 0.0
    %767 = vmatprep.subr.mxu0 0.0
    %768 = vmatpush1.xpose.msra.mxu0 0.0
    %769 = vmatprep.subr.mxu0 0.0
    %770 = vmatpush1.xpose.msra.mxu0 0.0
    %771 = vmatprep.subr.mxu0 0.0
    %772 = vmatpush1.xpose.msra.mxu0 0.0
    %773 = vmatprep.subr.mxu0 0.0
    %774 = vmatpush1.xpose.msra.mxu0 0.0
    %775 = vmatprep.subr.mxu0 0.0
    %776 = vmatpush1.xpose.msra.mxu0 0.0
    %777 = vmatprep.subr.mxu0 0.0
    %778 = vmatpush1.xpose.msra.mxu0 0.0
    %779 = vmatprep.subr.mxu0 0.0
    %780 = vmatpush1.xpose.msra.mxu0 0.0
    %781 = vmatprep.subr.mxu0 0.0
    %782 = vmatpush1.xpose.msra.mxu0 0.0
    %783 = vmatprep.subr.mxu0 0.0
    %784 = vmatpush1.xpose.msra.mxu0 0.0
    %785 = vmatprep.subr.mxu0 0.0
    %786 = vmatpush1.xpose.msra.mxu0 0.0
    %787 = vmatprep.subr.mxu0 0.0
    %788 = vmatpush1.xpose.msra.mxu0 0.0
    %789 = vmatprep.subr.mxu0 0.0
    %790 = vmatpush1.xpose.msra.mxu0 0.0
    %791 = vmatprep.mubr.f32.mxu0 0.0
    %792 = vmatmul.mubr.f32.gmra.mrb[0].mxu0 %v704
    %v793 = vpop.f32.mrb[0].mxu0
    %v794 = vadd.f32 %v81, %v793
    %v795 = vpop.f32.mrb[0].mxu0
    %796 = vmatprep.mubr.f32.mxu0 0.0
    %797 = vmatmul.mubr.f32.gmra.mrb[0].mxu0 %v707
    %v798 = vpop.f32.mrb[0].mxu0
    %v799 = vadd.f32 %v82, %v798
    %v800 = vpop.f32.mrb[0].mxu0
    %801 = vmatprep.mubr.f32.mxu0 0.0
    %802 = vmatmul.mubr.f32.gmra.mrb[0].mxu0 %v710
    %v803 = vpop.f32.mrb[0].mxu0
    %v804 = vadd.f32 %v83, %v803
    %v805 = vpop.f32.mrb[0].mxu0
    %806 = vmatprep.mubr.f32.mxu0 0.0
    %807 = vmatmul.mubr.f32.gmra.mrb[0].mxu0 %v713
    %v808 = vpop.f32.mrb[0].mxu0
    %v809 = vadd.f32 %v84, %v808
    %v810 = vpop.f32.mrb[0].mxu0
    %811 = vdwg.mxu0
    %v812 = vsel %vm87, %v685, -inf
    %813 = vmax.xlane.f32.xlu0 %v812
    %v814 = vpop.xlane.xlu0 %813
    %v815 = vsel %vm87, %v690, -inf
    %816 = vmax.xlane.f32.xlu0 %v815
    %v817 = vpop.xlane.xlu0 %816
    %v818 = vsel %vm87, %v695, -inf
    %819 = vmax.xlane.f32.xlu0 %v818
    %v820 = vpop.xlane.xlu0 %819
    %v821 = vsel %vm87, %v700, -inf
    %822 = vmax.xlane.f32.xlu0 %v821
    %v823 = vpop.xlane.xlu0 %822
    %v824 = vsel %vm87, %v794, -inf
    %825 = vmax.xlane.f32.xlu0 %v824
    %v826 = vpop.xlane.xlu0 %825
    %v827 = vsel %vm87, %v799, -inf
    %828 = vmax.xlane.f32.xlu0 %v827
    %v829 = vpop.xlane.xlu0 %828
    %v830 = vsel %vm87, %v804, -inf
    %831 = vmax.xlane.f32.xlu0 %v830
    %v832 = vpop.xlane.xlu0 %831
    %v833 = vsel %vm87, %v809, -inf
    %834 = vmax.xlane.f32.xlu0 %v833
    %v835 = vpop.xlane.xlu0 %834
    %v836 = vsub.f32 %v685, %v814
    %v837 = vsub.f32 %v690, %v817
    %v838 = vsub.f32 %v695, %v820
    %v839 = vsub.f32 %v700, %v823
    %v840 = vsub.f32 %v794, %v826
    %v841 = vsub.f32 %v799, %v829
    %v842 = vsub.f32 %v804, %v832
    %v843 = vsub.f32 %v809, %v835
    %v844 = vmul.f32 %v836, 1.442695
    %v845 = vpow.pop %v844
    %v846 = vmul.f32 %v837, 1.442695
    %v847 = vpow.pop %v846
    %v848 = vmul.f32 %v838, 1.442695
    %v849 = vpow.pop %v848
    %v850 = vmul.f32 %v839, 1.442695
    %v851 = vpow.pop %v850
    %v852 = vmul.f32 %v840, 1.442695
    %v853 = vpow.pop %v852
    %v854 = vmul.f32 %v841, 1.442695
    %v855 = vpow.pop %v854
    %v856 = vmul.f32 %v842, 1.442695
    %v857 = vpow.pop %v856
    %v858 = vmul.f32 %v843, 1.442695
    %v859 = vpow.pop %v858
    %v860 = vsel %vm87, %v845, 0.0
    %861 = vadd.xlane.f32.xlu0 %v860
    %v862 = vpop.xlane.xlu0 %861
    %v863 = vsel %vm87, %v847, 0.0
    %864 = vadd.xlane.f32.xlu0 %v863
    %v865 = vpop.xlane.xlu0 %864
    %v866 = vsel %vm87, %v849, 0.0
    %867 = vadd.xlane.f32.xlu0 %v866
    %v868 = vpop.xlane.xlu0 %867
    %v869 = vsel %vm87, %v851, 0.0
    %870 = vadd.xlane.f32.xlu0 %v869
    %v871 = vpop.xlane.xlu0 %870
    %v872 = vsel %vm87, %v853, 0.0
    %873 = vadd.xlane.f32.xlu0 %v872
    %v874 = vpop.xlane.xlu0 %873
    %v875 = vsel %vm87, %v855, 0.0
    %876 = vadd.xlane.f32.xlu0 %v875
    %v877 = vpop.xlane.xlu0 %876
    %v878 = vsel %vm87, %v857, 0.0
    %879 = vadd.xlane.f32.xlu0 %v878
    %v880 = vpop.xlane.xlu0 %879
    %v881 = vsel %vm87, %v859, 0.0
    %882 = vadd.xlane.f32.xlu0 %v881
    %v883 = vpop.xlane.xlu0 %882
    %v885 = vsel %vm87, %v845, 0
    %v888 = vsel %vm87, %v847, 0
    %v891 = vsel %vm87, %v849, 0
    %v894 = vsel %vm87, %v851, 0
    %896 = vmatprep.subr.mxu0 0.0
    %897 = vmatpush1.msra.mxu0 %v555
    %898 = vmatprep.subr.mxu0 0.0
    %899 = vmatpush1.msra.mxu0 %v560
    %900 = vmatprep.subr.mxu0 0.0
    %901 = vmatpush1.msra.mxu0 %v565
    %902 = vmatprep.subr.mxu0 0.0
    %903 = vmatpush1.msra.mxu0 %v570
    %904 = vmatprep.subr.mxu0 0.0
    %905 = vmatpush1.msra.mxu0 0.0
    %906 = vmatprep.subr.mxu0 0.0
    %907 = vmatpush1.msra.mxu0 0.0
    %908 = vmatprep.subr.mxu0 0.0
    %909 = vmatpush1.msra.mxu0 0.0
    %910 = vmatprep.subr.mxu0 0.0
    %911 = vmatpush1.msra.mxu0 0.0
    %912 = vmatprep.subr.mxu0 0.0
    %913 = vmatpush1.msra.mxu0 0.0
    %914 = vmatprep.subr.mxu0 0.0
    %915 = vmatpush1.msra.mxu0 0.0
    %916 = vmatprep.subr.mxu0 0.0
    %917 = vmatpush1.msra.mxu0 0.0
    %918 = vmatprep.subr.mxu0 0.0
    %919 = vmatpush1.msra.mxu0 0.0
    %920 = vmatprep.subr.mxu0 0.0
    %921 = vmatpush1.msra.mxu0 0.0
    %922 = vmatprep.subr.mxu0 0.0
    %923 = vmatpush1.msra.mxu0 0.0
    %924 = vmatprep.subr.mxu0 0.0
    %925 = vmatpush1.msra.mxu0 0.0
    %926 = vmatprep.subr.mxu0 0.0
    %927 = vmatpush1.msra.mxu0 0.0
    %928 = vmatprep.subr.mxu0 0.0
    %929 = vmatpush1.msra.mxu0 0.0
    %930 = vmatprep.subr.mxu0 0.0
    %931 = vmatpush1.msra.mxu0 0.0
    %932 = vmatprep.subr.mxu0 0.0
    %933 = vmatpush1.msra.mxu0 0.0
    %934 = vmatprep.subr.mxu0 0.0
    %935 = vmatpush1.msra.mxu0 0.0
    %936 = vmatprep.subr.mxu0 0.0
    %937 = vmatpush1.msra.mxu0 0.0
    %938 = vmatprep.subr.mxu0 0.0
    %939 = vmatpush1.msra.mxu0 0.0
    %940 = vmatprep.subr.mxu0 0.0
    %941 = vmatpush1.msra.mxu0 0.0
    %942 = vmatprep.subr.mxu0 0.0
    %943 = vmatpush1.msra.mxu0 0.0
    %944 = vmatprep.subr.mxu0 0.0
    %945 = vmatpush1.msra.mxu0 0.0
    %946 = vmatprep.subr.mxu0 0.0
    %947 = vmatpush1.msra.mxu0 0.0
    %948 = vmatprep.subr.mxu0 0.0
    %949 = vmatpush1.msra.mxu0 0.0
    %950 = vmatprep.subr.mxu0 0.0
    %951 = vmatpush1.msra.mxu0 0.0
    %952 = vmatprep.subr.mxu0 0.0
    %953 = vmatpush1.msra.mxu0 0.0
    %954 = vmatprep.subr.mxu0 0.0
    %955 = vmatpush1.msra.mxu0 0.0
    %956 = vmatprep.subr.mxu0 0.0
    %957 = vmatpush1.msra.mxu0 0.0
    %958 = vmatprep.subr.mxu0 0.0
    %959 = vmatpush1.msra.mxu0 0.0
    %960 = vmatprep.mubr.f32.mxu0 0.0
    %961 = vmatmul.mubr.f32.gmra.mrb[0].mxu0 %v885
    %v962 = vpop.f32.mrb[0].mxu0
    %v963 = vadd.f32 0.0, %v962
    %v964 = vpop.f32.mrb[0].mxu0
    %965 = vmatprep.mubr.f32.mxu0 0.0
    %966 = vmatmul.mubr.f32.gmra.mrb[0].mxu0 %v888
    %v967 = vpop.f32.mrb[0].mxu0
    %v968 = vadd.f32 0.0, %v967
    %v969 = vpop.f32.mrb[0].mxu0
    %970 = vmatprep.mubr.f32.mxu0 0.0
    %971 = vmatmul.mubr.f32.gmra.mrb[0].mxu0 %v891
    %v972 = vpop.f32.mrb[0].mxu0
    %v973 = vadd.f32 0.0, %v972
    %v974 = vpop.f32.mrb[0].mxu0
    %975 = vmatprep.mubr.f32.mxu0 0.0
    %976 = vmatmul.mubr.f32.gmra.mrb[0].mxu0 %v894
    %v977 = vpop.f32.mrb[0].mxu0
    %v978 = vadd.f32 0.0, %v977
    %v979 = vpop.f32.mrb[0].mxu0
    %980 = vdwg.mxu0
    %v982 = vsel %vm87, %v853, 0
    %v985 = vsel %vm87, %v855, 0
    %v988 = vsel %vm87, %v857, 0
    %v991 = vsel %vm87, %v859, 0
    %993 = vmatprep.subr.mxu0 0.0
    %994 = vmatpush1.msra.mxu0 %v575
    %995 = vmatprep.subr.mxu0 0.0
    %996 = vmatpush1.msra.mxu0 %v580
    %997 = vmatprep.subr.mxu0 0.0
    %998 = vmatpush1.msra.mxu0 %v585
    %999 = vmatprep.subr.mxu0 0.0
    %1000 = vmatpush1.msra.mxu0 %v590
    %1001 = vmatprep.subr.mxu0 0.0
    %1002 = vmatpush1.msra.mxu0 0.0
    %1003 = vmatprep.subr.mxu0 0.0
    %1004 = vmatpush1.msra.mxu0 0.0
    %1005 = vmatprep.subr.mxu0 0.0
    %1006 = vmatpush1.msra.mxu0 0.0
    %1007 = vmatprep.subr.mxu0 0.0
    %1008 = vmatpush1.msra.mxu0 0.0
    %1009 = vmatprep.subr.mxu0 0.0
    %1010 = vmatpush1.msra.mxu0 0.0
    %1011 = vmatprep.subr.mxu0 0.0
    %1012 = vmatpush1.msra.mxu0 0.0
    %1013 = vmatprep.subr.mxu0 0.0
    %1014 = vmatpush1.msra.mxu0 0.0
    %1015 = vmatprep.subr.mxu0 0.0
    %1016 = vmatpush1.msra.mxu0 0.0
    %1017 = vmatprep.subr.mxu0 0.0
    %1018 = vmatpush1.msra.mxu0 0.0
    %1019 = vmatprep.subr.mxu0 0.0
    %1020 = vmatpush1.msra.mxu0 0.0
    %1021 = vmatprep.subr.mxu0 0.0
    %1022 = vmatpush1.msra.mxu0 0.0
    %1023 = vmatprep.subr.mxu0 0.0
    %1024 = vmatpush1.msra.mxu0 0.0
    %1025 = vmatprep.subr.mxu0 0.0
    %1026 = vmatpush1.msra.mxu0 0.0
    %1027 = vmatprep.subr.mxu0 0.0
    %1028 = vmatpush1.msra.mxu0 0.0
    %1029 = vmatprep.subr.mxu0 0.0
    %1030 = vmatpush1.msra.mxu0 0.0
    %1031 = vmatprep.subr.mxu0 0.0
    %1032 = vmatpush1.msra.mxu0 0.0
    %1033 = vmatprep.subr.mxu0 0.0
    %1034 = vmatpush1.msra.mxu0 0.0
    %1035 = vmatprep.subr.mxu0 0.0
    %1036 = vmatpush1.msra.mxu0 0.0
    %1037 = vmatprep.subr.mxu0 0.0
    %1038 = vmatpush1.msra.mxu0 0.0
    %1039 = vmatprep.subr.mxu0 0.0
    %1040 = vmatpush1.msra.mxu0 0.0
    %1041 = vmatprep.subr.mxu0 0.0
    %1042 = vmatpush1.msra.mxu0 0.0
    %1043 = vmatprep.subr.mxu0 0.0
    %1044 = vmatpush1.msra.mxu0 0.0
    %1045 = vmatprep.subr.mxu0 0.0
    %1046 = vmatpush1.msra.mxu0 0.0
    %1047 = vmatprep.subr.mxu0 0.0
    %1048 = vmatpush1.msra.mxu0 0.0
    %1049 = vmatprep.subr.mxu0 0.0
    %1050 = vmatpush1.msra.mxu0 0.0
    %1051 = vmatprep.subr.mxu0 0.0
    %1052 = vmatpush1.msra.mxu0 0.0
    %1053 = vmatprep.subr.mxu0 0.0
    %1054 = vmatpush1.msra.mxu0 0.0
    %1055 = vmatprep.subr.mxu0 0.0
    %1056 = vmatpush1.msra.mxu0 0.0
    %1057 = vmatprep.mubr.f32.mxu0 0.0
    %1058 = vmatmul.mubr.f32.gmra.mrb[0].mxu0 %v982
    %v1059 = vpop.f32.mrb[0].mxu0
    %v1060 = vadd.f32 0.0, %v1059
    %v1061 = vpop.f32.mrb[0].mxu0
    %1062 = vmatprep.mubr.f32.mxu0 0.0
    %1063 = vmatmul.mubr.f32.gmra.mrb[0].mxu0 %v985
    %v1064 = vpop.f32.mrb[0].mxu0
    %v1065 = vadd.f32 0.0, %v1064
    %v1066 = vpop.f32.mrb[0].mxu0
    %1067 = vmatprep.mubr.f32.mxu0 0.0
    %1068 = vmatmul.mubr.f32.gmra.mrb[0].mxu0 %v988
    %v1069 = vpop.f32.mrb[0].mxu0
    %v1070 = vadd.f32 0.0, %v1069
    %v1071 = vpop.f32.mrb[0].mxu0
    %1072 = vmatprep.mubr.f32.mxu0 0.0
    %1073 = vmatmul.mubr.f32.gmra.mrb[0].mxu0 %v991
    %v1074 = vpop.f32.mrb[0].mxu0
    %v1075 = vadd.f32 0.0, %v1074
    %v1076 = vpop.f32.mrb[0].mxu0
    %1077 = vdwg.mxu0
    %v1078 = vrcp.pop %v862
    %v1079 = vrcp.pop %v865
    %v1080 = vrcp.pop %v868
    %v1081 = vrcp.pop %v871
    %v1082 = vrcp.pop %v874
    %v1083 = vrcp.pop %v877
    %v1084 = vrcp.pop %v880
    %v1085 = vrcp.pop %v883
    %v1086 = vmul.f32 %v963, %v1078
    %v1087 = vmul.f32 %v968, %v1079
    %v1088 = vmul.f32 %v973, %v1080
    %v1089 = vmul.f32 %v978, %v1081
    %v1090 = vmul.f32 %v1060, %v1082
    %v1091 = vmul.f32 %v1065, %v1083
    %v1092 = vmul.f32 %v1070, %v1084
    %v1093 = vmul.f32 %v1075, %v1085
    %v1094 = vld [vmem:[%s9] sm:$0xff]
    %s1095 = scalar_lea.vmem %s3, 32
    %v1096 = vld [vmem:[%s1095] sm:$0xff]
    %v1097 = vld [vmem:[%s1095 + $0x8] sm:$0xff]
    %v1098 = vld [vmem:[%s1095 + $0x10] sm:$0xff]
    %v1099 = vld [vmem:[%s1095 + $0x18] sm:$0xff]
    %s1100 = scalar_lea.vmem %s4, 1
    %v1101 = vld [vmem:[%s1100] sm:$0x1]
    %v1103 = vlaneseq
    %v1104 = vshrl.u32 %v1103, 7
    %v1105 = vsub.s32 0, %v1104
    %v1106 = vrot.slane %v1101, %v1105
    %1108 = vmatprep.subr.mxu0 0.0
    %1109 = vmatpush1.msra.mxu0 %v1096
    %1110 = vmatprep.subr.mxu0 0.0
    %1111 = vmatpush1.msra.mxu0 %v1097
    %1112 = vmatprep.subr.mxu0 0.0
    %1113 = vmatpush1.msra.mxu0 %v1098
    %1114 = vmatprep.subr.mxu0 0.0
    %1115 = vmatpush1.msra.mxu0 %v1099
    %1116 = vmatprep.subr.mxu0 0.0
    %1117 = vmatpush1.msra.mxu0 0.0
    %1118 = vmatprep.subr.mxu0 0.0
    %1119 = vmatpush1.msra.mxu0 0.0
    %1120 = vmatprep.subr.mxu0 0.0
    %1121 = vmatpush1.msra.mxu0 0.0
    %1122 = vmatprep.subr.mxu0 0.0
    %1123 = vmatpush1.msra.mxu0 0.0
    %1124 = vmatprep.subr.mxu0 0.0
    %1125 = vmatpush1.msra.mxu0 0.0
    %1126 = vmatprep.subr.mxu0 0.0
    %1127 = vmatpush1.msra.mxu0 0.0
    %1128 = vmatprep.subr.mxu0 0.0
    %1129 = vmatpush1.msra.mxu0 0.0
    %1130 = vmatprep.subr.mxu0 0.0
    %1131 = vmatpush1.msra.mxu0 0.0
    %1132 = vmatprep.subr.mxu0 0.0
    %1133 = vmatpush1.msra.mxu0 0.0
    %1134 = vmatprep.subr.mxu0 0.0
    %1135 = vmatpush1.msra.mxu0 0.0
    %1136 = vmatprep.subr.mxu0 0.0
    %1137 = vmatpush1.msra.mxu0 0.0
    %1138 = vmatprep.subr.mxu0 0.0
    %1139 = vmatpush1.msra.mxu0 0.0
    %1140 = vmatprep.subr.mxu0 0.0
    %1141 = vmatpush1.msra.mxu0 0.0
    %1142 = vmatprep.subr.mxu0 0.0
    %1143 = vmatpush1.msra.mxu0 0.0
    %1144 = vmatprep.subr.mxu0 0.0
    %1145 = vmatpush1.msra.mxu0 0.0
    %1146 = vmatprep.subr.mxu0 0.0
    %1147 = vmatpush1.msra.mxu0 0.0
    %1148 = vmatprep.subr.mxu0 0.0
    %1149 = vmatpush1.msra.mxu0 0.0
    %1150 = vmatprep.subr.mxu0 0.0
    %1151 = vmatpush1.msra.mxu0 0.0
    %1152 = vmatprep.subr.mxu0 0.0
    %1153 = vmatpush1.msra.mxu0 0.0
    %1154 = vmatprep.subr.mxu0 0.0
    %1155 = vmatpush1.msra.mxu0 0.0
    %1156 = vmatprep.subr.mxu0 0.0
    %1157 = vmatpush1.msra.mxu0 0.0
    %1158 = vmatprep.subr.mxu0 0.0
    %1159 = vmatpush1.msra.mxu0 0.0
    %1160 = vmatprep.subr.mxu0 0.0
    %1161 = vmatpush1.msra.mxu0 0.0
    %1162 = vmatprep.subr.mxu0 0.0
    %1163 = vmatpush1.msra.mxu0 0.0
    %1164 = vmatprep.subr.mxu0 0.0
    %1165 = vmatpush1.msra.mxu0 0.0
    %1166 = vmatprep.subr.mxu0 0.0
    %1167 = vmatpush1.msra.mxu0 0.0
    %1168 = vmatprep.subr.mxu0 0.0
    %1169 = vmatpush1.msra.mxu0 0.0
    %1170 = vmatprep.subr.mxu0 0.0
    %1171 = vmatpush1.msra.mxu0 0.0
    %1172 = vmatprep.mubr.f32.mxu0 0.0
    %1173 = vmatmul.mubr.f32.gmra.mrb[0].mxu0 %v233
    %v1174 = vpop.f32.mrb[0].mxu0
    %v1175 = vadd.f32 %v1106, %v1174
    %v1176 = vpop.f32.mrb[0].mxu0
    %1177 = vmatprep.mubr.f32.mxu0 0.0
    %1178 = vmatmul.mubr.f32.gmra.mrb[0].mxu0 %v236
    %v1179 = vpop.f32.mrb[0].mxu0
    %v1180 = vadd.f32 %v1106, %v1179
    %v1181 = vpop.f32.mrb[0].mxu0
    %1182 = vmatprep.mubr.f32.mxu0 0.0
    %1183 = vmatmul.mubr.f32.gmra.mrb[0].mxu0 %v239
    %v1184 = vpop.f32.mrb[0].mxu0
    %v1185 = vadd.f32 %v1106, %v1184
    %v1186 = vpop.f32.mrb[0].mxu0
    %1187 = vmatprep.mubr.f32.mxu0 0.0
    %1188 = vmatmul.mubr.f32.gmra.mrb[0].mxu0 %v242
    %v1189 = vpop.f32.mrb[0].mxu0
    %v1190 = vadd.f32 %v1106, %v1189
    %v1191 = vpop.f32.mrb[0].mxu0
    %1192 = vmatprep.mubr.f32.mxu0 0.0
    %1193 = vmatmul.mubr.f32.gmra.mrb[0].mxu0 %v245
    %v1194 = vpop.f32.mrb[0].mxu0
    %v1195 = vadd.f32 %v1106, %v1194
    %v1196 = vpop.f32.mrb[0].mxu0
    %1197 = vmatprep.mubr.f32.mxu0 0.0
    %1198 = vmatmul.mubr.f32.gmra.mrb[0].mxu0 %v248
    %v1199 = vpop.f32.mrb[0].mxu0
    %v1200 = vadd.f32 %v1106, %v1199
    %v1201 = vpop.f32.mrb[0].mxu0
    %1202 = vmatprep.mubr.f32.mxu0 0.0
    %1203 = vmatmul.mubr.f32.gmra.mrb[0].mxu0 %v251
    %v1204 = vpop.f32.mrb[0].mxu0
    %v1205 = vadd.f32 %v1106, %v1204
    %v1206 = vpop.f32.mrb[0].mxu0
    %1207 = vmatprep.mubr.f32.mxu0 0.0
    %1208 = vmatmul.mubr.f32.gmra.mrb[0].mxu0 %v254
    %v1209 = vpop.f32.mrb[0].mxu0
    %v1210 = vadd.f32 %v1106, %v1209
    %v1211 = vpop.f32.mrb[0].mxu0
    %1212 = vdwg.mxu0
    %s1213 = scalar_lea.vmem %s5, 32
    %v1214 = vld [vmem:[%s1213] sm:$0xff]
    %v1215 = vld [vmem:[%s1213 + $0x8] sm:$0xff]
    %v1216 = vld [vmem:[%s1213 + $0x10] sm:$0xff]
    %v1217 = vld [vmem:[%s1213 + $0x18] sm:$0xff]
    %s1218 = scalar_lea.vmem %s6, 1
    %v1219 = vld [vmem:[%s1218] sm:$0x1]
    %v1221 = vlaneseq
    %v1222 = vshrl.u32 %v1221, 7
    %v1223 = vsub.s32 0, %v1222
    %v1224 = vrot.slane %v1219, %v1223
    %1226 = vmatprep.subr.mxu0 0.0
    %1227 = vmatpush1.msra.mxu0 %v1214
    %1228 = vmatprep.subr.mxu0 0.0
    %1229 = vmatpush1.msra.mxu0 %v1215
    %1230 = vmatprep.subr.mxu0 0.0
    %1231 = vmatpush1.msra.mxu0 %v1216
    %1232 = vmatprep.subr.mxu0 0.0
    %1233 = vmatpush1.msra.mxu0 %v1217
    %1234 = vmatprep.subr.mxu0 0.0
    %1235 = vmatpush1.msra.mxu0 0.0
    %1236 = vmatprep.subr.mxu0 0.0
    %1237 = vmatpush1.msra.mxu0 0.0
    %1238 = vmatprep.subr.mxu0 0.0
    %1239 = vmatpush1.msra.mxu0 0.0
    %1240 = vmatprep.subr.mxu0 0.0
    %1241 = vmatpush1.msra.mxu0 0.0
    %1242 = vmatprep.subr.mxu0 0.0
    %1243 = vmatpush1.msra.mxu0 0.0
    %1244 = vmatprep.subr.mxu0 0.0
    %1245 = vmatpush1.msra.mxu0 0.0
    %1246 = vmatprep.subr.mxu0 0.0
    %1247 = vmatpush1.msra.mxu0 0.0
    %1248 = vmatprep.subr.mxu0 0.0
    %1249 = vmatpush1.msra.mxu0 0.0
    %1250 = vmatprep.subr.mxu0 0.0
    %1251 = vmatpush1.msra.mxu0 0.0
    %1252 = vmatprep.subr.mxu0 0.0
    %1253 = vmatpush1.msra.mxu0 0.0
    %1254 = vmatprep.subr.mxu0 0.0
    %1255 = vmatpush1.msra.mxu0 0.0
    %1256 = vmatprep.subr.mxu0 0.0
    %1257 = vmatpush1.msra.mxu0 0.0
    %1258 = vmatprep.subr.mxu0 0.0
    %1259 = vmatpush1.msra.mxu0 0.0
    %1260 = vmatprep.subr.mxu0 0.0
    %1261 = vmatpush1.msra.mxu0 0.0
    %1262 = vmatprep.subr.mxu0 0.0
    %1263 = vmatpush1.msra.mxu0 0.0
    %1264 = vmatprep.subr.mxu0 0.0
    %1265 = vmatpush1.msra.mxu0 0.0
    %1266 = vmatprep.subr.mxu0 0.0
    %1267 = vmatpush1.msra.mxu0 0.0
    %1268 = vmatprep.subr.mxu0 0.0
    %1269 = vmatpush1.msra.mxu0 0.0
    %1270 = vmatprep.subr.mxu0 0.0
    %1271 = vmatpush1.msra.mxu0 0.0
    %1272 = vmatprep.subr.mxu0 0.0
    %1273 = vmatpush1.msra.mxu0 0.0
    %1274 = vmatprep.subr.mxu0 0.0
    %1275 = vmatpush1.msra.mxu0 0.0
    %1276 = vmatprep.subr.mxu0 0.0
    %1277 = vmatpush1.msra.mxu0 0.0
    %1278 = vmatprep.subr.mxu0 0.0
    %1279 = vmatpush1.msra.mxu0 0.0
    %1280 = vmatprep.subr.mxu0 0.0
    %1281 = vmatpush1.msra.mxu0 0.0
    %1282 = vmatprep.subr.mxu0 0.0
    %1283 = vmatpush1.msra.mxu0 0.0
    %1284 = vmatprep.subr.mxu0 0.0
    %1285 = vmatpush1.msra.mxu0 0.0
    %1286 = vmatprep.subr.mxu0 0.0
    %1287 = vmatpush1.msra.mxu0 0.0
    %1288 = vmatprep.subr.mxu0 0.0
    %1289 = vmatpush1.msra.mxu0 0.0
    %1290 = vmatprep.mubr.f32.mxu0 0.0
    %1291 = vmatmul.mubr.f32.gmra.mrb[0].mxu0 %v233
    %v1292 = vpop.f32.mrb[0].mxu0
    %v1293 = vadd.f32 %v1224, %v1292
    %v1294 = vpop.f32.mrb[0].mxu0
    %1295 = vmatprep.mubr.f32.mxu0 0.0
    %1296 = vmatmul.mubr.f32.gmra.mrb[0].mxu0 %v236
    %v1297 = vpop.f32.mrb[0].mxu0
    %v1298 = vadd.f32 %v1224, %v1297
    %v1299 = vpop.f32.mrb[0].mxu0
    %1300 = vmatprep.mubr.f32.mxu0 0.0
    %1301 = vmatmul.mubr.f32.gmra.mrb[0].mxu0 %v239
    %v1302 = vpop.f32.mrb[0].mxu0
    %v1303 = vadd.f32 %v1224, %v1302
    %v1304 = vpop.f32.mrb[0].mxu0
    %1305 = vmatprep.mubr.f32.mxu0 0.0
    %1306 = vmatmul.mubr.f32.gmra.mrb[0].mxu0 %v242
    %v1307 = vpop.f32.mrb[0].mxu0
    %v1308 = vadd.f32 %v1224, %v1307
    %v1309 = vpop.f32.mrb[0].mxu0
    %1310 = vmatprep.mubr.f32.mxu0 0.0
    %1311 = vmatmul.mubr.f32.gmra.mrb[0].mxu0 %v245
    %v1312 = vpop.f32.mrb[0].mxu0
    %v1313 = vadd.f32 %v1224, %v1312
    %v1314 = vpop.f32.mrb[0].mxu0
    %1315 = vmatprep.mubr.f32.mxu0 0.0
    %1316 = vmatmul.mubr.f32.gmra.mrb[0].mxu0 %v248
    %v1317 = vpop.f32.mrb[0].mxu0
    %v1318 = vadd.f32 %v1224, %v1317
    %v1319 = vpop.f32.mrb[0].mxu0
    %1320 = vmatprep.mubr.f32.mxu0 0.0
    %1321 = vmatmul.mubr.f32.gmra.mrb[0].mxu0 %v251
    %v1322 = vpop.f32.mrb[0].mxu0
    %v1323 = vadd.f32 %v1224, %v1322
    %v1324 = vpop.f32.mrb[0].mxu0
    %1325 = vmatprep.mubr.f32.mxu0 0.0
    %1326 = vmatmul.mubr.f32.gmra.mrb[0].mxu0 %v254
    %v1327 = vpop.f32.mrb[0].mxu0
    %v1328 = vadd.f32 %v1224, %v1327
    %v1329 = vpop.f32.mrb[0].mxu0
    %1330 = vdwg.mxu0
    %s1331 = scalar_lea.vmem %s7, 32
    %v1332 = vld [vmem:[%s1331] sm:$0xff]
    %v1333 = vld [vmem:[%s1331 + $0x8] sm:$0xff]
    %v1334 = vld [vmem:[%s1331 + $0x10] sm:$0xff]
    %v1335 = vld [vmem:[%s1331 + $0x18] sm:$0xff]
    %s1336 = scalar_lea.vmem %s8, 1
    %v1337 = vld [vmem:[%s1336] sm:$0x1]
    %v1339 = vlaneseq
    %v1340 = vshrl.u32 %v1339, 7
    %v1341 = vsub.s32 0, %v1340
    %v1342 = vrot.slane %v1337, %v1341
    %1344 = vmatprep.subr.mxu0 0.0
    %1345 = vmatpush1.msra.mxu0 %v1332
    %1346 = vmatprep.subr.mxu0 0.0
    %1347 = vmatpush1.msra.mxu0 %v1333
    %1348 = vmatprep.subr.mxu0 0.0
    %1349 = vmatpush1.msra.mxu0 %v1334
    %1350 = vmatprep.subr.mxu0 0.0
    %1351 = vmatpush1.msra.mxu0 %v1335
    %1352 = vmatprep.subr.mxu0 0.0
    %1353 = vmatpush1.msra.mxu0 0.0
    %1354 = vmatprep.subr.mxu0 0.0
    %1355 = vmatpush1.msra.mxu0 0.0
    %1356 = vmatprep.subr.mxu0 0.0
    %1357 = vmatpush1.msra.mxu0 0.0
    %1358 = vmatprep.subr.mxu0 0.0
    %1359 = vmatpush1.msra.mxu0 0.0
    %1360 = vmatprep.subr.mxu0 0.0
    %1361 = vmatpush1.msra.mxu0 0.0
    %1362 = vmatprep.subr.mxu0 0.0
    %1363 = vmatpush1.msra.mxu0 0.0
    %1364 = vmatprep.subr.mxu0 0.0
    %1365 = vmatpush1.msra.mxu0 0.0
    %1366 = vmatprep.subr.mxu0 0.0
    %1367 = vmatpush1.msra.mxu0 0.0
    %1368 = vmatprep.subr.mxu0 0.0
    %1369 = vmatpush1.msra.mxu0 0.0
    %1370 = vmatprep.subr.mxu0 0.0
    %1371 = vmatpush1.msra.mxu0 0.0
    %1372 = vmatprep.subr.mxu0 0.0
    %1373 = vmatpush1.msra.mxu0 0.0
    %1374 = vmatprep.subr.mxu0 0.0
    %1375 = vmatpush1.msra.mxu0 0.0
    %1376 = vmatprep.subr.mxu0 0.0
    %1377 = vmatpush1.msra.mxu0 0.0
    %1378 = vmatprep.subr.mxu0 0.0
    %1379 = vmatpush1.msra.mxu0 0.0
    %1380 = vmatprep.subr.mxu0 0.0
    %1381 = vmatpush1.msra.mxu0 0.0
    %1382 = vmatprep.subr.mxu0 0.0
    %1383 = vmatpush1.msra.mxu0 0.0
    %1384 = vmatprep.subr.mxu0 0.0
    %1385 = vmatpush1.msra.mxu0 0.0
    %1386 = vmatprep.subr.mxu0 0.0
    %1387 = vmatpush1.msra.mxu0 0.0
    %1388 = vmatprep.subr.mxu0 0.0
    %1389 = vmatpush1.msra.mxu0 0.0
    %1390 = vmatprep.subr.mxu0 0.0
    %1391 = vmatpush1.msra.mxu0 0.0
    %1392 = vmatprep.subr.mxu0 0.0
    %1393 = vmatpush1.msra.mxu0 0.0
    %1394 = vmatprep.subr.mxu0 0.0
    %1395 = vmatpush1.msra.mxu0 0.0
    %1396 = vmatprep.subr.mxu0 0.0
    %1397 = vmatpush1.msra.mxu0 0.0
    %1398 = vmatprep.subr.mxu0 0.0
    %1399 = vmatpush1.msra.mxu0 0.0
    %1400 = vmatprep.subr.mxu0 0.0
    %1401 = vmatpush1.msra.mxu0 0.0
    %1402 = vmatprep.subr.mxu0 0.0
    %1403 = vmatpush1.msra.mxu0 0.0
    %1404 = vmatprep.subr.mxu0 0.0
    %1405 = vmatpush1.msra.mxu0 0.0
    %1406 = vmatprep.subr.mxu0 0.0
    %1407 = vmatpush1.msra.mxu0 0.0
    %1408 = vmatprep.mubr.f32.mxu0 0.0
    %1409 = vmatmul.mubr.f32.gmra.mrb[0].mxu0 %v233
    %v1410 = vpop.f32.mrb[0].mxu0
    %v1411 = vadd.f32 %v1342, %v1410
    %v1412 = vpop.f32.mrb[0].mxu0
    %1413 = vmatprep.mubr.f32.mxu0 0.0
    %1414 = vmatmul.mubr.f32.gmra.mrb[0].mxu0 %v236
    %v1415 = vpop.f32.mrb[0].mxu0
    %v1416 = vadd.f32 %v1342, %v1415
    %v1417 = vpop.f32.mrb[0].mxu0
    %1418 = vmatprep.mubr.f32.mxu0 0.0
    %1419 = vmatmul.mubr.f32.gmra.mrb[0].mxu0 %v239
    %v1420 = vpop.f32.mrb[0].mxu0
    %v1421 = vadd.f32 %v1342, %v1420
    %v1422 = vpop.f32.mrb[0].mxu0
    %1423 = vmatprep.mubr.f32.mxu0 0.0
    %1424 = vmatmul.mubr.f32.gmra.mrb[0].mxu0 %v242
    %v1425 = vpop.f32.mrb[0].mxu0
    %v1426 = vadd.f32 %v1342, %v1425
    %v1427 = vpop.f32.mrb[0].mxu0
    %1428 = vmatprep.mubr.f32.mxu0 0.0
    %1429 = vmatmul.mubr.f32.gmra.mrb[0].mxu0 %v245
    %v1430 = vpop.f32.mrb[0].mxu0
    %v1431 = vadd.f32 %v1342, %v1430
    %v1432 = vpop.f32.mrb[0].mxu0
    %1433 = vmatprep.mubr.f32.mxu0 0.0
    %1434 = vmatmul.mubr.f32.gmra.mrb[0].mxu0 %v248
    %v1435 = vpop.f32.mrb[0].mxu0
    %v1436 = vadd.f32 %v1342, %v1435
    %v1437 = vpop.f32.mrb[0].mxu0
    %1438 = vmatprep.mubr.f32.mxu0 0.0
    %1439 = vmatmul.mubr.f32.gmra.mrb[0].mxu0 %v251
    %v1440 = vpop.f32.mrb[0].mxu0
    %v1441 = vadd.f32 %v1342, %v1440
    %v1442 = vpop.f32.mrb[0].mxu0
    %1443 = vmatprep.mubr.f32.mxu0 0.0
    %1444 = vmatmul.mubr.f32.gmra.mrb[0].mxu0 %v254
    %v1445 = vpop.f32.mrb[0].mxu0
    %v1446 = vadd.f32 %v1342, %v1445
    %v1447 = vpop.f32.mrb[0].mxu0
    %1448 = vdwg.mxu0
    %v1450 = vsel %vm593, %v1175, 0
    %v1453 = vsel %vm593, %v1180, 0
    %v1456 = vsel %vm593, %v1185, 0
    %v1459 = vsel %vm593, %v1190, 0
    %v1462 = vsel %vm593, %v1293, 0
    %v1465 = vsel %vm593, %v1298, 0
    %v1468 = vsel %vm593, %v1303, 0
    %v1471 = vsel %vm593, %v1308, 0
    %1473 = vmatprep.subr.mxu0 0.0
    %1474 = vmatpush1.xpose.msra.mxu0 %v1462
    %1475 = vmatprep.subr.mxu0 0.0
    %1476 = vmatpush1.xpose.msra.mxu0 %v1465
    %1477 = vmatprep.subr.mxu0 0.0
    %1478 = vmatpush1.xpose.msra.mxu0 %v1468
    %1479 = vmatprep.subr.mxu0 0.0
    %1480 = vmatpush1.xpose.msra.mxu0 %v1471
    %1481 = vmatprep.subr.mxu0 0.0
    %1482 = vmatpush1.xpose.msra.mxu0 0.0
    %1483 = vmatprep.subr.mxu0 0.0
    %1484 = vmatpush1.xpose.msra.mxu0 0.0
    %1485 = vmatprep.subr.mxu0 0.0
    %1486 = vmatpush1.xpose.msra.mxu0 0.0
    %1487 = vmatprep.subr.mxu0 0.0
    %1488 = vmatpush1.xpose.msra.mxu0 0.0
    %1489 = vmatprep.subr.mxu0 0.0
    %1490 = vmatpush1.xpose.msra.mxu0 0.0
    %1491 = vmatprep.subr.mxu0 0.0
    %1492 = vmatpush1.xpose.msra.mxu0 0.0
    %1493 = vmatprep.subr.mxu0 0.0
    %1494 = vmatpush1.xpose.msra.mxu0 0.0
    %1495 = vmatprep.subr.mxu0 0.0
    %1496 = vmatpush1.xpose.msra.mxu0 0.0
    %1497 = vmatprep.subr.mxu0 0.0
    %1498 = vmatpush1.xpose.msra.mxu0 0.0
    %1499 = vmatprep.subr.mxu0 0.0
    %1500 = vmatpush1.xpose.msra.mxu0 0.0
    %1501 = vmatprep.subr.mxu0 0.0
    %1502 = vmatpush1.xpose.msra.mxu0 0.0
    %1503 = vmatprep.subr.mxu0 0.0
    %1504 = vmatpush1.xpose.msra.mxu0 0.0
    %1505 = vmatprep.subr.mxu0 0.0
    %1506 = vmatpush1.xpose.msra.mxu0 0.0
    %1507 = vmatprep.subr.mxu0 0.0
    %1508 = vmatpush1.xpose.msra.mxu0 0.0
    %1509 = vmatprep.subr.mxu0 0.0
    %1510 = vmatpush1.xpose.msra.mxu0 0.0
    %1511 = vmatprep.subr.mxu0 0.0
    %1512 = vmatpush1.xpose.msra.mxu0 0.0
    %1513 = vmatprep.subr.mxu0 0.0
    %1514 = vmatpush1.xpose.msra.mxu0 0.0
    %1515 = vmatprep.subr.mxu0 0.0
    %1516 = vmatpush1.xpose.msra.mxu0 0.0
    %1517 = vmatprep.subr.mxu0 0.0
    %1518 = vmatpush1.xpose.msra.mxu0 0.0
    %1519 = vmatprep.subr.mxu0 0.0
    %1520 = vmatpush1.xpose.msra.mxu0 0.0
    %1521 = vmatprep.subr.mxu0 0.0
    %1522 = vmatpush1.xpose.msra.mxu0 0.0
    %1523 = vmatprep.subr.mxu0 0.0
    %1524 = vmatpush1.xpose.msra.mxu0 0.0
    %1525 = vmatprep.subr.mxu0 0.0
    %1526 = vmatpush1.xpose.msra.mxu0 0.0
    %1527 = vmatprep.subr.mxu0 0.0
    %1528 = vmatpush1.xpose.msra.mxu0 0.0
    %1529 = vmatprep.subr.mxu0 0.0
    %1530 = vmatpush1.xpose.msra.mxu0 0.0
    %1531 = vmatprep.subr.mxu0 0.0
    %1532 = vmatpush1.xpose.msra.mxu0 0.0
    %1533 = vmatprep.subr.mxu0 0.0
    %1534 = vmatpush1.xpose.msra.mxu0 0.0
    %1535 = vmatprep.subr.mxu0 0.0
    %1536 = vmatpush1.xpose.msra.mxu0 0.0
    %1537 = vmatprep.mubr.f32.mxu0 0.0
    %1538 = vmatmul.mubr.f32.gmra.mrb[0].mxu0 %v1450
    %v1539 = vpop.f32.mrb[0].mxu0
    %v1540 = vadd.f32 %v81, %v1539
    %v1541 = vpop.f32.mrb[0].mxu0
    %1542 = vmatprep.mubr.f32.mxu0 0.0
    %1543 = vmatmul.mubr.f32.gmra.mrb[0].mxu0 %v1453
    %v1544 = vpop.f32.mrb[0].mxu0
    %v1545 = vadd.f32 %v82, %v1544
    %v1546 = vpop.f32.mrb[0].mxu0
    %1547 = vmatprep.mubr.f32.mxu0 0.0
    %1548 = vmatmul.mubr.f32.gmra.mrb[0].mxu0 %v1456
    %v1549 = vpop.f32.mrb[0].mxu0
    %v1550 = vadd.f32 %v83, %v1549
    %v1551 = vpop.f32.mrb[0].mxu0
    %1552 = vmatprep.mubr.f32.mxu0 0.0
    %1553 = vmatmul.mubr.f32.gmra.mrb[0].mxu0 %v1459
    %v1554 = vpop.f32.mrb[0].mxu0
    %v1555 = vadd.f32 %v84, %v1554
    %v1556 = vpop.f32.mrb[0].mxu0
    %1557 = vdwg.mxu0
    %v1559 = vsel %vm593, %v1195, 0
    %v1562 = vsel %vm593, %v1200, 0
    %v1565 = vsel %vm593, %v1205, 0
    %v1568 = vsel %vm593, %v1210, 0
    %v1571 = vsel %vm593, %v1313, 0
    %v1574 = vsel %vm593, %v1318, 0
    %v1577 = vsel %vm593, %v1323, 0
    %v1580 = vsel %vm593, %v1328, 0
    %1582 = vmatprep.subr.mxu0 0.0
    %1583 = vmatpush1.xpose.msra.mxu0 %v1571
    %1584 = vmatprep.subr.mxu0 0.0
    %1585 = vmatpush1.xpose.msra.mxu0 %v1574
    %1586 = vmatprep.subr.mxu0 0.0
    %1587 = vmatpush1.xpose.msra.mxu0 %v1577
    %1588 = vmatprep.subr.mxu0 0.0
    %1589 = vmatpush1.xpose.msra.mxu0 %v1580
    %1590 = vmatprep.subr.mxu0 0.0
    %1591 = vmatpush1.xpose.msra.mxu0 0.0
    %1592 = vmatprep.subr.mxu0 0.0
    %1593 = vmatpush1.xpose.msra.mxu0 0.0
    %1594 = vmatprep.subr.mxu0 0.0
    %1595 = vmatpush1.xpose.msra.mxu0 0.0
    %1596 = vmatprep.subr.mxu0 0.0
    %1597 = vmatpush1.xpose.msra.mxu0 0.0
    %1598 = vmatprep.subr.mxu0 0.0
    %1599 = vmatpush1.xpose.msra.mxu0 0.0
    %1600 = vmatprep.subr.mxu0 0.0
    %1601 = vmatpush1.xpose.msra.mxu0 0.0
    %1602 = vmatprep.subr.mxu0 0.0
    %1603 = vmatpush1.xpose.msra.mxu0 0.0
    %1604 = vmatprep.subr.mxu0 0.0
    %1605 = vmatpush1.xpose.msra.mxu0 0.0
    %1606 = vmatprep.subr.mxu0 0.0
    %1607 = vmatpush1.xpose.msra.mxu0 0.0
    %1608 = vmatprep.subr.mxu0 0.0
    %1609 = vmatpush1.xpose.msra.mxu0 0.0
    %1610 = vmatprep.subr.mxu0 0.0
    %1611 = vmatpush1.xpose.msra.mxu0 0.0
    %1612 = vmatprep.subr.mxu0 0.0
    %1613 = vmatpush1.xpose.msra.mxu0 0.0
    %1614 = vmatprep.subr.mxu0 0.0
    %1615 = vmatpush1.xpose.msra.mxu0 0.0
    %1616 = vmatprep.subr.mxu0 0.0
    %1617 = vmatpush1.xpose.msra.mxu0 0.0
    %1618 = vmatprep.subr.mxu0 0.0
    %1619 = vmatpush1.xpose.msra.mxu0 0.0
    %1620 = vmatprep.subr.mxu0 0.0
    %1621 = vmatpush1.xpose.msra.mxu0 0.0
    %1622 = vmatprep.subr.mxu0 0.0
    %1623 = vmatpush1.xpose.msra.mxu0 0.0
    %1624 = vmatprep.subr.mxu0 0.0
    %1625 = vmatpush1.xpose.msra.mxu0 0.0
    %1626 = vmatprep.subr.mxu0 0.0
    %1627 = vmatpush1.xpose.msra.mxu0 0.0
    %1628 = vmatprep.subr.mxu0 0.0
    %1629 = vmatpush1.xpose.msra.mxu0 0.0
    %1630 = vmatprep.subr.mxu0 0.0
    %1631 = vmatpush1.xpose.msra.mxu0 0.0
    %1632 = vmatprep.subr.mxu0 0.0
    %1633 = vmatpush1.xpose.msra.mxu0 0.0
    %1634 = vmatprep.subr.mxu0 0.0
    %1635 = vmatpush1.xpose.msra.mxu0 0.0
    %1636 = vmatprep.subr.mxu0 0.0
    %1637 = vmatpush1.xpose.msra.mxu0 0.0
    %1638 = vmatprep.subr.mxu0 0.0
    %1639 = vmatpush1.xpose.msra.mxu0 0.0
    %1640 = vmatprep.subr.mxu0 0.0
    %1641 = vmatpush1.xpose.msra.mxu0 0.0
    %1642 = vmatprep.subr.mxu0 0.0
    %1643 = vmatpush1.xpose.msra.mxu0 0.0
    %1644 = vmatprep.subr.mxu0 0.0
    %1645 = vmatpush1.xpose.msra.mxu0 0.0
    %1646 = vmatprep.mubr.f32.mxu0 0.0
    %1647 = vmatmul.mubr.f32.gmra.mrb[0].mxu0 %v1559
    %v1648 = vpop.f32.mrb[0].mxu0
    %v1649 = vadd.f32 %v81, %v1648
    %v1650 = vpop.f32.mrb[0].mxu0
    %1651 = vmatprep.mubr.f32.mxu0 0.0
    %1652 = vmatmul.mubr.f32.gmra.mrb[0].mxu0 %v1562
    %v1653 = vpop.f32.mrb[0].mxu0
    %v1654 = vadd.f32 %v82, %v1653
    %v1655 = vpop.f32.mrb[0].mxu0
    %1656 = vmatprep.mubr.f32.mxu0 0.0
    %1657 = vmatmul.mubr.f32.gmra.mrb[0].mxu0 %v1565
    %v1658 = vpop.f32.mrb[0].mxu0
    %v1659 = vadd.f32 %v83, %v1658
    %v1660 = vpop.f32.mrb[0].mxu0
    %1661 = vmatprep.mubr.f32.mxu0 0.0
    %1662 = vmatmul.mubr.f32.gmra.mrb[0].mxu0 %v1568
    %v1663 = vpop.f32.mrb[0].mxu0
    %v1664 = vadd.f32 %v84, %v1663
    %v1665 = vpop.f32.mrb[0].mxu0
    %1666 = vdwg.mxu0
    %v1667 = vsel %vm87, %v1540, -inf
    %1668 = vmax.xlane.f32.xlu0 %v1667
    %v1669 = vpop.xlane.xlu0 %1668
    %v1670 = vsel %vm87, %v1545, -inf
    %1671 = vmax.xlane.f32.xlu0 %v1670
    %v1672 = vpop.xlane.xlu0 %1671
    %v1673 = vsel %vm87, %v1550, -inf
    %1674 = vmax.xlane.f32.xlu0 %v1673
    %v1675 = vpop.xlane.xlu0 %1674
    %v1676 = vsel %vm87, %v1555, -inf
    %1677 = vmax.xlane.f32.xlu0 %v1676
    %v1678 = vpop.xlane.xlu0 %1677
    %v1679 = vsel %vm87, %v1649, -inf
    %1680 = vmax.xlane.f32.xlu0 %v1679
    %v1681 = vpop.xlane.xlu0 %1680
    %v1682 = vsel %vm87, %v1654, -inf
    %1683 = vmax.xlane.f32.xlu0 %v1682
    %v1684 = vpop.xlane.xlu0 %1683
    %v1685 = vsel %vm87, %v1659, -inf
    %1686 = vmax.xlane.f32.xlu0 %v1685
    %v1687 = vpop.xlane.xlu0 %1686
    %v1688 = vsel %vm87, %v1664, -inf
    %1689 = vmax.xlane.f32.xlu0 %v1688
    %v1690 = vpop.xlane.xlu0 %1689
    %v1691 = vsub.f32 %v1540, %v1669
    %v1692 = vsub.f32 %v1545, %v1672
    %v1693 = vsub.f32 %v1550, %v1675
    %v1694 = vsub.f32 %v1555, %v1678
    %v1695 = vsub.f32 %v1649, %v1681
    %v1696 = vsub.f32 %v1654, %v1684
    %v1697 = vsub.f32 %v1659, %v1687
    %v1698 = vsub.f32 %v1664, %v1690
    %v1699 = vmul.f32 %v1691, 1.442695
    %v1700 = vpow.pop %v1699
    %v1701 = vmul.f32 %v1692, 1.442695
    %v1702 = vpow.pop %v1701
    %v1703 = vmul.f32 %v1693, 1.442695
    %v1704 = vpow.pop %v1703
    %v1705 = vmul.f32 %v1694, 1.442695
    %v1706 = vpow.pop %v1705
    %v1707 = vmul.f32 %v1695, 1.442695
    %v1708 = vpow.pop %v1707
    %v1709 = vmul.f32 %v1696, 1.442695
    %v1710 = vpow.pop %v1709
    %v1711 = vmul.f32 %v1697, 1.442695
    %v1712 = vpow.pop %v1711
    %v1713 = vmul.f32 %v1698, 1.442695
    %v1714 = vpow.pop %v1713
    %v1715 = vsel %vm87, %v1700, 0.0
    %1716 = vadd.xlane.f32.xlu0 %v1715
    %v1717 = vpop.xlane.xlu0 %1716
    %v1718 = vsel %vm87, %v1702, 0.0
    %1719 = vadd.xlane.f32.xlu0 %v1718
    %v1720 = vpop.xlane.xlu0 %1719
    %v1721 = vsel %vm87, %v1704, 0.0
    %1722 = vadd.xlane.f32.xlu0 %v1721
    %v1723 = vpop.xlane.xlu0 %1722
    %v1724 = vsel %vm87, %v1706, 0.0
    %1725 = vadd.xlane.f32.xlu0 %v1724
    %v1726 = vpop.xlane.xlu0 %1725
    %v1727 = vsel %vm87, %v1708, 0.0
    %1728 = vadd.xlane.f32.xlu0 %v1727
    %v1729 = vpop.xlane.xlu0 %1728
    %v1730 = vsel %vm87, %v1710, 0.0
    %1731 = vadd.xlane.f32.xlu0 %v1730
    %v1732 = vpop.xlane.xlu0 %1731
    %v1733 = vsel %vm87, %v1712, 0.0
    %1734 = vadd.xlane.f32.xlu0 %v1733
    %v1735 = vpop.xlane.xlu0 %1734
    %v1736 = vsel %vm87, %v1714, 0.0
    %1737 = vadd.xlane.f32.xlu0 %v1736
    %v1738 = vpop.xlane.xlu0 %1737
    %v1740 = vsel %vm87, %v1700, 0
    %v1743 = vsel %vm87, %v1702, 0
    %v1746 = vsel %vm87, %v1704, 0
    %v1749 = vsel %vm87, %v1706, 0
    %1751 = vmatprep.subr.mxu0 0.0
    %1752 = vmatpush1.msra.mxu0 %v1411
    %1753 = vmatprep.subr.mxu0 0.0
    %1754 = vmatpush1.msra.mxu0 %v1416
    %1755 = vmatprep.subr.mxu0 0.0
    %1756 = vmatpush1.msra.mxu0 %v1421
    %1757 = vmatprep.subr.mxu0 0.0
    %1758 = vmatpush1.msra.mxu0 %v1426
    %1759 = vmatprep.subr.mxu0 0.0
    %1760 = vmatpush1.msra.mxu0 0.0
    %1761 = vmatprep.subr.mxu0 0.0
    %1762 = vmatpush1.msra.mxu0 0.0
    %1763 = vmatprep.subr.mxu0 0.0
    %1764 = vmatpush1.msra.mxu0 0.0
    %1765 = vmatprep.subr.mxu0 0.0
    %1766 = vmatpush1.msra.mxu0 0.0
    %1767 = vmatprep.subr.mxu0 0.0
    %1768 = vmatpush1.msra.mxu0 0.0
    %1769 = vmatprep.subr.mxu0 0.0
    %1770 = vmatpush1.msra.mxu0 0.0
    %1771 = vmatprep.subr.mxu0 0.0
    %1772 = vmatpush1.msra.mxu0 0.0
    %1773 = vmatprep.subr.mxu0 0.0
    %1774 = vmatpush1.msra.mxu0 0.0
    %1775 = vmatprep.subr.mxu0 0.0
    %1776 = vmatpush1.msra.mxu0 0.0
    %1777 = vmatprep.subr.mxu0 0.0
    %1778 = vmatpush1.msra.mxu0 0.0
    %1779 = vmatprep.subr.mxu0 0.0
    %1780 = vmatpush1.msra.mxu0 0.0
    %1781 = vmatprep.subr.mxu0 0.0
    %1782 = vmatpush1.msra.mxu0 0.0
    %1783 = vmatprep.subr.mxu0 0.0
    %1784 = vmatpush1.msra.mxu0 0.0
    %1785 = vmatprep.subr.mxu0 0.0
    %1786 = vmatpush1.msra.mxu0 0.0
    %1787 = vmatprep.subr.mxu0 0.0
    %1788 = vmatpush1.msra.mxu0 0.0
    %1789 = vmatprep.subr.mxu0 0.0
    %1790 = vmatpush1.msra.mxu0 0.0
    %1791 = vmatprep.subr.mxu0 0.0
    %1792 = vmatpush1.msra.mxu0 0.0
    %1793 = vmatprep.subr.mxu0 0.0
    %1794 = vmatpush1.msra.mxu0 0.0
    %1795 = vmatprep.subr.mxu0 0.0
    %1796 = vmatpush1.msra.mxu0 0.0
    %1797 = vmatprep.subr.mxu0 0.0
    %1798 = vmatpush1.msra.mxu0 0.0
    %1799 = vmatprep.subr.mxu0 0.0
    %1800 = vmatpush1.msra.mxu0 0.0
    %1801 = vmatprep.subr.mxu0 0.0
    %1802 = vmatpush1.msra.mxu0 0.0
    %1803 = vmatprep.subr.mxu0 0.0
    %1804 = vmatpush1.msra.mxu0 0.0
    %1805 = vmatprep.subr.mxu0 0.0
    %1806 = vmatpush1.msra.mxu0 0.0
    %1807 = vmatprep.subr.mxu0 0.0
    %1808 = vmatpush1.msra.mxu0 0.0
    %1809 = vmatprep.subr.mxu0 0.0
    %1810 = vmatpush1.msra.mxu0 0.0
    %1811 = vmatprep.subr.mxu0 0.0
    %1812 = vmatpush1.msra.mxu0 0.0
    %1813 = vmatprep.subr.mxu0 0.0
    %1814 = vmatpush1.msra.mxu0 0.0
    %1815 = vmatprep.mubr.f32.mxu0 0.0
    %1816 = vmatmul.mubr.f32.gmra.mrb[0].mxu0 %v1740
    %v1817 = vpop.f32.mrb[0].mxu0
    %v1818 = vadd.f32 0.0, %v1817
    %v1819 = vpop.f32.mrb[0].mxu0
    %1820 = vmatprep.mubr.f32.mxu0 0.0
    %1821 = vmatmul.mubr.f32.gmra.mrb[0].mxu0 %v1743
    %v1822 = vpop.f32.mrb[0].mxu0
    %v1823 = vadd.f32 0.0, %v1822
    %v1824 = vpop.f32.mrb[0].mxu0
    %1825 = vmatprep.mubr.f32.mxu0 0.0
    %1826 = vmatmul.mubr.f32.gmra.mrb[0].mxu0 %v1746
    %v1827 = vpop.f32.mrb[0].mxu0
    %v1828 = vadd.f32 0.0, %v1827
    %v1829 = vpop.f32.mrb[0].mxu0
    %1830 = vmatprep.mubr.f32.mxu0 0.0
    %1831 = vmatmul.mubr.f32.gmra.mrb[0].mxu0 %v1749
    %v1832 = vpop.f32.mrb[0].mxu0
    %v1833 = vadd.f32 0.0, %v1832
    %v1834 = vpop.f32.mrb[0].mxu0
    %1835 = vdwg.mxu0
    %v1837 = vsel %vm87, %v1708, 0
    %v1840 = vsel %vm87, %v1710, 0
    %v1843 = vsel %vm87, %v1712, 0
    %v1846 = vsel %vm87, %v1714, 0
    %1848 = vmatprep.subr.mxu0 0.0
    %1849 = vmatpush1.msra.mxu0 %v1431
    %1850 = vmatprep.subr.mxu0 0.0
    %1851 = vmatpush1.msra.mxu0 %v1436
    %1852 = vmatprep.subr.mxu0 0.0
    %1853 = vmatpush1.msra.mxu0 %v1441
    %1854 = vmatprep.subr.mxu0 0.0
    %1855 = vmatpush1.msra.mxu0 %v1446
    %1856 = vmatprep.subr.mxu0 0.0
    %1857 = vmatpush1.msra.mxu0 0.0
    %1858 = vmatprep.subr.mxu0 0.0
    %1859 = vmatpush1.msra.mxu0 0.0
    %1860 = vmatprep.subr.mxu0 0.0
    %1861 = vmatpush1.msra.mxu0 0.0
    %1862 = vmatprep.subr.mxu0 0.0
    %1863 = vmatpush1.msra.mxu0 0.0
    %1864 = vmatprep.subr.mxu0 0.0
    %1865 = vmatpush1.msra.mxu0 0.0
    %1866 = vmatprep.subr.mxu0 0.0
    %1867 = vmatpush1.msra.mxu0 0.0
    %1868 = vmatprep.subr.mxu0 0.0
    %1869 = vmatpush1.msra.mxu0 0.0
    %1870 = vmatprep.subr.mxu0 0.0
    %1871 = vmatpush1.msra.mxu0 0.0
    %1872 = vmatprep.subr.mxu0 0.0
    %1873 = vmatpush1.msra.mxu0 0.0
    %1874 = vmatprep.subr.mxu0 0.0
    %1875 = vmatpush1.msra.mxu0 0.0
    %1876 = vmatprep.subr.mxu0 0.0
    %1877 = vmatpush1.msra.mxu0 0.0
    %1878 = vmatprep.subr.mxu0 0.0
    %1879 = vmatpush1.msra.mxu0 0.0
    %1880 = vmatprep.subr.mxu0 0.0
    %1881 = vmatpush1.msra.mxu0 0.0
    %1882 = vmatprep.subr.mxu0 0.0
    %1883 = vmatpush1.msra.mxu0 0.0
    %1884 = vmatprep.subr.mxu0 0.0
    %1885 = vmatpush1.msra.mxu0 0.0
    %1886 = vmatprep.subr.mxu0 0.0
    %1887 = vmatpush1.msra.mxu0 0.0
    %1888 = vmatprep.subr.mxu0 0.0
    %1889 = vmatpush1.msra.mxu0 0.0
    %1890 = vmatprep.subr.mxu0 0.0
    %1891 = vmatpush1.msra.mxu0 0.0
    %1892 = vmatprep.subr.mxu0 0.0
    %1893 = vmatpush1.msra.mxu0 0.0
    %1894 = vmatprep.subr.mxu0 0.0
    %1895 = vmatpush1.msra.mxu0 0.0
    %1896 = vmatprep.subr.mxu0 0.0
    %1897 = vmatpush1.msra.mxu0 0.0
    %1898 = vmatprep.subr.mxu0 0.0
    %1899 = vmatpush1.msra.mxu0 0.0
    %1900 = vmatprep.subr.mxu0 0.0
    %1901 = vmatpush1.msra.mxu0 0.0
    %1902 = vmatprep.subr.mxu0 0.0
    %1903 = vmatpush1.msra.mxu0 0.0
    %1904 = vmatprep.subr.mxu0 0.0
    %1905 = vmatpush1.msra.mxu0 0.0
    %1906 = vmatprep.subr.mxu0 0.0
    %1907 = vmatpush1.msra.mxu0 0.0
    %1908 = vmatprep.subr.mxu0 0.0
    %1909 = vmatpush1.msra.mxu0 0.0
    %1910 = vmatprep.subr.mxu0 0.0
    %1911 = vmatpush1.msra.mxu0 0.0
    %1912 = vmatprep.mubr.f32.mxu0 0.0
    %1913 = vmatmul.mubr.f32.gmra.mrb[0].mxu0 %v1837
    %v1914 = vpop.f32.mrb[0].mxu0
    %v1915 = vadd.f32 0.0, %v1914
    %v1916 = vpop.f32.mrb[0].mxu0
    %1917 = vmatprep.mubr.f32.mxu0 0.0
    %1918 = vmatmul.mubr.f32.gmra.mrb[0].mxu0 %v1840
    %v1919 = vpop.f32.mrb[0].mxu0
    %v1920 = vadd.f32 0.0, %v1919
    %v1921 = vpop.f32.mrb[0].mxu0
    %1922 = vmatprep.mubr.f32.mxu0 0.0
    %1923 = vmatmul.mubr.f32.gmra.mrb[0].mxu0 %v1843
    %v1924 = vpop.f32.mrb[0].mxu0
    %v1925 = vadd.f32 0.0, %v1924
    %v1926 = vpop.f32.mrb[0].mxu0
    %1927 = vmatprep.mubr.f32.mxu0 0.0
    %1928 = vmatmul.mubr.f32.gmra.mrb[0].mxu0 %v1846
    %v1929 = vpop.f32.mrb[0].mxu0
    %v1930 = vadd.f32 0.0, %v1929
    %v1931 = vpop.f32.mrb[0].mxu0
    %1932 = vdwg.mxu0
    %v1933 = vrcp.pop %v1717
    %v1934 = vrcp.pop %v1720
    %v1935 = vrcp.pop %v1723
    %v1936 = vrcp.pop %v1726
    %v1937 = vrcp.pop %v1729
    %v1938 = vrcp.pop %v1732
    %v1939 = vrcp.pop %v1735
    %v1940 = vrcp.pop %v1738
    %v1941 = vmul.f32 %v1818, %v1933
    %v1942 = vmul.f32 %v1823, %v1934
    %v1943 = vmul.f32 %v1828, %v1935
    %v1944 = vmul.f32 %v1833, %v1936
    %v1945 = vmul.f32 %v1915, %v1937
    %v1946 = vmul.f32 %v1920, %v1938
    %v1947 = vmul.f32 %v1925, %v1939
    %v1948 = vmul.f32 %v1930, %v1940
    %s1949 = scalar_lea.vmem %s9, 8
    %v1950 = vld [vmem:[%s1949] sm:$0xff]
    %v1952 = vsel %vm593, %v1941, 0
    %v1955 = vsel %vm593, %v1942, 0
    %v1958 = vsel %vm593, %v1943, 0
    %v1961 = vsel %vm593, %v1944, 0
    %v1964 = vsel %vm593, %v1945, 0
    %v1967 = vsel %vm593, %v1946, 0
    %v1970 = vsel %vm593, %v1947, 0
    %v1973 = vsel %vm593, %v1948, 0
    %1975 = vmatprep.subr.mxu0 0.0
    %1976 = vmatpush1.msra.mxu0 %v1950
    %1977 = vmatprep.subr.mxu0 0.0
    %1978 = vmatpush1.msra.mxu0 0.0
    %1979 = vmatprep.subr.mxu0 0.0
    %1980 = vmatpush1.msra.mxu0 0.0
    %1981 = vmatprep.subr.mxu0 0.0
    %1982 = vmatpush1.msra.mxu0 0.0
    %1983 = vmatprep.subr.mxu0 0.0
    %1984 = vmatpush1.msra.mxu0 0.0
    %1985 = vmatprep.subr.mxu0 0.0
    %1986 = vmatpush1.msra.mxu0 0.0
    %1987 = vmatprep.subr.mxu0 0.0
    %1988 = vmatpush1.msra.mxu0 0.0
    %1989 = vmatprep.subr.mxu0 0.0
    %1990 = vmatpush1.msra.mxu0 0.0
    %1991 = vmatprep.subr.mxu0 0.0
    %1992 = vmatpush1.msra.mxu0 0.0
    %1993 = vmatprep.subr.mxu0 0.0
    %1994 = vmatpush1.msra.mxu0 0.0
    %1995 = vmatprep.subr.mxu0 0.0
    %1996 = vmatpush1.msra.mxu0 0.0
    %1997 = vmatprep.subr.mxu0 0.0
    %1998 = vmatpush1.msra.mxu0 0.0
    %1999 = vmatprep.subr.mxu0 0.0
    %2000 = vmatpush1.msra.mxu0 0.0
    %2001 = vmatprep.subr.mxu0 0.0
    %2002 = vmatpush1.msra.mxu0 0.0
    %2003 = vmatprep.subr.mxu0 0.0
    %2004 = vmatpush1.msra.mxu0 0.0
    %2005 = vmatprep.subr.mxu0 0.0
    %2006 = vmatpush1.msra.mxu0 0.0
    %2007 = vmatprep.subr.mxu0 0.0
    %2008 = vmatpush1.msra.mxu0 0.0
    %2009 = vmatprep.subr.mxu0 0.0
    %2010 = vmatpush1.msra.mxu0 0.0
    %2011 = vmatprep.subr.mxu0 0.0
    %2012 = vmatpush1.msra.mxu0 0.0
    %2013 = vmatprep.subr.mxu0 0.0
    %2014 = vmatpush1.msra.mxu0 0.0
    %2015 = vmatprep.subr.mxu0 0.0
    %2016 = vmatpush1.msra.mxu0 0.0
    %2017 = vmatprep.subr.mxu0 0.0
    %2018 = vmatpush1.msra.mxu0 0.0
    %2019 = vmatprep.subr.mxu0 0.0
    %2020 = vmatpush1.msra.mxu0 0.0
    %2021 = vmatprep.subr.mxu0 0.0
    %2022 = vmatpush1.msra.mxu0 0.0
    %2023 = vmatprep.subr.mxu0 0.0
    %2024 = vmatpush1.msra.mxu0 0.0
    %2025 = vmatprep.subr.mxu0 0.0
    %2026 = vmatpush1.msra.mxu0 0.0
    %2027 = vmatprep.subr.mxu0 0.0
    %2028 = vmatpush1.msra.mxu0 0.0
    %2029 = vmatprep.subr.mxu0 0.0
    %2030 = vmatpush1.msra.mxu0 0.0
    %2031 = vmatprep.subr.mxu0 0.0
    %2032 = vmatpush1.msra.mxu0 0.0
    %2033 = vmatprep.subr.mxu0 0.0
    %2034 = vmatpush1.msra.mxu0 0.0
    %2035 = vmatprep.subr.mxu0 0.0
    %2036 = vmatpush1.msra.mxu0 0.0
    %2037 = vmatprep.subr.mxu0 0.0
    %2038 = vmatpush1.msra.mxu0 0.0
    %2039 = vmatprep.mubr.f32.mxu0 0.0
    %2040 = vmatmul.mubr.f32.gmra.mrb[0].mxu0 %v1952
    %v2041 = vpop.f32.mrb[0].mxu0
    %v2042 = vadd.f32 0.0, %v2041
    %v2043 = vpop.f32.mrb[0].mxu0
    %2044 = vmatprep.mubr.f32.mxu0 0.0
    %2045 = vmatmul.mubr.f32.gmra.mrb[0].mxu0 %v1955
    %v2046 = vpop.f32.mrb[0].mxu0
    %v2047 = vadd.f32 0.0, %v2046
    %v2048 = vpop.f32.mrb[0].mxu0
    %2049 = vmatprep.mubr.f32.mxu0 0.0
    %2050 = vmatmul.mubr.f32.gmra.mrb[0].mxu0 %v1958
    %v2051 = vpop.f32.mrb[0].mxu0
    %v2052 = vadd.f32 0.0, %v2051
    %v2053 = vpop.f32.mrb[0].mxu0
    %2054 = vmatprep.mubr.f32.mxu0 0.0
    %2055 = vmatmul.mubr.f32.gmra.mrb[0].mxu0 %v1961
    %v2056 = vpop.f32.mrb[0].mxu0
    %v2057 = vadd.f32 0.0, %v2056
    %v2058 = vpop.f32.mrb[0].mxu0
    %2059 = vmatprep.mubr.f32.mxu0 0.0
    %2060 = vmatmul.mubr.f32.gmra.mrb[0].mxu0 %v1964
    %v2061 = vpop.f32.mrb[0].mxu0
    %v2062 = vadd.f32 0.0, %v2061
    %v2063 = vpop.f32.mrb[0].mxu0
    %2064 = vmatprep.mubr.f32.mxu0 0.0
    %2065 = vmatmul.mubr.f32.gmra.mrb[0].mxu0 %v1967
    %v2066 = vpop.f32.mrb[0].mxu0
    %v2067 = vadd.f32 0.0, %v2066
    %v2068 = vpop.f32.mrb[0].mxu0
    %2069 = vmatprep.mubr.f32.mxu0 0.0
    %2070 = vmatmul.mubr.f32.gmra.mrb[0].mxu0 %v1970
    %v2071 = vpop.f32.mrb[0].mxu0
    %v2072 = vadd.f32 0.0, %v2071
    %v2073 = vpop.f32.mrb[0].mxu0
    %2074 = vmatprep.mubr.f32.mxu0 0.0
    %2075 = vmatmul.mubr.f32.gmra.mrb[0].mxu0 %v1973
    %v2076 = vpop.f32.mrb[0].mxu0
    %v2077 = vadd.f32 0.0, %v2076
    %v2078 = vpop.f32.mrb[0].mxu0
    %2079 = vdwg.mxu0
    %v2081 = vsel %vm593, %v1086, 0
    %v2084 = vsel %vm593, %v1087, 0
    %v2087 = vsel %vm593, %v1088, 0
    %v2090 = vsel %vm593, %v1089, 0
    %v2093 = vsel %vm593, %v1090, 0
    %v2096 = vsel %vm593, %v1091, 0
    %v2099 = vsel %vm593, %v1092, 0
    %v2102 = vsel %vm593, %v1093, 0
    %2104 = vmatprep.subr.mxu0 0.0
    %2105 = vmatpush1.msra.mxu0 %v1094
    %2106 = vmatprep.subr.mxu0 0.0
    %2107 = vmatpush1.msra.mxu0 0.0
    %2108 = vmatprep.subr.mxu0 0.0
    %2109 = vmatpush1.msra.mxu0 0.0
    %2110 = vmatprep.subr.mxu0 0.0
    %2111 = vmatpush1.msra.mxu0 0.0
    %2112 = vmatprep.subr.mxu0 0.0
    %2113 = vmatpush1.msra.mxu0 0.0
    %2114 = vmatprep.subr.mxu0 0.0
    %2115 = vmatpush1.msra.mxu0 0.0
    %2116 = vmatprep.subr.mxu0 0.0
    %2117 = vmatpush1.msra.mxu0 0.0
    %2118 = vmatprep.subr.mxu0 0.0
    %2119 = vmatpush1.msra.mxu0 0.0
    %2120 = vmatprep.subr.mxu0 0.0
    %2121 = vmatpush1.msra.mxu0 0.0
    %2122 = vmatprep.subr.mxu0 0.0
    %2123 = vmatpush1.msra.mxu0 0.0
    %2124 = vmatprep.subr.mxu0 0.0
    %2125 = vmatpush1.msra.mxu0 0.0
    %2126 = vmatprep.subr.mxu0 0.0
    %2127 = vmatpush1.msra.mxu0 0.0
    %2128 = vmatprep.subr.mxu0 0.0
    %2129 = vmatpush1.msra.mxu0 0.0
    %2130 = vmatprep.subr.mxu0 0.0
    %2131 = vmatpush1.msra.mxu0 0.0
    %2132 = vmatprep.subr.mxu0 0.0
    %2133 = vmatpush1.msra.mxu0 0.0
    %2134 = vmatprep.subr.mxu0 0.0
    %2135 = vmatpush1.msra.mxu0 0.0
    %2136 = vmatprep.subr.mxu0 0.0
    %2137 = vmatpush1.msra.mxu0 0.0
    %2138 = vmatprep.subr.mxu0 0.0
    %2139 = vmatpush1.msra.mxu0 0.0
    %2140 = vmatprep.subr.mxu0 0.0
    %2141 = vmatpush1.msra.mxu0 0.0
    %2142 = vmatprep.subr.mxu0 0.0
    %2143 = vmatpush1.msra.mxu0 0.0
    %2144 = vmatprep.subr.mxu0 0.0
    %2145 = vmatpush1.msra.mxu0 0.0
    %2146 = vmatprep.subr.mxu0 0.0
    %2147 = vmatpush1.msra.mxu0 0.0
    %2148 = vmatprep.subr.mxu0 0.0
    %2149 = vmatpush1.msra.mxu0 0.0
    %2150 = vmatprep.subr.mxu0 0.0
    %2151 = vmatpush1.msra.mxu0 0.0
    %2152 = vmatprep.subr.mxu0 0.0
    %2153 = vmatpush1.msra.mxu0 0.0
    %2154 = vmatprep.subr.mxu0 0.0
    %2155 = vmatpush1.msra.mxu0 0.0
    %2156 = vmatprep.subr.mxu0 0.0
    %2157 = vmatpush1.msra.mxu0 0.0
    %2158 = vmatprep.subr.mxu0 0.0
    %2159 = vmatpush1.msra.mxu0 0.0
    %2160 = vmatprep.subr.mxu0 0.0
    %2161 = vmatpush1.msra.mxu0 0.0
    %2162 = vmatprep.subr.mxu0 0.0
    %2163 = vmatpush1.msra.mxu0 0.0
    %2164 = vmatprep.subr.mxu0 0.0
    %2165 = vmatpush1.msra.mxu0 0.0
    %2166 = vmatprep.subr.mxu0 0.0
    %2167 = vmatpush1.msra.mxu0 0.0
    %2168 = vmatprep.mubr.f32.mxu0 0.0
    %2169 = vmatmul.mubr.f32.gmra.mrb[0].mxu0 %v2081
    %v2170 = vpop.f32.mrb[0].mxu0
    %v2171 = vadd.f32 %v2042, %v2170
    %v2172 = vpop.f32.mrb[0].mxu0
    %2173 = vmatprep.mubr.f32.mxu0 0.0
    %2174 = vmatmul.mubr.f32.gmra.mrb[0].mxu0 %v2084
    %v2175 = vpop.f32.mrb[0].mxu0
    %v2176 = vadd.f32 %v2047, %v2175
    %v2177 = vpop.f32.mrb[0].mxu0
    %2178 = vmatprep.mubr.f32.mxu0 0.0
    %2179 = vmatmul.mubr.f32.gmra.mrb[0].mxu0 %v2087
    %v2180 = vpop.f32.mrb[0].mxu0
    %v2181 = vadd.f32 %v2052, %v2180
    %v2182 = vpop.f32.mrb[0].mxu0
    %2183 = vmatprep.mubr.f32.mxu0 0.0
    %2184 = vmatmul.mubr.f32.gmra.mrb[0].mxu0 %v2090
    %v2185 = vpop.f32.mrb[0].mxu0
    %v2186 = vadd.f32 %v2057, %v2185
    %v2187 = vpop.f32.mrb[0].mxu0
    %2188 = vmatprep.mubr.f32.mxu0 0.0
    %2189 = vmatmul.mubr.f32.gmra.mrb[0].mxu0 %v2093
    %v2190 = vpop.f32.mrb[0].mxu0
    %v2191 = vadd.f32 %v2062, %v2190
    %v2192 = vpop.f32.mrb[0].mxu0
    %2193 = vmatprep.mubr.f32.mxu0 0.0
    %2194 = vmatmul.mubr.f32.gmra.mrb[0].mxu0 %v2096
    %v2195 = vpop.f32.mrb[0].mxu0
    %v2196 = vadd.f32 %v2067, %v2195
    %v2197 = vpop.f32.mrb[0].mxu0
    %2198 = vmatprep.mubr.f32.mxu0 0.0
    %2199 = vmatmul.mubr.f32.gmra.mrb[0].mxu0 %v2099
    %v2200 = vpop.f32.mrb[0].mxu0
    %v2201 = vadd.f32 %v2072, %v2200
    %v2202 = vpop.f32.mrb[0].mxu0
    %2203 = vmatprep.mubr.f32.mxu0 0.0
    %2204 = vmatmul.mubr.f32.gmra.mrb[0].mxu0 %v2102
    %v2205 = vpop.f32.mrb[0].mxu0
    %v2206 = vadd.f32 %v2077, %v2205
    %v2207 = vpop.f32.mrb[0].mxu0
    %2208 = vdwg.mxu0
    %s2209 = scalar_lea.vmem %s3, 64
    %v2210 = vld [vmem:[%s2209] sm:$0xff]
    %v2211 = vld [vmem:[%s2209 + $0x8] sm:$0xff]
    %v2212 = vld [vmem:[%s2209 + $0x10] sm:$0xff]
    %v2213 = vld [vmem:[%s2209 + $0x18] sm:$0xff]
    %s2214 = scalar_lea.vmem %s4, 2
    %v2215 = vld [vmem:[%s2214] sm:$0x1]
    %v2217 = vlaneseq
    %v2218 = vshrl.u32 %v2217, 7
    %v2219 = vsub.s32 0, %v2218
    %v2220 = vrot.slane %v2215, %v2219
    %2222 = vmatprep.subr.mxu0 0.0
    %2223 = vmatpush1.msra.mxu0 %v2210
    %2224 = vmatprep.subr.mxu0 0.0
    %2225 = vmatpush1.msra.mxu0 %v2211
    %2226 = vmatprep.subr.mxu0 0.0
    %2227 = vmatpush1.msra.mxu0 %v2212
    %2228 = vmatprep.subr.mxu0 0.0
    %2229 = vmatpush1.msra.mxu0 %v2213
    %2230 = vmatprep.subr.mxu0 0.0
    %2231 = vmatpush1.msra.mxu0 0.0
    %2232 = vmatprep.subr.mxu0 0.0
    %2233 = vmatpush1.msra.mxu0 0.0
    %2234 = vmatprep.subr.mxu0 0.0
    %2235 = vmatpush1.msra.mxu0 0.0
    %2236 = vmatprep.subr.mxu0 0.0
    %2237 = vmatpush1.msra.mxu0 0.0
    %2238 = vmatprep.subr.mxu0 0.0
    %2239 = vmatpush1.msra.mxu0 0.0
    %2240 = vmatprep.subr.mxu0 0.0
    %2241 = vmatpush1.msra.mxu0 0.0
    %2242 = vmatprep.subr.mxu0 0.0
    %2243 = vmatpush1.msra.mxu0 0.0
    %2244 = vmatprep.subr.mxu0 0.0
    %2245 = vmatpush1.msra.mxu0 0.0
    %2246 = vmatprep.subr.mxu0 0.0
    %2247 = vmatpush1.msra.mxu0 0.0
    %2248 = vmatprep.subr.mxu0 0.0
    %2249 = vmatpush1.msra.mxu0 0.0
    %2250 = vmatprep.subr.mxu0 0.0
    %2251 = vmatpush1.msra.mxu0 0.0
    %2252 = vmatprep.subr.mxu0 0.0
    %2253 = vmatpush1.msra.mxu0 0.0
    %2254 = vmatprep.subr.mxu0 0.0
    %2255 = vmatpush1.msra.mxu0 0.0
    %2256 = vmatprep.subr.mxu0 0.0
    %2257 = vmatpush1.msra.mxu0 0.0
    %2258 = vmatprep.subr.mxu0 0.0
    %2259 = vmatpush1.msra.mxu0 0.0
    %2260 = vmatprep.subr.mxu0 0.0
    %2261 = vmatpush1.msra.mxu0 0.0
    %2262 = vmatprep.subr.mxu0 0.0
    %2263 = vmatpush1.msra.mxu0 0.0
    %2264 = vmatprep.subr.mxu0 0.0
    %2265 = vmatpush1.msra.mxu0 0.0
    %2266 = vmatprep.subr.mxu0 0.0
    %2267 = vmatpush1.msra.mxu0 0.0
    %2268 = vmatprep.subr.mxu0 0.0
    %2269 = vmatpush1.msra.mxu0 0.0
    %2270 = vmatprep.subr.mxu0 0.0
    %2271 = vmatpush1.msra.mxu0 0.0
    %2272 = vmatprep.subr.mxu0 0.0
    %2273 = vmatpush1.msra.mxu0 0.0
    %2274 = vmatprep.subr.mxu0 0.0
    %2275 = vmatpush1.msra.mxu0 0.0
    %2276 = vmatprep.subr.mxu0 0.0
    %2277 = vmatpush1.msra.mxu0 0.0
    %2278 = vmatprep.subr.mxu0 0.0
    %2279 = vmatpush1.msra.mxu0 0.0
    %2280 = vmatprep.subr.mxu0 0.0
    %2281 = vmatpush1.msra.mxu0 0.0
    %2282 = vmatprep.subr.mxu0 0.0
    %2283 = vmatpush1.msra.mxu0 0.0
    %2284 = vmatprep.subr.mxu0 0.0
    %2285 = vmatpush1.msra.mxu0 0.0
    %2286 = vmatprep.mubr.f32.mxu0 0.0
    %2287 = vmatmul.mubr.f32.gmra.mrb[0].mxu0 %v233
    %v2288 = vpop.f32.mrb[0].mxu0
    %v2289 = vadd.f32 %v2220, %v2288
    %v2290 = vpop.f32.mrb[0].mxu0
    %2291 = vmatprep.mubr.f32.mxu0 0.0
    %2292 = vmatmul.mubr.f32.gmra.mrb[0].mxu0 %v236
    %v2293 = vpop.f32.mrb[0].mxu0
    %v2294 = vadd.f32 %v2220, %v2293
    %v2295 = vpop.f32.mrb[0].mxu0
    %2296 = vmatprep.mubr.f32.mxu0 0.0
    %2297 = vmatmul.mubr.f32.gmra.mrb[0].mxu0 %v239
    %v2298 = vpop.f32.mrb[0].mxu0
    %v2299 = vadd.f32 %v2220, %v2298
    %v2300 = vpop.f32.mrb[0].mxu0
    %2301 = vmatprep.mubr.f32.mxu0 0.0
    %2302 = vmatmul.mubr.f32.gmra.mrb[0].mxu0 %v242
    %v2303 = vpop.f32.mrb[0].mxu0
    %v2304 = vadd.f32 %v2220, %v2303
    %v2305 = vpop.f32.mrb[0].mxu0
    %2306 = vmatprep.mubr.f32.mxu0 0.0
    %2307 = vmatmul.mubr.f32.gmra.mrb[0].mxu0 %v245
    %v2308 = vpop.f32.mrb[0].mxu0
    %v2309 = vadd.f32 %v2220, %v2308
    %v2310 = vpop.f32.mrb[0].mxu0
    %2311 = vmatprep.mubr.f32.mxu0 0.0
    %2312 = vmatmul.mubr.f32.gmra.mrb[0].mxu0 %v248
    %v2313 = vpop.f32.mrb[0].mxu0
    %v2314 = vadd.f32 %v2220, %v2313
    %v2315 = vpop.f32.mrb[0].mxu0
    %2316 = vmatprep.mubr.f32.mxu0 0.0
    %2317 = vmatmul.mubr.f32.gmra.mrb[0].mxu0 %v251
    %v2318 = vpop.f32.mrb[0].mxu0
    %v2319 = vadd.f32 %v2220, %v2318
    %v2320 = vpop.f32.mrb[0].mxu0
    %2321 = vmatprep.mubr.f32.mxu0 0.0
    %2322 = vmatmul.mubr.f32.gmra.mrb[0].mxu0 %v254
    %v2323 = vpop.f32.mrb[0].mxu0
    %v2324 = vadd.f32 %v2220, %v2323
    %v2325 = vpop.f32.mrb[0].mxu0
    %2326 = vdwg.mxu0
    %s2327 = scalar_lea.vmem %s5, 64
    %v2328 = vld [vmem:[%s2327] sm:$0xff]
    %v2329 = vld [vmem:[%s2327 + $0x8] sm:$0xff]
    %v2330 = vld [vmem:[%s2327 + $0x10] sm:$0xff]
    %v2331 = vld [vmem:[%s2327 + $0x18] sm:$0xff]
    %s2332 = scalar_lea.vmem %s6, 2
    %v2333 = vld [vmem:[%s2332] sm:$0x1]
    %v2335 = vlaneseq
    %v2336 = vshrl.u32 %v2335, 7
    %v2337 = vsub.s32 0, %v2336
    %v2338 = vrot.slane %v2333, %v2337
    %2340 = vmatprep.subr.mxu0 0.0
    %2341 = vmatpush1.msra.mxu0 %v2328
    %2342 = vmatprep.subr.mxu0 0.0
    %2343 = vmatpush1.msra.mxu0 %v2329
    %2344 = vmatprep.subr.mxu0 0.0
    %2345 = vmatpush1.msra.mxu0 %v2330
    %2346 = vmatprep.subr.mxu0 0.0
    %2347 = vmatpush1.msra.mxu0 %v2331
    %2348 = vmatprep.subr.mxu0 0.0
    %2349 = vmatpush1.msra.mxu0 0.0
    %2350 = vmatprep.subr.mxu0 0.0
    %2351 = vmatpush1.msra.mxu0 0.0
    %2352 = vmatprep.subr.mxu0 0.0
    %2353 = vmatpush1.msra.mxu0 0.0
    %2354 = vmatprep.subr.mxu0 0.0
    %2355 = vmatpush1.msra.mxu0 0.0
    %2356 = vmatprep.subr.mxu0 0.0
    %2357 = vmatpush1.msra.mxu0 0.0
    %2358 = vmatprep.subr.mxu0 0.0
    %2359 = vmatpush1.msra.mxu0 0.0
    %2360 = vmatprep.subr.mxu0 0.0
    %2361 = vmatpush1.msra.mxu0 0.0
    %2362 = vmatprep.subr.mxu0 0.0
    %2363 = vmatpush1.msra.mxu0 0.0
    %2364 = vmatprep.subr.mxu0 0.0
    %2365 = vmatpush1.msra.mxu0 0.0
    %2366 = vmatprep.subr.mxu0 0.0
    %2367 = vmatpush1.msra.mxu0 0.0
    %2368 = vmatprep.subr.mxu0 0.0
    %2369 = vmatpush1.msra.mxu0 0.0
    %2370 = vmatprep.subr.mxu0 0.0
    %2371 = vmatpush1.msra.mxu0 0.0
    %2372 = vmatprep.subr.mxu0 0.0
    %2373 = vmatpush1.msra.mxu0 0.0
    %2374 = vmatprep.subr.mxu0 0.0
    %2375 = vmatpush1.msra.mxu0 0.0
    %2376 = vmatprep.subr.mxu0 0.0
    %2377 = vmatpush1.msra.mxu0 0.0
    %2378 = vmatprep.subr.mxu0 0.0
    %2379 = vmatpush1.msra.mxu0 0.0
    %2380 = vmatprep.subr.mxu0 0.0
    %2381 = vmatpush1.msra.mxu0 0.0
    %2382 = vmatprep.subr.mxu0 0.0
    %2383 = vmatpush1.msra.mxu0 0.0
    %2384 = vmatprep.subr.mxu0 0.0
    %2385 = vmatpush1.msra.mxu0 0.0
    %2386 = vmatprep.subr.mxu0 0.0
    %2387 = vmatpush1.msra.mxu0 0.0
    %2388 = vmatprep.subr.mxu0 0.0
    %2389 = vmatpush1.msra.mxu0 0.0
    %2390 = vmatprep.subr.mxu0 0.0
    %2391 = vmatpush1.msra.mxu0 0.0
    %2392 = vmatprep.subr.mxu0 0.0
    %2393 = vmatpush1.msra.mxu0 0.0
    %2394 = vmatprep.subr.mxu0 0.0
    %2395 = vmatpush1.msra.mxu0 0.0
    %2396 = vmatprep.subr.mxu0 0.0
    %2397 = vmatpush1.msra.mxu0 0.0
    %2398 = vmatprep.subr.mxu0 0.0
    %2399 = vmatpush1.msra.mxu0 0.0
    %2400 = vmatprep.subr.mxu0 0.0
    %2401 = vmatpush1.msra.mxu0 0.0
    %2402 = vmatprep.subr.mxu0 0.0
    %2403 = vmatpush1.msra.mxu0 0.0
    %2404 = vmatprep.mubr.f32.mxu0 0.0
    %2405 = vmatmul.mubr.f32.gmra.mrb[0].mxu0 %v233
    %v2406 = vpop.f32.mrb[0].mxu0
    %v2407 = vadd.f32 %v2338, %v2406
    %v2408 = vpop.f32.mrb[0].mxu0
    %2409 = vmatprep.mubr.f32.mxu0 0.0
    %2410 = vmatmul.mubr.f32.gmra.mrb[0].mxu0 %v236
    %v2411 = vpop.f32.mrb[0].mxu0
    %v2412 = vadd.f32 %v2338, %v2411
    %v2413 = vpop.f32.mrb[0].mxu0
    %2414 = vmatprep.mubr.f32.mxu0 0.0
    %2415 = vmatmul.mubr.f32.gmra.mrb[0].mxu0 %v239
    %v2416 = vpop.f32.mrb[0].mxu0
    %v2417 = vadd.f32 %v2338, %v2416
    %v2418 = vpop.f32.mrb[0].mxu0
    %2419 = vmatprep.mubr.f32.mxu0 0.0
    %2420 = vmatmul.mubr.f32.gmra.mrb[0].mxu0 %v242
    %v2421 = vpop.f32.mrb[0].mxu0
    %v2422 = vadd.f32 %v2338, %v2421
    %v2423 = vpop.f32.mrb[0].mxu0
    %2424 = vmatprep.mubr.f32.mxu0 0.0
    %2425 = vmatmul.mubr.f32.gmra.mrb[0].mxu0 %v245
    %v2426 = vpop.f32.mrb[0].mxu0
    %v2427 = vadd.f32 %v2338, %v2426
    %v2428 = vpop.f32.mrb[0].mxu0
    %2429 = vmatprep.mubr.f32.mxu0 0.0
    %2430 = vmatmul.mubr.f32.gmra.mrb[0].mxu0 %v248
    %v2431 = vpop.f32.mrb[0].mxu0
    %v2432 = vadd.f32 %v2338, %v2431
    %v2433 = vpop.f32.mrb[0].mxu0
    %2434 = vmatprep.mubr.f32.mxu0 0.0
    %2435 = vmatmul.mubr.f32.gmra.mrb[0].mxu0 %v251
    %v2436 = vpop.f32.mrb[0].mxu0
    %v2437 = vadd.f32 %v2338, %v2436
    %v2438 = vpop.f32.mrb[0].mxu0
    %2439 = vmatprep.mubr.f32.mxu0 0.0
    %2440 = vmatmul.mubr.f32.gmra.mrb[0].mxu0 %v254
    %v2441 = vpop.f32.mrb[0].mxu0
    %v2442 = vadd.f32 %v2338, %v2441
    %v2443 = vpop.f32.mrb[0].mxu0
    %2444 = vdwg.mxu0
    %s2445 = scalar_lea.vmem %s7, 64
    %v2446 = vld [vmem:[%s2445] sm:$0xff]
    %v2447 = vld [vmem:[%s2445 + $0x8] sm:$0xff]
    %v2448 = vld [vmem:[%s2445 + $0x10] sm:$0xff]
    %v2449 = vld [vmem:[%s2445 + $0x18] sm:$0xff]
    %s2450 = scalar_lea.vmem %s8, 2
    %v2451 = vld [vmem:[%s2450] sm:$0x1]
    %v2453 = vlaneseq
    %v2454 = vshrl.u32 %v2453, 7
    %v2455 = vsub.s32 0, %v2454
    %v2456 = vrot.slane %v2451, %v2455
    %2458 = vmatprep.subr.mxu0 0.0
    %2459 = vmatpush1.msra.mxu0 %v2446
    %2460 = vmatprep.subr.mxu0 0.0
    %2461 = vmatpush1.msra.mxu0 %v2447
    %2462 = vmatprep.subr.mxu0 0.0
    %2463 = vmatpush1.msra.mxu0 %v2448
    %2464 = vmatprep.subr.mxu0 0.0
    %2465 = vmatpush1.msra.mxu0 %v2449
    %2466 = vmatprep.subr.mxu0 0.0
    %2467 = vmatpush1.msra.mxu0 0.0
    %2468 = vmatprep.subr.mxu0 0.0
    %2469 = vmatpush1.msra.mxu0 0.0
    %2470 = vmatprep.subr.mxu0 0.0
    %2471 = vmatpush1.msra.mxu0 0.0
    %2472 = vmatprep.subr.mxu0 0.0
    %2473 = vmatpush1.msra.mxu0 0.0
    %2474 = vmatprep.subr.mxu0 0.0
    %2475 = vmatpush1.msra.mxu0 0.0
    %2476 = vmatprep.subr.mxu0 0.0
    %2477 = vmatpush1.msra.mxu0 0.0
    %2478 = vmatprep.subr.mxu0 0.0
    %2479 = vmatpush1.msra.mxu0 0.0
    %2480 = vmatprep.subr.mxu0 0.0
    %2481 = vmatpush1.msra.mxu0 0.0
    %2482 = vmatprep.subr.mxu0 0.0
    %2483 = vmatpush1.msra.mxu0 0.0
    %2484 = vmatprep.subr.mxu0 0.0
    %2485 = vmatpush1.msra.mxu0 0.0
    %2486 = vmatprep.subr.mxu0 0.0
    %2487 = vmatpush1.msra.mxu0 0.0
    %2488 = vmatprep.subr.mxu0 0.0
    %2489 = vmatpush1.msra.mxu0 0.0
    %2490 = vmatprep.subr.mxu0 0.0
    %2491 = vmatpush1.msra.mxu0 0.0
    %2492 = vmatprep.subr.mxu0 0.0
    %2493 = vmatpush1.msra.mxu0 0.0
    %2494 = vmatprep.subr.mxu0 0.0
    %2495 = vmatpush1.msra.mxu0 0.0
    %2496 = vmatprep.subr.mxu0 0.0
    %2497 = vmatpush1.msra.mxu0 0.0
    %2498 = vmatprep.subr.mxu0 0.0
    %2499 = vmatpush1.msra.mxu0 0.0
    %2500 = vmatprep.subr.mxu0 0.0
    %2501 = vmatpush1.msra.mxu0 0.0
    %2502 = vmatprep.subr.mxu0 0.0
    %2503 = vmatpush1.msra.mxu0 0.0
    %2504 = vmatprep.subr.mxu0 0.0
    %2505 = vmatpush1.msra.mxu0 0.0
    %2506 = vmatprep.subr.mxu0 0.0
    %2507 = vmatpush1.msra.mxu0 0.0
    %2508 = vmatprep.subr.mxu0 0.0
    %2509 = vmatpush1.msra.mxu0 0.0
    %2510 = vmatprep.subr.mxu0 0.0
    %2511 = vmatpush1.msra.mxu0 0.0
    %2512 = vmatprep.subr.mxu0 0.0
    %2513 = vmatpush1.msra.mxu0 0.0
    %2514 = vmatprep.subr.mxu0 0.0
    %2515 = vmatpush1.msra.mxu0 0.0
    %2516 = vmatprep.subr.mxu0 0.0
    %2517 = vmatpush1.msra.mxu0 0.0
    %2518 = vmatprep.subr.mxu0 0.0
    %2519 = vmatpush1.msra.mxu0 0.0
    %2520 = vmatprep.subr.mxu0 0.0
    %2521 = vmatpush1.msra.mxu0 0.0
    %2522 = vmatprep.mubr.f32.mxu0 0.0
    %2523 = vmatmul.mubr.f32.gmra.mrb[0].mxu0 %v233
    %v2524 = vpop.f32.mrb[0].mxu0
    %v2525 = vadd.f32 %v2456, %v2524
    %v2526 = vpop.f32.mrb[0].mxu0
    %2527 = vmatprep.mubr.f32.mxu0 0.0
    %2528 = vmatmul.mubr.f32.gmra.mrb[0].mxu0 %v236
    %v2529 = vpop.f32.mrb[0].mxu0
    %v2530 = vadd.f32 %v2456, %v2529
    %v2531 = vpop.f32.mrb[0].mxu0
    %2532 = vmatprep.mubr.f32.mxu0 0.0
    %2533 = vmatmul.mubr.f32.gmra.mrb[0].mxu0 %v239
    %v2534 = vpop.f32.mrb[0].mxu0
    %v2535 = vadd.f32 %v2456, %v2534
    %v2536 = vpop.f32.mrb[0].mxu0
    %2537 = vmatprep.mubr.f32.mxu0 0.0
    %2538 = vmatmul.mubr.f32.gmra.mrb[0].mxu0 %v242
    %v2539 = vpop.f32.mrb[0].mxu0
    %v2540 = vadd.f32 %v2456, %v2539
    %v2541 = vpop.f32.mrb[0].mxu0
    %2542 = vmatprep.mubr.f32.mxu0 0.0
    %2543 = vmatmul.mubr.f32.gmra.mrb[0].mxu0 %v245
    %v2544 = vpop.f32.mrb[0].mxu0
    %v2545 = vadd.f32 %v2456, %v2544
    %v2546 = vpop.f32.mrb[0].mxu0
    %2547 = vmatprep.mubr.f32.mxu0 0.0
    %2548 = vmatmul.mubr.f32.gmra.mrb[0].mxu0 %v248
    %v2549 = vpop.f32.mrb[0].mxu0
    %v2550 = vadd.f32 %v2456, %v2549
    %v2551 = vpop.f32.mrb[0].mxu0
    %2552 = vmatprep.mubr.f32.mxu0 0.0
    %2553 = vmatmul.mubr.f32.gmra.mrb[0].mxu0 %v251
    %v2554 = vpop.f32.mrb[0].mxu0
    %v2555 = vadd.f32 %v2456, %v2554
    %v2556 = vpop.f32.mrb[0].mxu0
    %2557 = vmatprep.mubr.f32.mxu0 0.0
    %2558 = vmatmul.mubr.f32.gmra.mrb[0].mxu0 %v254
    %v2559 = vpop.f32.mrb[0].mxu0
    %v2560 = vadd.f32 %v2456, %v2559
    %v2561 = vpop.f32.mrb[0].mxu0
    %2562 = vdwg.mxu0
    %v2564 = vsel %vm593, %v2289, 0
    %v2567 = vsel %vm593, %v2294, 0
    %v2570 = vsel %vm593, %v2299, 0
    %v2573 = vsel %vm593, %v2304, 0
    %v2576 = vsel %vm593, %v2407, 0
    %v2579 = vsel %vm593, %v2412, 0
    %v2582 = vsel %vm593, %v2417, 0
    %v2585 = vsel %vm593, %v2422, 0
    %2587 = vmatprep.subr.mxu0 0.0
    %2588 = vmatpush1.xpose.msra.mxu0 %v2576
    %2589 = vmatprep.subr.mxu0 0.0
    %2590 = vmatpush1.xpose.msra.mxu0 %v2579
    %2591 = vmatprep.subr.mxu0 0.0
    %2592 = vmatpush1.xpose.msra.mxu0 %v2582
    %2593 = vmatprep.subr.mxu0 0.0
    %2594 = vmatpush1.xpose.msra.mxu0 %v2585
    %2595 = vmatprep.subr.mxu0 0.0
    %2596 = vmatpush1.xpose.msra.mxu0 0.0
    %2597 = vmatprep.subr.mxu0 0.0
    %2598 = vmatpush1.xpose.msra.mxu0 0.0
    %2599 = vmatprep.subr.mxu0 0.0
    %2600 = vmatpush1.xpose.msra.mxu0 0.0
    %2601 = vmatprep.subr.mxu0 0.0
    %2602 = vmatpush1.xpose.msra.mxu0 0.0
    %2603 = vmatprep.subr.mxu0 0.0
    %2604 = vmatpush1.xpose.msra.mxu0 0.0
    %2605 = vmatprep.subr.mxu0 0.0
    %2606 = vmatpush1.xpose.msra.mxu0 0.0
    %2607 = vmatprep.subr.mxu0 0.0
    %2608 = vmatpush1.xpose.msra.mxu0 0.0
    %2609 = vmatprep.subr.mxu0 0.0
    %2610 = vmatpush1.xpose.msra.mxu0 0.0
    %2611 = vmatprep.subr.mxu0 0.0
    %2612 = vmatpush1.xpose.msra.mxu0 0.0
    %2613 = vmatprep.subr.mxu0 0.0
    %2614 = vmatpush1.xpose.msra.mxu0 0.0
    %2615 = vmatprep.subr.mxu0 0.0
    %2616 = vmatpush1.xpose.msra.mxu0 0.0
    %2617 = vmatprep.subr.mxu0 0.0
    %2618 = vmatpush1.xpose.msra.mxu0 0.0
    %2619 = vmatprep.subr.mxu0 0.0
    %2620 = vmatpush1.xpose.msra.mxu0 0.0
    %2621 = vmatprep.subr.mxu0 0.0
    %2622 = vmatpush1.xpose.msra.mxu0 0.0
    %2623 = vmatprep.subr.mxu0 0.0
    %2624 = vmatpush1.xpose.msra.mxu0 0.0
    %2625 = vmatprep.subr.mxu0 0.0
    %2626 = vmatpush1.xpose.msra.mxu0 0.0
    %2627 = vmatprep.subr.mxu0 0.0
    %2628 = vmatpush1.xpose.msra.mxu0 0.0
    %2629 = vmatprep.subr.mxu0 0.0
    %2630 = vmatpush1.xpose.msra.mxu0 0.0
    %2631 = vmatprep.subr.mxu0 0.0
    %2632 = vmatpush1.xpose.msra.mxu0 0.0
    %2633 = vmatprep.subr.mxu0 0.0
    %2634 = vmatpush1.xpose.msra.mxu0 0.0
    %2635 = vmatprep.subr.mxu0 0.0
    %2636 = vmatpush1.xpose.msra.mxu0 0.0
    %2637 = vmatprep.subr.mxu0 0.0
    %2638 = vmatpush1.xpose.msra.mxu0 0.0
    %2639 = vmatprep.subr.mxu0 0.0
    %2640 = vmatpush1.xpose.msra.mxu0 0.0
    %2641 = vmatprep.subr.mxu0 0.0
    %2642 = vmatpush1.xpose.msra.mxu0 0.0
    %2643 = vmatprep.subr.mxu0 0.0
    %2644 = vmatpush1.xpose.msra.mxu0 0.0
    %2645 = vmatprep.subr.mxu0 0.0
    %2646 = vmatpush1.xpose.msra.mxu0 0.0
    %2647 = vmatprep.subr.mxu0 0.0
    %2648 = vmatpush1.xpose.msra.mxu0 0.0
    %2649 = vmatprep.subr.mxu0 0.0
    %2650 = vmatpush1.xpose.msra.mxu0 0.0
    %2651 = vmatprep.mubr.f32.mxu0 0.0
    %2652 = vmatmul.mubr.f32.gmra.mrb[0].mxu0 %v2564
    %v2653 = vpop.f32.mrb[0].mxu0
    %v2654 = vadd.f32 %v81, %v2653
    %v2655 = vpop.f32.mrb[0].mxu0
    %2656 = vmatprep.mubr.f32.mxu0 0.0
    %2657 = vmatmul.mubr.f32.gmra.mrb[0].mxu0 %v2567
    %v2658 = vpop.f32.mrb[0].mxu0
    %v2659 = vadd.f32 %v82, %v2658
    %v2660 = vpop.f32.mrb[0].mxu0
    %2661 = vmatprep.mubr.f32.mxu0 0.0
    %2662 = vmatmul.mubr.f32.gmra.mrb[0].mxu0 %v2570
    %v2663 = vpop.f32.mrb[0].mxu0
    %v2664 = vadd.f32 %v83, %v2663
    %v2665 = vpop.f32.mrb[0].mxu0
    %2666 = vmatprep.mubr.f32.mxu0 0.0
    %2667 = vmatmul.mubr.f32.gmra.mrb[0].mxu0 %v2573
    %v2668 = vpop.f32.mrb[0].mxu0
    %v2669 = vadd.f32 %v84, %v2668
    %v2670 = vpop.f32.mrb[0].mxu0
    %2671 = vdwg.mxu0
    %v2673 = vsel %vm593, %v2309, 0
    %v2676 = vsel %vm593, %v2314, 0
    %v2679 = vsel %vm593, %v2319, 0
    %v2682 = vsel %vm593, %v2324, 0
    %v2685 = vsel %vm593, %v2427, 0
    %v2688 = vsel %vm593, %v2432, 0
    %v2691 = vsel %vm593, %v2437, 0
    %v2694 = vsel %vm593, %v2442, 0
    %2696 = vmatprep.subr.mxu0 0.0
    %2697 = vmatpush1.xpose.msra.mxu0 %v2685
    %2698 = vmatprep.subr.mxu0 0.0
    %2699 = vmatpush1.xpose.msra.mxu0 %v2688
    %2700 = vmatprep.subr.mxu0 0.0
    %2701 = vmatpush1.xpose.msra.mxu0 %v2691
    %2702 = vmatprep.subr.mxu0 0.0
    %2703 = vmatpush1.xpose.msra.mxu0 %v2694
    %2704 = vmatprep.subr.mxu0 0.0
    %2705 = vmatpush1.xpose.msra.mxu0 0.0
    %2706 = vmatprep.subr.mxu0 0.0
    %2707 = vmatpush1.xpose.msra.mxu0 0.0
    %2708 = vmatprep.subr.mxu0 0.0
    %2709 = vmatpush1.xpose.msra.mxu0 0.0
    %2710 = vmatprep.subr.mxu0 0.0
    %2711 = vmatpush1.xpose.msra.mxu0 0.0
    %2712 = vmatprep.subr.mxu0 0.0
    %2713 = vmatpush1.xpose.msra.mxu0 0.0
    %2714 = vmatprep.subr.mxu0 0.0
    %2715 = vmatpush1.xpose.msra.mxu0 0.0
    %2716 = vmatprep.subr.mxu0 0.0
    %2717 = vmatpush1.xpose.msra.mxu0 0.0
    %2718 = vmatprep.subr.mxu0 0.0
    %2719 = vmatpush1.xpose.msra.mxu0 0.0
    %2720 = vmatprep.subr.mxu0 0.0
    %2721 = vmatpush1.xpose.msra.mxu0 0.0
    %2722 = vmatprep.subr.mxu0 0.0
    %2723 = vmatpush1.xpose.msra.mxu0 0.0
    %2724 = vmatprep.subr.mxu0 0.0
    %2725 = vmatpush1.xpose.msra.mxu0 0.0
    %2726 = vmatprep.subr.mxu0 0.0
    %2727 = vmatpush1.xpose.msra.mxu0 0.0
    %2728 = vmatprep.subr.mxu0 0.0
    %2729 = vmatpush1.xpose.msra.mxu0 0.0
    %2730 = vmatprep.subr.mxu0 0.0
    %2731 = vmatpush1.xpose.msra.mxu0 0.0
    %2732 = vmatprep.subr.mxu0 0.0
    %2733 = vmatpush1.xpose.msra.mxu0 0.0
    %2734 = vmatprep.subr.mxu0 0.0
    %2735 = vmatpush1.xpose.msra.mxu0 0.0
    %2736 = vmatprep.subr.mxu0 0.0
    %2737 = vmatpush1.xpose.msra.mxu0 0.0
    %2738 = vmatprep.subr.mxu0 0.0
    %2739 = vmatpush1.xpose.msra.mxu0 0.0
    %2740 = vmatprep.subr.mxu0 0.0
    %2741 = vmatpush1.xpose.msra.mxu0 0.0
    %2742 = vmatprep.subr.mxu0 0.0
    %2743 = vmatpush1.xpose.msra.mxu0 0.0
    %2744 = vmatprep.subr.mxu0 0.0
    %2745 = vmatpush1.xpose.msra.mxu0 0.0
    %2746 = vmatprep.subr.mxu0 0.0
    %2747 = vmatpush1.xpose.msra.mxu0 0.0
    %2748 = vmatprep.subr.mxu0 0.0
    %2749 = vmatpush1.xpose.msra.mxu0 0.0
    %2750 = vmatprep.subr.mxu0 0.0
    %2751 = vmatpush1.xpose.msra.mxu0 0.0
    %2752 = vmatprep.subr.mxu0 0.0
    %2753 = vmatpush1.xpose.msra.mxu0 0.0
    %2754 = vmatprep.subr.mxu0 0.0
    %2755 = vmatpush1.xpose.msra.mxu0 0.0
    %2756 = vmatprep.subr.mxu0 0.0
    %2757 = vmatpush1.xpose.msra.mxu0 0.0
    %2758 = vmatprep.subr.mxu0 0.0
    %2759 = vmatpush1.xpose.msra.mxu0 0.0
    %2760 = vmatprep.mubr.f32.mxu0 0.0
    %2761 = vmatmul.mubr.f32.gmra.mrb[0].mxu0 %v2673
    %v2762 = vpop.f32.mrb[0].mxu0
    %v2763 = vadd.f32 %v81, %v2762
    %v2764 = vpop.f32.mrb[0].mxu0
    %2765 = vmatprep.mubr.f32.mxu0 0.0
    %2766 = vmatmul.mubr.f32.gmra.mrb[0].mxu0 %v2676
    %v2767 = vpop.f32.mrb[0].mxu0
    %v2768 = vadd.f32 %v82, %v2767
    %v2769 = vpop.f32.mrb[0].mxu0
    %2770 = vmatprep.mubr.f32.mxu0 0.0
    %2771 = vmatmul.mubr.f32.gmra.mrb[0].mxu0 %v2679
    %v2772 = vpop.f32.mrb[0].mxu0
    %v2773 = vadd.f32 %v83, %v2772
    %v2774 = vpop.f32.mrb[0].mxu0
    %2775 = vmatprep.mubr.f32.mxu0 0.0
    %2776 = vmatmul.mubr.f32.gmra.mrb[0].mxu0 %v2682
    %v2777 = vpop.f32.mrb[0].mxu0
    %v2778 = vadd.f32 %v84, %v2777
    %v2779 = vpop.f32.mrb[0].mxu0
    %2780 = vdwg.mxu0
    %v2781 = vsel %vm87, %v2654, -inf
    %2782 = vmax.xlane.f32.xlu0 %v2781
    %v2783 = vpop.xlane.xlu0 %2782
    %v2784 = vsel %vm87, %v2659, -inf
    %2785 = vmax.xlane.f32.xlu0 %v2784
    %v2786 = vpop.xlane.xlu0 %2785
    %v2787 = vsel %vm87, %v2664, -inf
    %2788 = vmax.xlane.f32.xlu0 %v2787
    %v2789 = vpop.xlane.xlu0 %2788
    %v2790 = vsel %vm87, %v2669, -inf
    %2791 = vmax.xlane.f32.xlu0 %v2790
    %v2792 = vpop.xlane.xlu0 %2791
    %v2793 = vsel %vm87, %v2763, -inf
    %2794 = vmax.xlane.f32.xlu0 %v2793
    %v2795 = vpop.xlane.xlu0 %2794
    %v2796 = vsel %vm87, %v2768, -inf
    %2797 = vmax.xlane.f32.xlu0 %v2796
    %v2798 = vpop.xlane.xlu0 %2797
    %v2799 = vsel %vm87, %v2773, -inf
    %2800 = vmax.xlane.f32.xlu0 %v2799
    %v2801 = vpop.xlane.xlu0 %2800
    %v2802 = vsel %vm87, %v2778, -inf
    %2803 = vmax.xlane.f32.xlu0 %v2802
    %v2804 = vpop.xlane.xlu0 %2803
    %v2805 = vsub.f32 %v2654, %v2783
    %v2806 = vsub.f32 %v2659, %v2786
    %v2807 = vsub.f32 %v2664, %v2789
    %v2808 = vsub.f32 %v2669, %v2792
    %v2809 = vsub.f32 %v2763, %v2795
    %v2810 = vsub.f32 %v2768, %v2798
    %v2811 = vsub.f32 %v2773, %v2801
    %v2812 = vsub.f32 %v2778, %v2804
    %v2813 = vmul.f32 %v2805, 1.442695
    %v2814 = vpow.pop %v2813
    %v2815 = vmul.f32 %v2806, 1.442695
    %v2816 = vpow.pop %v2815
    %v2817 = vmul.f32 %v2807, 1.442695
    %v2818 = vpow.pop %v2817
    %v2819 = vmul.f32 %v2808, 1.442695
    %v2820 = vpow.pop %v2819
    %v2821 = vmul.f32 %v2809, 1.442695
    %v2822 = vpow.pop %v2821
    %v2823 = vmul.f32 %v2810, 1.442695
    %v2824 = vpow.pop %v2823
    %v2825 = vmul.f32 %v2811, 1.442695
    %v2826 = vpow.pop %v2825
    %v2827 = vmul.f32 %v2812, 1.442695
    %v2828 = vpow.pop %v2827
    %v2829 = vsel %vm87, %v2814, 0.0
    %2830 = vadd.xlane.f32.xlu0 %v2829
    %v2831 = vpop.xlane.xlu0 %2830
    %v2832 = vsel %vm87, %v2816, 0.0
    %2833 = vadd.xlane.f32.xlu0 %v2832
    %v2834 = vpop.xlane.xlu0 %2833
    %v2835 = vsel %vm87, %v2818, 0.0
    %2836 = vadd.xlane.f32.xlu0 %v2835
    %v2837 = vpop.xlane.xlu0 %2836
    %v2838 = vsel %vm87, %v2820, 0.0
    %2839 = vadd.xlane.f32.xlu0 %v2838
    %v2840 = vpop.xlane.xlu0 %2839
    %v2841 = vsel %vm87, %v2822, 0.0
    %2842 = vadd.xlane.f32.xlu0 %v2841
    %v2843 = vpop.xlane.xlu0 %2842
    %v2844 = vsel %vm87, %v2824, 0.0
    %2845 = vadd.xlane.f32.xlu0 %v2844
    %v2846 = vpop.xlane.xlu0 %2845
    %v2847 = vsel %vm87, %v2826, 0.0
    %2848 = vadd.xlane.f32.xlu0 %v2847
    %v2849 = vpop.xlane.xlu0 %2848
    %v2850 = vsel %vm87, %v2828, 0.0
    %2851 = vadd.xlane.f32.xlu0 %v2850
    %v2852 = vpop.xlane.xlu0 %2851
    %v2854 = vsel %vm87, %v2814, 0
    %v2857 = vsel %vm87, %v2816, 0
    %v2860 = vsel %vm87, %v2818, 0
    %v2863 = vsel %vm87, %v2820, 0
    %2865 = vmatprep.subr.mxu0 0.0
    %2866 = vmatpush1.msra.mxu0 %v2525
    %2867 = vmatprep.subr.mxu0 0.0
    %2868 = vmatpush1.msra.mxu0 %v2530
    %2869 = vmatprep.subr.mxu0 0.0
    %2870 = vmatpush1.msra.mxu0 %v2535
    %2871 = vmatprep.subr.mxu0 0.0
    %2872 = vmatpush1.msra.mxu0 %v2540
    %2873 = vmatprep.subr.mxu0 0.0
    %2874 = vmatpush1.msra.mxu0 0.0
    %2875 = vmatprep.subr.mxu0 0.0
    %2876 = vmatpush1.msra.mxu0 0.0
    %2877 = vmatprep.subr.mxu0 0.0
    %2878 = vmatpush1.msra.mxu0 0.0
    %2879 = vmatprep.subr.mxu0 0.0
    %2880 = vmatpush1.msra.mxu0 0.0
    %2881 = vmatprep.subr.mxu0 0.0
    %2882 = vmatpush1.msra.mxu0 0.0
    %2883 = vmatprep.subr.mxu0 0.0
    %2884 = vmatpush1.msra.mxu0 0.0
    %2885 = vmatprep.subr.mxu0 0.0
    %2886 = vmatpush1.msra.mxu0 0.0
    %2887 = vmatprep.subr.mxu0 0.0
    %2888 = vmatpush1.msra.mxu0 0.0
    %2889 = vmatprep.subr.mxu0 0.0
    %2890 = vmatpush1.msra.mxu0 0.0
    %2891 = vmatprep.subr.mxu0 0.0
    %2892 = vmatpush1.msra.mxu0 0.0
    %2893 = vmatprep.subr.mxu0 0.0
    %2894 = vmatpush1.msra.mxu0 0.0
    %2895 = vmatprep.subr.mxu0 0.0
    %2896 = vmatpush1.msra.mxu0 0.0
    %2897 = vmatprep.subr.mxu0 0.0
    %2898 = vmatpush1.msra.mxu0 0.0
    %2899 = vmatprep.subr.mxu0 0.0
    %2900 = vmatpush1.msra.mxu0 0.0
    %2901 = vmatprep.subr.mxu0 0.0
    %2902 = vmatpush1.msra.mxu0 0.0
    %2903 = vmatprep.subr.mxu0 0.0
    %2904 = vmatpush1.msra.mxu0 0.0
    %2905 = vmatprep.subr.mxu0 0.0
    %2906 = vmatpush1.msra.mxu0 0.0
    %2907 = vmatprep.subr.mxu0 0.0
    %2908 = vmatpush1.msra.mxu0 0.0
    %2909 = vmatprep.subr.mxu0 0.0
    %2910 = vmatpush1.msra.mxu0 0.0
    %2911 = vmatprep.subr.mxu0 0.0
    %2912 = vmatpush1.msra.mxu0 0.0
    %2913 = vmatprep.subr.mxu0 0.0
    %2914 = vmatpush1.msra.mxu0 0.0
    %2915 = vmatprep.subr.mxu0 0.0
    %2916 = vmatpush1.msra.mxu0 0.0
    %2917 = vmatprep.subr.mxu0 0.0
    %2918 = vmatpush1.msra.mxu0 0.0
    %2919 = vmatprep.subr.mxu0 0.0
    %2920 = vmatpush1.msra.mxu0 0.0
    %2921 = vmatprep.subr.mxu0 0.0
    %2922 = vmatpush1.msra.mxu0 0.0
    %2923 = vmatprep.subr.mxu0 0.0
    %2924 = vmatpush1.msra.mxu0 0.0
    %2925 = vmatprep.subr.mxu0 0.0
    %2926 = vmatpush1.msra.mxu0 0.0
    %2927 = vmatprep.subr.mxu0 0.0
    %2928 = vmatpush1.msra.mxu0 0.0
    %2929 = vmatprep.mubr.f32.mxu0 0.0
    %2930 = vmatmul.mubr.f32.gmra.mrb[0].mxu0 %v2854
    %v2931 = vpop.f32.mrb[0].mxu0
    %v2932 = vadd.f32 0.0, %v2931
    %v2933 = vpop.f32.mrb[0].mxu0
    %2934 = vmatprep.mubr.f32.mxu0 0.0
    %2935 = vmatmul.mubr.f32.gmra.mrb[0].mxu0 %v2857
    %v2936 = vpop.f32.mrb[0].mxu0
    %v2937 = vadd.f32 0.0, %v2936
    %v2938 = vpop.f32.mrb[0].mxu0
    %2939 = vmatprep.mubr.f32.mxu0 0.0
    %2940 = vmatmul.mubr.f32.gmra.mrb[0].mxu0 %v2860
    %v2941 = vpop.f32.mrb[0].mxu0
    %v2942 = vadd.f32 0.0, %v2941
    %v2943 = vpop.f32.mrb[0].mxu0
    %2944 = vmatprep.mubr.f32.mxu0 0.0
    %2945 = vmatmul.mubr.f32.gmra.mrb[0].mxu0 %v2863
    %v2946 = vpop.f32.mrb[0].mxu0
    %v2947 = vadd.f32 0.0, %v2946
    %v2948 = vpop.f32.mrb[0].mxu0
    %2949 = vdwg.mxu0
    %v2951 = vsel %vm87, %v2822, 0
    %v2954 = vsel %vm87, %v2824, 0
    %v2957 = vsel %vm87, %v2826, 0
    %v2960 = vsel %vm87, %v2828, 0
    %2962 = vmatprep.subr.mxu0 0.0
    %2963 = vmatpush1.msra.mxu0 %v2545
    %2964 = vmatprep.subr.mxu0 0.0
    %2965 = vmatpush1.msra.mxu0 %v2550
    %2966 = vmatprep.subr.mxu0 0.0
    %2967 = vmatpush1.msra.mxu0 %v2555
    %2968 = vmatprep.subr.mxu0 0.0
    %2969 = vmatpush1.msra.mxu0 %v2560
    %2970 = vmatprep.subr.mxu0 0.0
    %2971 = vmatpush1.msra.mxu0 0.0
    %2972 = vmatprep.subr.mxu0 0.0
    %2973 = vmatpush1.msra.mxu0 0.0
    %2974 = vmatprep.subr.mxu0 0.0
    %2975 = vmatpush1.msra.mxu0 0.0
    %2976 = vmatprep.subr.mxu0 0.0
    %2977 = vmatpush1.msra.mxu0 0.0
    %2978 = vmatprep.subr.mxu0 0.0
    %2979 = vmatpush1.msra.mxu0 0.0
    %2980 = vmatprep.subr.mxu0 0.0
    %2981 = vmatpush1.msra.mxu0 0.0
    %2982 = vmatprep.subr.mxu0 0.0
    %2983 = vmatpush1.msra.mxu0 0.0
    %2984 = vmatprep.subr.mxu0 0.0
    %2985 = vmatpush1.msra.mxu0 0.0
    %2986 = vmatprep.subr.mxu0 0.0
    %2987 = vmatpush1.msra.mxu0 0.0
    %2988 = vmatprep.subr.mxu0 0.0
    %2989 = vmatpush1.msra.mxu0 0.0
    %2990 = vmatprep.subr.mxu0 0.0
    %2991 = vmatpush1.msra.mxu0 0.0
    %2992 = vmatprep.subr.mxu0 0.0
    %2993 = vmatpush1.msra.mxu0 0.0
    %2994 = vmatprep.subr.mxu0 0.0
    %2995 = vmatpush1.msra.mxu0 0.0
    %2996 = vmatprep.subr.mxu0 0.0
    %2997 = vmatpush1.msra.mxu0 0.0
    %2998 = vmatprep.subr.mxu0 0.0
    %2999 = vmatpush1.msra.mxu0 0.0
    %3000 = vmatprep.subr.mxu0 0.0
    %3001 = vmatpush1.msra.mxu0 0.0
    %3002 = vmatprep.subr.mxu0 0.0
    %3003 = vmatpush1.msra.mxu0 0.0
    %3004 = vmatprep.subr.mxu0 0.0
    %3005 = vmatpush1.msra.mxu0 0.0
    %3006 = vmatprep.subr.mxu0 0.0
    %3007 = vmatpush1.msra.mxu0 0.0
    %3008 = vmatprep.subr.mxu0 0.0
    %3009 = vmatpush1.msra.mxu0 0.0
    %3010 = vmatprep.subr.mxu0 0.0
    %3011 = vmatpush1.msra.mxu0 0.0
    %3012 = vmatprep.subr.mxu0 0.0
    %3013 = vmatpush1.msra.mxu0 0.0
    %3014 = vmatprep.subr.mxu0 0.0
    %3015 = vmatpush1.msra.mxu0 0.0
    %3016 = vmatprep.subr.mxu0 0.0
    %3017 = vmatpush1.msra.mxu0 0.0
    %3018 = vmatprep.subr.mxu0 0.0
    %3019 = vmatpush1.msra.mxu0 0.0
    %3020 = vmatprep.subr.mxu0 0.0
    %3021 = vmatpush1.msra.mxu0 0.0
    %3022 = vmatprep.subr.mxu0 0.0
    %3023 = vmatpush1.msra.mxu0 0.0
    %3024 = vmatprep.subr.mxu0 0.0
    %3025 = vmatpush1.msra.mxu0 0.0
    %3026 = vmatprep.mubr.f32.mxu0 0.0
    %3027 = vmatmul.mubr.f32.gmra.mrb[0].mxu0 %v2951
    %v3028 = vpop.f32.mrb[0].mxu0
    %v3029 = vadd.f32 0.0, %v3028
    %v3030 = vpop.f32.mrb[0].mxu0
    %3031 = vmatprep.mubr.f32.mxu0 0.0
    %3032 = vmatmul.mubr.f32.gmra.mrb[0].mxu0 %v2954
    %v3033 = vpop.f32.mrb[0].mxu0
    %v3034 = vadd.f32 0.0, %v3033
    %v3035 = vpop.f32.mrb[0].mxu0
    %3036 = vmatprep.mubr.f32.mxu0 0.0
    %3037 = vmatmul.mubr.f32.gmra.mrb[0].mxu0 %v2957
    %v3038 = vpop.f32.mrb[0].mxu0
    %v3039 = vadd.f32 0.0, %v3038
    %v3040 = vpop.f32.mrb[0].mxu0
    %3041 = vmatprep.mubr.f32.mxu0 0.0
    %3042 = vmatmul.mubr.f32.gmra.mrb[0].mxu0 %v2960
    %v3043 = vpop.f32.mrb[0].mxu0
    %v3044 = vadd.f32 0.0, %v3043
    %v3045 = vpop.f32.mrb[0].mxu0
    %3046 = vdwg.mxu0
    %v3047 = vrcp.pop %v2831
    %v3048 = vrcp.pop %v2834
    %v3049 = vrcp.pop %v2837
    %v3050 = vrcp.pop %v2840
    %v3051 = vrcp.pop %v2843
    %v3052 = vrcp.pop %v2846
    %v3053 = vrcp.pop %v2849
    %v3054 = vrcp.pop %v2852
    %v3055 = vmul.f32 %v2932, %v3047
    %v3056 = vmul.f32 %v2937, %v3048
    %v3057 = vmul.f32 %v2942, %v3049
    %v3058 = vmul.f32 %v2947, %v3050
    %v3059 = vmul.f32 %v3029, %v3051
    %v3060 = vmul.f32 %v3034, %v3052
    %v3061 = vmul.f32 %v3039, %v3053
    %v3062 = vmul.f32 %v3044, %v3054
    %s3063 = scalar_lea.vmem %s9, 16
    %v3064 = vld [vmem:[%s3063] sm:$0xff]
    %v3066 = vsel %vm593, %v3055, 0
    %v3069 = vsel %vm593, %v3056, 0
    %v3072 = vsel %vm593, %v3057, 0
    %v3075 = vsel %vm593, %v3058, 0
    %v3078 = vsel %vm593, %v3059, 0
    %v3081 = vsel %vm593, %v3060, 0
    %v3084 = vsel %vm593, %v3061, 0
    %v3087 = vsel %vm593, %v3062, 0
    %3089 = vmatprep.subr.mxu0 0.0
    %3090 = vmatpush1.msra.mxu0 %v3064
    %3091 = vmatprep.subr.mxu0 0.0
    %3092 = vmatpush1.msra.mxu0 0.0
    %3093 = vmatprep.subr.mxu0 0.0
    %3094 = vmatpush1.msra.mxu0 0.0
    %3095 = vmatprep.subr.mxu0 0.0
    %3096 = vmatpush1.msra.mxu0 0.0
    %3097 = vmatprep.subr.mxu0 0.0
    %3098 = vmatpush1.msra.mxu0 0.0
    %3099 = vmatprep.subr.mxu0 0.0
    %3100 = vmatpush1.msra.mxu0 0.0
    %3101 = vmatprep.subr.mxu0 0.0
    %3102 = vmatpush1.msra.mxu0 0.0
    %3103 = vmatprep.subr.mxu0 0.0
    %3104 = vmatpush1.msra.mxu0 0.0
    %3105 = vmatprep.subr.mxu0 0.0
    %3106 = vmatpush1.msra.mxu0 0.0
    %3107 = vmatprep.subr.mxu0 0.0
    %3108 = vmatpush1.msra.mxu0 0.0
    %3109 = vmatprep.subr.mxu0 0.0
    %3110 = vmatpush1.msra.mxu0 0.0
    %3111 = vmatprep.subr.mxu0 0.0
    %3112 = vmatpush1.msra.mxu0 0.0
    %3113 = vmatprep.subr.mxu0 0.0
    %3114 = vmatpush1.msra.mxu0 0.0
    %3115 = vmatprep.subr.mxu0 0.0
    %3116 = vmatpush1.msra.mxu0 0.0
    %3117 = vmatprep.subr.mxu0 0.0
    %3118 = vmatpush1.msra.mxu0 0.0
    %3119 = vmatprep.subr.mxu0 0.0
    %3120 = vmatpush1.msra.mxu0 0.0
    %3121 = vmatprep.subr.mxu0 0.0
    %3122 = vmatpush1.msra.mxu0 0.0
    %3123 = vmatprep.subr.mxu0 0.0
    %3124 = vmatpush1.msra.mxu0 0.0
    %3125 = vmatprep.subr.mxu0 0.0
    %3126 = vmatpush1.msra.mxu0 0.0
    %3127 = vmatprep.subr.mxu0 0.0
    %3128 = vmatpush1.msra.mxu0 0.0
    %3129 = vmatprep.subr.mxu0 0.0
    %3130 = vmatpush1.msra.mxu0 0.0
    %3131 = vmatprep.subr.mxu0 0.0
    %3132 = vmatpush1.msra.mxu0 0.0
    %3133 = vmatprep.subr.mxu0 0.0
    %3134 = vmatpush1.msra.mxu0 0.0
    %3135 = vmatprep.subr.mxu0 0.0
    %3136 = vmatpush1.msra.mxu0 0.0
    %3137 = vmatprep.subr.mxu0 0.0
    %3138 = vmatpush1.msra.mxu0 0.0
    %3139 = vmatprep.subr.mxu0 0.0
    %3140 = vmatpush1.msra.mxu0 0.0
    %3141 = vmatprep.subr.mxu0 0.0
    %3142 = vmatpush1.msra.mxu0 0.0
    %3143 = vmatprep.subr.mxu0 0.0
    %3144 = vmatpush1.msra.mxu0 0.0
    %3145 = vmatprep.subr.mxu0 0.0
    %3146 = vmatpush1.msra.mxu0 0.0
    %3147 = vmatprep.subr.mxu0 0.0
    %3148 = vmatpush1.msra.mxu0 0.0
    %3149 = vmatprep.subr.mxu0 0.0
    %3150 = vmatpush1.msra.mxu0 0.0
    %3151 = vmatprep.subr.mxu0 0.0
    %3152 = vmatpush1.msra.mxu0 0.0
    %3153 = vmatprep.mubr.f32.mxu0 0.0
    %3154 = vmatmul.mubr.f32.gmra.mrb[0].mxu0 %v3066
    %v3155 = vpop.f32.mrb[0].mxu0
    %v3156 = vadd.f32 0.0, %v3155
    %v3157 = vpop.f32.mrb[0].mxu0
    %3158 = vmatprep.mubr.f32.mxu0 0.0
    %3159 = vmatmul.mubr.f32.gmra.mrb[0].mxu0 %v3069
    %v3160 = vpop.f32.mrb[0].mxu0
    %v3161 = vadd.f32 0.0, %v3160
    %v3162 = vpop.f32.mrb[0].mxu0
    %3163 = vmatprep.mubr.f32.mxu0 0.0
    %3164 = vmatmul.mubr.f32.gmra.mrb[0].mxu0 %v3072
    %v3165 = vpop.f32.mrb[0].mxu0
    %v3166 = vadd.f32 0.0, %v3165
    %v3167 = vpop.f32.mrb[0].mxu0
    %3168 = vmatprep.mubr.f32.mxu0 0.0
    %3169 = vmatmul.mubr.f32.gmra.mrb[0].mxu0 %v3075
    %v3170 = vpop.f32.mrb[0].mxu0
    %v3171 = vadd.f32 0.0, %v3170
    %v3172 = vpop.f32.mrb[0].mxu0
    %3173 = vmatprep.mubr.f32.mxu0 0.0
    %3174 = vmatmul.mubr.f32.gmra.mrb[0].mxu0 %v3078
    %v3175 = vpop.f32.mrb[0].mxu0
    %v3176 = vadd.f32 0.0, %v3175
    %v3177 = vpop.f32.mrb[0].mxu0
    %3178 = vmatprep.mubr.f32.mxu0 0.0
    %3179 = vmatmul.mubr.f32.gmra.mrb[0].mxu0 %v3081
    %v3180 = vpop.f32.mrb[0].mxu0
    %v3181 = vadd.f32 0.0, %v3180
    %v3182 = vpop.f32.mrb[0].mxu0
    %3183 = vmatprep.mubr.f32.mxu0 0.0
    %3184 = vmatmul.mubr.f32.gmra.mrb[0].mxu0 %v3084
    %v3185 = vpop.f32.mrb[0].mxu0
    %v3186 = vadd.f32 0.0, %v3185
    %v3187 = vpop.f32.mrb[0].mxu0
    %3188 = vmatprep.mubr.f32.mxu0 0.0
    %3189 = vmatmul.mubr.f32.gmra.mrb[0].mxu0 %v3087
    %v3190 = vpop.f32.mrb[0].mxu0
    %v3191 = vadd.f32 0.0, %v3190
    %v3192 = vpop.f32.mrb[0].mxu0
    %3193 = vdwg.mxu0
    %v3194 = vadd.f32 %v2171, %v3156
    %v3195 = vadd.f32 %v2176, %v3161
    %v3196 = vadd.f32 %v2181, %v3166
    %v3197 = vadd.f32 %v2186, %v3171
    %v3198 = vadd.f32 %v2191, %v3176
    %v3199 = vadd.f32 %v2196, %v3181
    %v3200 = vadd.f32 %v2201, %v3186
    %v3201 = vadd.f32 %v2206, %v3191
    %s3202 = scalar_lea.vmem %s3, 96
    %v3203 = vld [vmem:[%s3202] sm:$0xff]
    %v3204 = vld [vmem:[%s3202 + $0x8] sm:$0xff]
    %v3205 = vld [vmem:[%s3202 + $0x10] sm:$0xff]
    %v3206 = vld [vmem:[%s3202 + $0x18] sm:$0xff]
    %s3207 = scalar_lea.vmem %s4, 3
    %v3208 = vld [vmem:[%s3207] sm:$0x1]
    %v3210 = vlaneseq
    %v3211 = vshrl.u32 %v3210, 7
    %v3212 = vsub.s32 0, %v3211
    %v3213 = vrot.slane %v3208, %v3212
    %3215 = vmatprep.subr.mxu0 0.0
    %3216 = vmatpush1.msra.mxu0 %v3203
    %3217 = vmatprep.subr.mxu0 0.0
    %3218 = vmatpush1.msra.mxu0 %v3204
    %3219 = vmatprep.subr.mxu0 0.0
    %3220 = vmatpush1.msra.mxu0 %v3205
    %3221 = vmatprep.subr.mxu0 0.0
    %3222 = vmatpush1.msra.mxu0 %v3206
    %3223 = vmatprep.subr.mxu0 0.0
    %3224 = vmatpush1.msra.mxu0 0.0
    %3225 = vmatprep.subr.mxu0 0.0
    %3226 = vmatpush1.msra.mxu0 0.0
    %3227 = vmatprep.subr.mxu0 0.0
    %3228 = vmatpush1.msra.mxu0 0.0
    %3229 = vmatprep.subr.mxu0 0.0
    %3230 = vmatpush1.msra.mxu0 0.0
    %3231 = vmatprep.subr.mxu0 0.0
    %3232 = vmatpush1.msra.mxu0 0.0
    %3233 = vmatprep.subr.mxu0 0.0
    %3234 = vmatpush1.msra.mxu0 0.0
    %3235 = vmatprep.subr.mxu0 0.0
    %3236 = vmatpush1.msra.mxu0 0.0
    %3237 = vmatprep.subr.mxu0 0.0
    %3238 = vmatpush1.msra.mxu0 0.0
    %3239 = vmatprep.subr.mxu0 0.0
    %3240 = vmatpush1.msra.mxu0 0.0
    %3241 = vmatprep.subr.mxu0 0.0
    %3242 = vmatpush1.msra.mxu0 0.0
    %3243 = vmatprep.subr.mxu0 0.0
    %3244 = vmatpush1.msra.mxu0 0.0
    %3245 = vmatprep.subr.mxu0 0.0
    %3246 = vmatpush1.msra.mxu0 0.0
    %3247 = vmatprep.subr.mxu0 0.0
    %3248 = vmatpush1.msra.mxu0 0.0
    %3249 = vmatprep.subr.mxu0 0.0
    %3250 = vmatpush1.msra.mxu0 0.0
    %3251 = vmatprep.subr.mxu0 0.0
    %3252 = vmatpush1.msra.mxu0 0.0
    %3253 = vmatprep.subr.mxu0 0.0
    %3254 = vmatpush1.msra.mxu0 0.0
    %3255 = vmatprep.subr.mxu0 0.0
    %3256 = vmatpush1.msra.mxu0 0.0
    %3257 = vmatprep.subr.mxu0 0.0
    %3258 = vmatpush1.msra.mxu0 0.0
    %3259 = vmatprep.subr.mxu0 0.0
    %3260 = vmatpush1.msra.mxu0 0.0
    %3261 = vmatprep.subr.mxu0 0.0
    %3262 = vmatpush1.msra.mxu0 0.0
    %3263 = vmatprep.subr.mxu0 0.0
    %3264 = vmatpush1.msra.mxu0 0.0
    %3265 = vmatprep.subr.mxu0 0.0
    %3266 = vmatpush1.msra.mxu0 0.0
    %3267 = vmatprep.subr.mxu0 0.0
    %3268 = vmatpush1.msra.mxu0 0.0
    %3269 = vmatprep.subr.mxu0 0.0
    %3270 = vmatpush1.msra.mxu0 0.0
    %3271 = vmatprep.subr.mxu0 0.0
    %3272 = vmatpush1.msra.mxu0 0.0
    %3273 = vmatprep.subr.mxu0 0.0
    %3274 = vmatpush1.msra.mxu0 0.0
    %3275 = vmatprep.subr.mxu0 0.0
    %3276 = vmatpush1.msra.mxu0 0.0
    %3277 = vmatprep.subr.mxu0 0.0
    %3278 = vmatpush1.msra.mxu0 0.0
    %3279 = vmatprep.mubr.f32.mxu0 0.0
    %3280 = vmatmul.mubr.f32.gmra.mrb[0].mxu0 %v233
    %v3281 = vpop.f32.mrb[0].mxu0
    %v3282 = vadd.f32 %v3213, %v3281
    %v3283 = vpop.f32.mrb[0].mxu0
    %3284 = vmatprep.mubr.f32.mxu0 0.0
    %3285 = vmatmul.mubr.f32.gmra.mrb[0].mxu0 %v236
    %v3286 = vpop.f32.mrb[0].mxu0
    %v3287 = vadd.f32 %v3213, %v3286
    %v3288 = vpop.f32.mrb[0].mxu0
    %3289 = vmatprep.mubr.f32.mxu0 0.0
    %3290 = vmatmul.mubr.f32.gmra.mrb[0].mxu0 %v239
    %v3291 = vpop.f32.mrb[0].mxu0
    %v3292 = vadd.f32 %v3213, %v3291
    %v3293 = vpop.f32.mrb[0].mxu0
    %3294 = vmatprep.mubr.f32.mxu0 0.0
    %3295 = vmatmul.mubr.f32.gmra.mrb[0].mxu0 %v242
    %v3296 = vpop.f32.mrb[0].mxu0
    %v3297 = vadd.f32 %v3213, %v3296
    %v3298 = vpop.f32.mrb[0].mxu0
    %3299 = vmatprep.mubr.f32.mxu0 0.0
    %3300 = vmatmul.mubr.f32.gmra.mrb[0].mxu0 %v245
    %v3301 = vpop.f32.mrb[0].mxu0
    %v3302 = vadd.f32 %v3213, %v3301
    %v3303 = vpop.f32.mrb[0].mxu0
    %3304 = vmatprep.mubr.f32.mxu0 0.0
    %3305 = vmatmul.mubr.f32.gmra.mrb[0].mxu0 %v248
    %v3306 = vpop.f32.mrb[0].mxu0
    %v3307 = vadd.f32 %v3213, %v3306
    %v3308 = vpop.f32.mrb[0].mxu0
    %3309 = vmatprep.mubr.f32.mxu0 0.0
    %3310 = vmatmul.mubr.f32.gmra.mrb[0].mxu0 %v251
    %v3311 = vpop.f32.mrb[0].mxu0
    %v3312 = vadd.f32 %v3213, %v3311
    %v3313 = vpop.f32.mrb[0].mxu0
    %3314 = vmatprep.mubr.f32.mxu0 0.0
    %3315 = vmatmul.mubr.f32.gmra.mrb[0].mxu0 %v254
    %v3316 = vpop.f32.mrb[0].mxu0
    %v3317 = vadd.f32 %v3213, %v3316
    %v3318 = vpop.f32.mrb[0].mxu0
    %3319 = vdwg.mxu0
    %s3320 = scalar_lea.vmem %s5, 96
    %v3321 = vld [vmem:[%s3320] sm:$0xff]
    %v3322 = vld [vmem:[%s3320 + $0x8] sm:$0xff]
    %v3323 = vld [vmem:[%s3320 + $0x10] sm:$0xff]
    %v3324 = vld [vmem:[%s3320 + $0x18] sm:$0xff]
    %s3325 = scalar_lea.vmem %s6, 3
    %v3326 = vld [vmem:[%s3325] sm:$0x1]
    %v3328 = vlaneseq
    %v3329 = vshrl.u32 %v3328, 7
    %v3330 = vsub.s32 0, %v3329
    %v3331 = vrot.slane %v3326, %v3330
    %3333 = vmatprep.subr.mxu0 0.0
    %3334 = vmatpush1.msra.mxu0 %v3321
    %3335 = vmatprep.subr.mxu0 0.0
    %3336 = vmatpush1.msra.mxu0 %v3322
    %3337 = vmatprep.subr.mxu0 0.0
    %3338 = vmatpush1.msra.mxu0 %v3323
    %3339 = vmatprep.subr.mxu0 0.0
    %3340 = vmatpush1.msra.mxu0 %v3324
    %3341 = vmatprep.subr.mxu0 0.0
    %3342 = vmatpush1.msra.mxu0 0.0
    %3343 = vmatprep.subr.mxu0 0.0
    %3344 = vmatpush1.msra.mxu0 0.0
    %3345 = vmatprep.subr.mxu0 0.0
    %3346 = vmatpush1.msra.mxu0 0.0
    %3347 = vmatprep.subr.mxu0 0.0
    %3348 = vmatpush1.msra.mxu0 0.0
    %3349 = vmatprep.subr.mxu0 0.0
    %3350 = vmatpush1.msra.mxu0 0.0
    %3351 = vmatprep.subr.mxu0 0.0
    %3352 = vmatpush1.msra.mxu0 0.0
    %3353 = vmatprep.subr.mxu0 0.0
    %3354 = vmatpush1.msra.mxu0 0.0
    %3355 = vmatprep.subr.mxu0 0.0
    %3356 = vmatpush1.msra.mxu0 0.0
    %3357 = vmatprep.subr.mxu0 0.0
    %3358 = vmatpush1.msra.mxu0 0.0
    %3359 = vmatprep.subr.mxu0 0.0
    %3360 = vmatpush1.msra.mxu0 0.0
    %3361 = vmatprep.subr.mxu0 0.0
    %3362 = vmatpush1.msra.mxu0 0.0
    %3363 = vmatprep.subr.mxu0 0.0
    %3364 = vmatpush1.msra.mxu0 0.0
    %3365 = vmatprep.subr.mxu0 0.0
    %3366 = vmatpush1.msra.mxu0 0.0
    %3367 = vmatprep.subr.mxu0 0.0
    %3368 = vmatpush1.msra.mxu0 0.0
    %3369 = vmatprep.subr.mxu0 0.0
    %3370 = vmatpush1.msra.mxu0 0.0
    %3371 = vmatprep.subr.mxu0 0.0
    %3372 = vmatpush1.msra.mxu0 0.0
    %3373 = vmatprep.subr.mxu0 0.0
    %3374 = vmatpush1.msra.mxu0 0.0
    %3375 = vmatprep.subr.mxu0 0.0
    %3376 = vmatpush1.msra.mxu0 0.0
    %3377 = vmatprep.subr.mxu0 0.0
    %3378 = vmatpush1.msra.mxu0 0.0
    %3379 = vmatprep.subr.mxu0 0.0
    %3380 = vmatpush1.msra.mxu0 0.0
    %3381 = vmatprep.subr.mxu0 0.0
    %3382 = vmatpush1.msra.mxu0 0.0
    %3383 = vmatprep.subr.mxu0 0.0
    %3384 = vmatpush1.msra.mxu0 0.0
    %3385 = vmatprep.subr.mxu0 0.0
    %3386 = vmatpush1.msra.mxu0 0.0
    %3387 = vmatprep.subr.mxu0 0.0
    %3388 = vmatpush1.msra.mxu0 0.0
    %3389 = vmatprep.subr.mxu0 0.0
    %3390 = vmatpush1.msra.mxu0 0.0
    %3391 = vmatprep.subr.mxu0 0.0
    %3392 = vmatpush1.msra.mxu0 0.0
    %3393 = vmatprep.subr.mxu0 0.0
    %3394 = vmatpush1.msra.mxu0 0.0
    %3395 = vmatprep.subr.mxu0 0.0
    %3396 = vmatpush1.msra.mxu0 0.0
    %3397 = vmatprep.mubr.f32.mxu0 0.0
    %3398 = vmatmul.mubr.f32.gmra.mrb[0].mxu0 %v233
    %v3399 = vpop.f32.mrb[0].mxu0
    %v3400 = vadd.f32 %v3331, %v3399
    %v3401 = vpop.f32.mrb[0].mxu0
    %3402 = vmatprep.mubr.f32.mxu0 0.0
    %3403 = vmatmul.mubr.f32.gmra.mrb[0].mxu0 %v236
    %v3404 = vpop.f32.mrb[0].mxu0
    %v3405 = vadd.f32 %v3331, %v3404
    %v3406 = vpop.f32.mrb[0].mxu0
    %3407 = vmatprep.mubr.f32.mxu0 0.0
    %3408 = vmatmul.mubr.f32.gmra.mrb[0].mxu0 %v239
    %v3409 = vpop.f32.mrb[0].mxu0
    %v3410 = vadd.f32 %v3331, %v3409
    %v3411 = vpop.f32.mrb[0].mxu0
    %3412 = vmatprep.mubr.f32.mxu0 0.0
    %3413 = vmatmul.mubr.f32.gmra.mrb[0].mxu0 %v242
    %v3414 = vpop.f32.mrb[0].mxu0
    %v3415 = vadd.f32 %v3331, %v3414
    %v3416 = vpop.f32.mrb[0].mxu0
    %3417 = vmatprep.mubr.f32.mxu0 0.0
    %3418 = vmatmul.mubr.f32.gmra.mrb[0].mxu0 %v245
    %v3419 = vpop.f32.mrb[0].mxu0
    %v3420 = vadd.f32 %v3331, %v3419
    %v3421 = vpop.f32.mrb[0].mxu0
    %3422 = vmatprep.mubr.f32.mxu0 0.0
    %3423 = vmatmul.mubr.f32.gmra.mrb[0].mxu0 %v248
    %v3424 = vpop.f32.mrb[0].mxu0
    %v3425 = vadd.f32 %v3331, %v3424
    %v3426 = vpop.f32.mrb[0].mxu0
    %3427 = vmatprep.mubr.f32.mxu0 0.0
    %3428 = vmatmul.mubr.f32.gmra.mrb[0].mxu0 %v251
    %v3429 = vpop.f32.mrb[0].mxu0
    %v3430 = vadd.f32 %v3331, %v3429
    %v3431 = vpop.f32.mrb[0].mxu0
    %3432 = vmatprep.mubr.f32.mxu0 0.0
    %3433 = vmatmul.mubr.f32.gmra.mrb[0].mxu0 %v254
    %v3434 = vpop.f32.mrb[0].mxu0
    %v3435 = vadd.f32 %v3331, %v3434
    %v3436 = vpop.f32.mrb[0].mxu0
    %3437 = vdwg.mxu0
    %s3438 = scalar_lea.vmem %s7, 96
    %v3439 = vld [vmem:[%s3438] sm:$0xff]
    %v3440 = vld [vmem:[%s3438 + $0x8] sm:$0xff]
    %v3441 = vld [vmem:[%s3438 + $0x10] sm:$0xff]
    %v3442 = vld [vmem:[%s3438 + $0x18] sm:$0xff]
    %s3443 = scalar_lea.vmem %s8, 3
    %v3444 = vld [vmem:[%s3443] sm:$0x1]
    %v3446 = vlaneseq
    %v3447 = vshrl.u32 %v3446, 7
    %v3448 = vsub.s32 0, %v3447
    %v3449 = vrot.slane %v3444, %v3448
    %3451 = vmatprep.subr.mxu0 0.0
    %3452 = vmatpush1.msra.mxu0 %v3439
    %3453 = vmatprep.subr.mxu0 0.0
    %3454 = vmatpush1.msra.mxu0 %v3440
    %3455 = vmatprep.subr.mxu0 0.0
    %3456 = vmatpush1.msra.mxu0 %v3441
    %3457 = vmatprep.subr.mxu0 0.0
    %3458 = vmatpush1.msra.mxu0 %v3442
    %3459 = vmatprep.subr.mxu0 0.0
    %3460 = vmatpush1.msra.mxu0 0.0
    %3461 = vmatprep.subr.mxu0 0.0
    %3462 = vmatpush1.msra.mxu0 0.0
    %3463 = vmatprep.subr.mxu0 0.0
    %3464 = vmatpush1.msra.mxu0 0.0
    %3465 = vmatprep.subr.mxu0 0.0
    %3466 = vmatpush1.msra.mxu0 0.0
    %3467 = vmatprep.subr.mxu0 0.0
    %3468 = vmatpush1.msra.mxu0 0.0
    %3469 = vmatprep.subr.mxu0 0.0
    %3470 = vmatpush1.msra.mxu0 0.0
    %3471 = vmatprep.subr.mxu0 0.0
    %3472 = vmatpush1.msra.mxu0 0.0
    %3473 = vmatprep.subr.mxu0 0.0
    %3474 = vmatpush1.msra.mxu0 0.0
    %3475 = vmatprep.subr.mxu0 0.0
    %3476 = vmatpush1.msra.mxu0 0.0
    %3477 = vmatprep.subr.mxu0 0.0
    %3478 = vmatpush1.msra.mxu0 0.0
    %3479 = vmatprep.subr.mxu0 0.0
    %3480 = vmatpush1.msra.mxu0 0.0
    %3481 = vmatprep.subr.mxu0 0.0
    %3482 = vmatpush1.msra.mxu0 0.0
    %3483 = vmatprep.subr.mxu0 0.0
    %3484 = vmatpush1.msra.mxu0 0.0
    %3485 = vmatprep.subr.mxu0 0.0
    %3486 = vmatpush1.msra.mxu0 0.0
    %3487 = vmatprep.subr.mxu0 0.0
    %3488 = vmatpush1.msra.mxu0 0.0
    %3489 = vmatprep.subr.mxu0 0.0
    %3490 = vmatpush1.msra.mxu0 0.0
    %3491 = vmatprep.subr.mxu0 0.0
    %3492 = vmatpush1.msra.mxu0 0.0
    %3493 = vmatprep.subr.mxu0 0.0
    %3494 = vmatpush1.msra.mxu0 0.0
    %3495 = vmatprep.subr.mxu0 0.0
    %3496 = vmatpush1.msra.mxu0 0.0
    %3497 = vmatprep.subr.mxu0 0.0
    %3498 = vmatpush1.msra.mxu0 0.0
    %3499 = vmatprep.subr.mxu0 0.0
    %3500 = vmatpush1.msra.mxu0 0.0
    %3501 = vmatprep.subr.mxu0 0.0
    %3502 = vmatpush1.msra.mxu0 0.0
    %3503 = vmatprep.subr.mxu0 0.0
    %3504 = vmatpush1.msra.mxu0 0.0
    %3505 = vmatprep.subr.mxu0 0.0
    %3506 = vmatpush1.msra.mxu0 0.0
    %3507 = vmatprep.subr.mxu0 0.0
    %3508 = vmatpush1.msra.mxu0 0.0
    %3509 = vmatprep.subr.mxu0 0.0
    %3510 = vmatpush1.msra.mxu0 0.0
    %3511 = vmatprep.subr.mxu0 0.0
    %3512 = vmatpush1.msra.mxu0 0.0
    %3513 = vmatprep.subr.mxu0 0.0
    %3514 = vmatpush1.msra.mxu0 0.0
    %3515 = vmatprep.mubr.f32.mxu0 0.0
    %3516 = vmatmul.mubr.f32.gmra.mrb[0].mxu0 %v233
    %v3517 = vpop.f32.mrb[0].mxu0
    %v3518 = vadd.f32 %v3449, %v3517
    %v3519 = vpop.f32.mrb[0].mxu0
    %3520 = vmatprep.mubr.f32.mxu0 0.0
    %3521 = vmatmul.mubr.f32.gmra.mrb[0].mxu0 %v236
    %v3522 = vpop.f32.mrb[0].mxu0
    %v3523 = vadd.f32 %v3449, %v3522
    %v3524 = vpop.f32.mrb[0].mxu0
    %3525 = vmatprep.mubr.f32.mxu0 0.0
    %3526 = vmatmul.mubr.f32.gmra.mrb[0].mxu0 %v239
    %v3527 = vpop.f32.mrb[0].mxu0
    %v3528 = vadd.f32 %v3449, %v3527
    %v3529 = vpop.f32.mrb[0].mxu0
    %3530 = vmatprep.mubr.f32.mxu0 0.0
    %3531 = vmatmul.mubr.f32.gmra.mrb[0].mxu0 %v242
    %v3532 = vpop.f32.mrb[0].mxu0
    %v3533 = vadd.f32 %v3449, %v3532
    %v3534 = vpop.f32.mrb[0].mxu0
    %3535 = vmatprep.mubr.f32.mxu0 0.0
    %3536 = vmatmul.mubr.f32.gmra.mrb[0].mxu0 %v245
    %v3537 = vpop.f32.mrb[0].mxu0
    %v3538 = vadd.f32 %v3449, %v3537
    %v3539 = vpop.f32.mrb[0].mxu0
    %3540 = vmatprep.mubr.f32.mxu0 0.0
    %3541 = vmatmul.mubr.f32.gmra.mrb[0].mxu0 %v248
    %v3542 = vpop.f32.mrb[0].mxu0
    %v3543 = vadd.f32 %v3449, %v3542
    %v3544 = vpop.f32.mrb[0].mxu0
    %3545 = vmatprep.mubr.f32.mxu0 0.0
    %3546 = vmatmul.mubr.f32.gmra.mrb[0].mxu0 %v251
    %v3547 = vpop.f32.mrb[0].mxu0
    %v3548 = vadd.f32 %v3449, %v3547
    %v3549 = vpop.f32.mrb[0].mxu0
    %3550 = vmatprep.mubr.f32.mxu0 0.0
    %3551 = vmatmul.mubr.f32.gmra.mrb[0].mxu0 %v254
    %v3552 = vpop.f32.mrb[0].mxu0
    %v3553 = vadd.f32 %v3449, %v3552
    %v3554 = vpop.f32.mrb[0].mxu0
    %3555 = vdwg.mxu0
    %v3557 = vsel %vm593, %v3282, 0
    %v3560 = vsel %vm593, %v3287, 0
    %v3563 = vsel %vm593, %v3292, 0
    %v3566 = vsel %vm593, %v3297, 0
    %v3569 = vsel %vm593, %v3400, 0
    %v3572 = vsel %vm593, %v3405, 0
    %v3575 = vsel %vm593, %v3410, 0
    %v3578 = vsel %vm593, %v3415, 0
    %3580 = vmatprep.subr.mxu0 0.0
    %3581 = vmatpush1.xpose.msra.mxu0 %v3569
    %3582 = vmatprep.subr.mxu0 0.0
    %3583 = vmatpush1.xpose.msra.mxu0 %v3572
    %3584 = vmatprep.subr.mxu0 0.0
    %3585 = vmatpush1.xpose.msra.mxu0 %v3575
    %3586 = vmatprep.subr.mxu0 0.0
    %3587 = vmatpush1.xpose.msra.mxu0 %v3578
    %3588 = vmatprep.subr.mxu0 0.0
    %3589 = vmatpush1.xpose.msra.mxu0 0.0
    %3590 = vmatprep.subr.mxu0 0.0
    %3591 = vmatpush1.xpose.msra.mxu0 0.0
    %3592 = vmatprep.subr.mxu0 0.0
    %3593 = vmatpush1.xpose.msra.mxu0 0.0
    %3594 = vmatprep.subr.mxu0 0.0
    %3595 = vmatpush1.xpose.msra.mxu0 0.0
    %3596 = vmatprep.subr.mxu0 0.0
    %3597 = vmatpush1.xpose.msra.mxu0 0.0
    %3598 = vmatprep.subr.mxu0 0.0
    %3599 = vmatpush1.xpose.msra.mxu0 0.0
    %3600 = vmatprep.subr.mxu0 0.0
    %3601 = vmatpush1.xpose.msra.mxu0 0.0
    %3602 = vmatprep.subr.mxu0 0.0
    %3603 = vmatpush1.xpose.msra.mxu0 0.0
    %3604 = vmatprep.subr.mxu0 0.0
    %3605 = vmatpush1.xpose.msra.mxu0 0.0
    %3606 = vmatprep.subr.mxu0 0.0
    %3607 = vmatpush1.xpose.msra.mxu0 0.0
    %3608 = vmatprep.subr.mxu0 0.0
    %3609 = vmatpush1.xpose.msra.mxu0 0.0
    %3610 = vmatprep.subr.mxu0 0.0
    %3611 = vmatpush1.xpose.msra.mxu0 0.0
    %3612 = vmatprep.subr.mxu0 0.0
    %3613 = vmatpush1.xpose.msra.mxu0 0.0
    %3614 = vmatprep.subr.mxu0 0.0
    %3615 = vmatpush1.xpose.msra.mxu0 0.0
    %3616 = vmatprep.subr.mxu0 0.0
    %3617 = vmatpush1.xpose.msra.mxu0 0.0
    %3618 = vmatprep.subr.mxu0 0.0
    %3619 = vmatpush1.xpose.msra.mxu0 0.0
    %3620 = vmatprep.subr.mxu0 0.0
    %3621 = vmatpush1.xpose.msra.mxu0 0.0
    %3622 = vmatprep.subr.mxu0 0.0
    %3623 = vmatpush1.xpose.msra.mxu0 0.0
    %3624 = vmatprep.subr.mxu0 0.0
    %3625 = vmatpush1.xpose.msra.mxu0 0.0
    %3626 = vmatprep.subr.mxu0 0.0
    %3627 = vmatpush1.xpose.msra.mxu0 0.0
    %3628 = vmatprep.subr.mxu0 0.0
    %3629 = vmatpush1.xpose.msra.mxu0 0.0
    %3630 = vmatprep.subr.mxu0 0.0
    %3631 = vmatpush1.xpose.msra.mxu0 0.0
    %3632 = vmatprep.subr.mxu0 0.0
    %3633 = vmatpush1.xpose.msra.mxu0 0.0
    %3634 = vmatprep.subr.mxu0 0.0
    %3635 = vmatpush1.xpose.msra.mxu0 0.0
    %3636 = vmatprep.subr.mxu0 0.0
    %3637 = vmatpush1.xpose.msra.mxu0 0.0
    %3638 = vmatprep.subr.mxu0 0.0
    %3639 = vmatpush1.xpose.msra.mxu0 0.0
    %3640 = vmatprep.subr.mxu0 0.0
    %3641 = vmatpush1.xpose.msra.mxu0 0.0
    %3642 = vmatprep.subr.mxu0 0.0
    %3643 = vmatpush1.xpose.msra.mxu0 0.0
    %3644 = vmatprep.mubr.f32.mxu0 0.0
    %3645 = vmatmul.mubr.f32.gmra.mrb[0].mxu0 %v3557
    %v3646 = vpop.f32.mrb[0].mxu0
    %v3647 = vadd.f32 %v81, %v3646
    %v3648 = vpop.f32.mrb[0].mxu0
    %3649 = vmatprep.mubr.f32.mxu0 0.0
    %3650 = vmatmul.mubr.f32.gmra.mrb[0].mxu0 %v3560
    %v3651 = vpop.f32.mrb[0].mxu0
    %v3652 = vadd.f32 %v82, %v3651
    %v3653 = vpop.f32.mrb[0].mxu0
    %3654 = vmatprep.mubr.f32.mxu0 0.0
    %3655 = vmatmul.mubr.f32.gmra.mrb[0].mxu0 %v3563
    %v3656 = vpop.f32.mrb[0].mxu0
    %v3657 = vadd.f32 %v83, %v3656
    %v3658 = vpop.f32.mrb[0].mxu0
    %3659 = vmatprep.mubr.f32.mxu0 0.0
    %3660 = vmatmul.mubr.f32.gmra.mrb[0].mxu0 %v3566
    %v3661 = vpop.f32.mrb[0].mxu0
    %v3662 = vadd.f32 %v84, %v3661
    %v3663 = vpop.f32.mrb[0].mxu0
    %3664 = vdwg.mxu0
    %v3666 = vsel %vm593, %v3302, 0
    %v3669 = vsel %vm593, %v3307, 0
    %v3672 = vsel %vm593, %v3312, 0
    %v3675 = vsel %vm593, %v3317, 0
    %v3678 = vsel %vm593, %v3420, 0
    %v3681 = vsel %vm593, %v3425, 0
    %v3684 = vsel %vm593, %v3430, 0
    %v3687 = vsel %vm593, %v3435, 0
    %3689 = vmatprep.subr.mxu0 0.0
    %3690 = vmatpush1.xpose.msra.mxu0 %v3678
    %3691 = vmatprep.subr.mxu0 0.0
    %3692 = vmatpush1.xpose.msra.mxu0 %v3681
    %3693 = vmatprep.subr.mxu0 0.0
    %3694 = vmatpush1.xpose.msra.mxu0 %v3684
    %3695 = vmatprep.subr.mxu0 0.0
    %3696 = vmatpush1.xpose.msra.mxu0 %v3687
    %3697 = vmatprep.subr.mxu0 0.0
    %3698 = vmatpush1.xpose.msra.mxu0 0.0
    %3699 = vmatprep.subr.mxu0 0.0
    %3700 = vmatpush1.xpose.msra.mxu0 0.0
    %3701 = vmatprep.subr.mxu0 0.0
    %3702 = vmatpush1.xpose.msra.mxu0 0.0
    %3703 = vmatprep.subr.mxu0 0.0
    %3704 = vmatpush1.xpose.msra.mxu0 0.0
    %3705 = vmatprep.subr.mxu0 0.0
    %3706 = vmatpush1.xpose.msra.mxu0 0.0
    %3707 = vmatprep.subr.mxu0 0.0
    %3708 = vmatpush1.xpose.msra.mxu0 0.0
    %3709 = vmatprep.subr.mxu0 0.0
    %3710 = vmatpush1.xpose.msra.mxu0 0.0
    %3711 = vmatprep.subr.mxu0 0.0
    %3712 = vmatpush1.xpose.msra.mxu0 0.0
    %3713 = vmatprep.subr.mxu0 0.0
    %3714 = vmatpush1.xpose.msra.mxu0 0.0
    %3715 = vmatprep.subr.mxu0 0.0
    %3716 = vmatpush1.xpose.msra.mxu0 0.0
    %3717 = vmatprep.subr.mxu0 0.0
    %3718 = vmatpush1.xpose.msra.mxu0 0.0
    %3719 = vmatprep.subr.mxu0 0.0
    %3720 = vmatpush1.xpose.msra.mxu0 0.0
    %3721 = vmatprep.subr.mxu0 0.0
    %3722 = vmatpush1.xpose.msra.mxu0 0.0
    %3723 = vmatprep.subr.mxu0 0.0
    %3724 = vmatpush1.xpose.msra.mxu0 0.0
    %3725 = vmatprep.subr.mxu0 0.0
    %3726 = vmatpush1.xpose.msra.mxu0 0.0
    %3727 = vmatprep.subr.mxu0 0.0
    %3728 = vmatpush1.xpose.msra.mxu0 0.0
    %3729 = vmatprep.subr.mxu0 0.0
    %3730 = vmatpush1.xpose.msra.mxu0 0.0
    %3731 = vmatprep.subr.mxu0 0.0
    %3732 = vmatpush1.xpose.msra.mxu0 0.0
    %3733 = vmatprep.subr.mxu0 0.0
    %3734 = vmatpush1.xpose.msra.mxu0 0.0
    %3735 = vmatprep.subr.mxu0 0.0
    %3736 = vmatpush1.xpose.msra.mxu0 0.0
    %3737 = vmatprep.subr.mxu0 0.0
    %3738 = vmatpush1.xpose.msra.mxu0 0.0
    %3739 = vmatprep.subr.mxu0 0.0
    %3740 = vmatpush1.xpose.msra.mxu0 0.0
    %3741 = vmatprep.subr.mxu0 0.0
    %3742 = vmatpush1.xpose.msra.mxu0 0.0
    %3743 = vmatprep.subr.mxu0 0.0
    %3744 = vmatpush1.xpose.msra.mxu0 0.0
    %3745 = vmatprep.subr.mxu0 0.0
    %3746 = vmatpush1.xpose.msra.mxu0 0.0
    %3747 = vmatprep.subr.mxu0 0.0
    %3748 = vmatpush1.xpose.msra.mxu0 0.0
    %3749 = vmatprep.subr.mxu0 0.0
    %3750 = vmatpush1.xpose.msra.mxu0 0.0
    %3751 = vmatprep.subr.mxu0 0.0
    %3752 = vmatpush1.xpose.msra.mxu0 0.0
    %3753 = vmatprep.mubr.f32.mxu0 0.0
    %3754 = vmatmul.mubr.f32.gmra.mrb[0].mxu0 %v3666
    %v3755 = vpop.f32.mrb[0].mxu0
    %v3756 = vadd.f32 %v81, %v3755
    %v3757 = vpop.f32.mrb[0].mxu0
    %3758 = vmatprep.mubr.f32.mxu0 0.0
    %3759 = vmatmul.mubr.f32.gmra.mrb[0].mxu0 %v3669
    %v3760 = vpop.f32.mrb[0].mxu0
    %v3761 = vadd.f32 %v82, %v3760
    %v3762 = vpop.f32.mrb[0].mxu0
    %3763 = vmatprep.mubr.f32.mxu0 0.0
    %3764 = vmatmul.mubr.f32.gmra.mrb[0].mxu0 %v3672
    %v3765 = vpop.f32.mrb[0].mxu0
    %v3766 = vadd.f32 %v83, %v3765
    %v3767 = vpop.f32.mrb[0].mxu0
    %3768 = vmatprep.mubr.f32.mxu0 0.0
    %3769 = vmatmul.mubr.f32.gmra.mrb[0].mxu0 %v3675
    %v3770 = vpop.f32.mrb[0].mxu0
    %v3771 = vadd.f32 %v84, %v3770
    %v3772 = vpop.f32.mrb[0].mxu0
    %3773 = vdwg.mxu0
    %v3774 = vsel %vm87, %v3647, -inf
    %3775 = vmax.xlane.f32.xlu0 %v3774
    %v3776 = vpop.xlane.xlu0 %3775
    %v3777 = vsel %vm87, %v3652, -inf
    %3778 = vmax.xlane.f32.xlu0 %v3777
    %v3779 = vpop.xlane.xlu0 %3778
    %v3780 = vsel %vm87, %v3657, -inf
    %3781 = vmax.xlane.f32.xlu0 %v3780
    %v3782 = vpop.xlane.xlu0 %3781
    %v3783 = vsel %vm87, %v3662, -inf
    %3784 = vmax.xlane.f32.xlu0 %v3783
    %v3785 = vpop.xlane.xlu0 %3784
    %v3786 = vsel %vm87, %v3756, -inf
    %3787 = vmax.xlane.f32.xlu0 %v3786
    %v3788 = vpop.xlane.xlu0 %3787
    %v3789 = vsel %vm87, %v3761, -inf
    %3790 = vmax.xlane.f32.xlu0 %v3789
    %v3791 = vpop.xlane.xlu0 %3790
    %v3792 = vsel %vm87, %v3766, -inf
    %3793 = vmax.xlane.f32.xlu0 %v3792
    %v3794 = vpop.xlane.xlu0 %3793
    %v3795 = vsel %vm87, %v3771, -inf
    %3796 = vmax.xlane.f32.xlu0 %v3795
    %v3797 = vpop.xlane.xlu0 %3796
    %v3798 = vsub.f32 %v3647, %v3776
    %v3799 = vsub.f32 %v3652, %v3779
    %v3800 = vsub.f32 %v3657, %v3782
    %v3801 = vsub.f32 %v3662, %v3785
    %v3802 = vsub.f32 %v3756, %v3788
    %v3803 = vsub.f32 %v3761, %v3791
    %v3804 = vsub.f32 %v3766, %v3794
    %v3805 = vsub.f32 %v3771, %v3797
    %v3806 = vmul.f32 %v3798, 1.442695
    %v3807 = vpow.pop %v3806
    %v3808 = vmul.f32 %v3799, 1.442695
    %v3809 = vpow.pop %v3808
    %v3810 = vmul.f32 %v3800, 1.442695
    %v3811 = vpow.pop %v3810
    %v3812 = vmul.f32 %v3801, 1.442695
    %v3813 = vpow.pop %v3812
    %v3814 = vmul.f32 %v3802, 1.442695
    %v3815 = vpow.pop %v3814
    %v3816 = vmul.f32 %v3803, 1.442695
    %v3817 = vpow.pop %v3816
    %v3818 = vmul.f32 %v3804, 1.442695
    %v3819 = vpow.pop %v3818
    %v3820 = vmul.f32 %v3805, 1.442695
    %v3821 = vpow.pop %v3820
    %v3822 = vsel %vm87, %v3807, 0.0
    %3823 = vadd.xlane.f32.xlu0 %v3822
    %v3824 = vpop.xlane.xlu0 %3823
    %v3825 = vsel %vm87, %v3809, 0.0
    %3826 = vadd.xlane.f32.xlu0 %v3825
    %v3827 = vpop.xlane.xlu0 %3826
    %v3828 = vsel %vm87, %v3811, 0.0
    %3829 = vadd.xlane.f32.xlu0 %v3828
    %v3830 = vpop.xlane.xlu0 %3829
    %v3831 = vsel %vm87, %v3813, 0.0
    %3832 = vadd.xlane.f32.xlu0 %v3831
    %v3833 = vpop.xlane.xlu0 %3832
    %v3834 = vsel %vm87, %v3815, 0.0
    %3835 = vadd.xlane.f32.xlu0 %v3834
    %v3836 = vpop.xlane.xlu0 %3835
    %v3837 = vsel %vm87, %v3817, 0.0
    %3838 = vadd.xlane.f32.xlu0 %v3837
    %v3839 = vpop.xlane.xlu0 %3838
    %v3840 = vsel %vm87, %v3819, 0.0
    %3841 = vadd.xlane.f32.xlu0 %v3840
    %v3842 = vpop.xlane.xlu0 %3841
    %v3843 = vsel %vm87, %v3821, 0.0
    %3844 = vadd.xlane.f32.xlu0 %v3843
    %v3845 = vpop.xlane.xlu0 %3844
    %v3847 = vsel %vm87, %v3807, 0
    %v3850 = vsel %vm87, %v3809, 0
    %v3853 = vsel %vm87, %v3811, 0
    %v3856 = vsel %vm87, %v3813, 0
    %3858 = vmatprep.subr.mxu0 0.0
    %3859 = vmatpush1.msra.mxu0 %v3518
    %3860 = vmatprep.subr.mxu0 0.0
    %3861 = vmatpush1.msra.mxu0 %v3523
    %3862 = vmatprep.subr.mxu0 0.0
    %3863 = vmatpush1.msra.mxu0 %v3528
    %3864 = vmatprep.subr.mxu0 0.0
    %3865 = vmatpush1.msra.mxu0 %v3533
    %3866 = vmatprep.subr.mxu0 0.0
    %3867 = vmatpush1.msra.mxu0 0.0
    %3868 = vmatprep.subr.mxu0 0.0
    %3869 = vmatpush1.msra.mxu0 0.0
    %3870 = vmatprep.subr.mxu0 0.0
    %3871 = vmatpush1.msra.mxu0 0.0
    %3872 = vmatprep.subr.mxu0 0.0
    %3873 = vmatpush1.msra.mxu0 0.0
    %3874 = vmatprep.subr.mxu0 0.0
    %3875 = vmatpush1.msra.mxu0 0.0
    %3876 = vmatprep.subr.mxu0 0.0
    %3877 = vmatpush1.msra.mxu0 0.0
    %3878 = vmatprep.subr.mxu0 0.0
    %3879 = vmatpush1.msra.mxu0 0.0
    %3880 = vmatprep.subr.mxu0 0.0
    %3881 = vmatpush1.msra.mxu0 0.0
    %3882 = vmatprep.subr.mxu0 0.0
    %3883 = vmatpush1.msra.mxu0 0.0
    %3884 = vmatprep.subr.mxu0 0.0
    %3885 = vmatpush1.msra.mxu0 0.0
    %3886 = vmatprep.subr.mxu0 0.0
    %3887 = vmatpush1.msra.mxu0 0.0
    %3888 = vmatprep.subr.mxu0 0.0
    %3889 = vmatpush1.msra.mxu0 0.0
    %3890 = vmatprep.subr.mxu0 0.0
    %3891 = vmatpush1.msra.mxu0 0.0
    %3892 = vmatprep.subr.mxu0 0.0
    %3893 = vmatpush1.msra.mxu0 0.0
    %3894 = vmatprep.subr.mxu0 0.0
    %3895 = vmatpush1.msra.mxu0 0.0
    %3896 = vmatprep.subr.mxu0 0.0
    %3897 = vmatpush1.msra.mxu0 0.0
    %3898 = vmatprep.subr.mxu0 0.0
    %3899 = vmatpush1.msra.mxu0 0.0
    %3900 = vmatprep.subr.mxu0 0.0
    %3901 = vmatpush1.msra.mxu0 0.0
    %3902 = vmatprep.subr.mxu0 0.0
    %3903 = vmatpush1.msra.mxu0 0.0
    %3904 = vmatprep.subr.mxu0 0.0
    %3905 = vmatpush1.msra.mxu0 0.0
    %3906 = vmatprep.subr.mxu0 0.0
    %3907 = vmatpush1.msra.mxu0 0.0
    %3908 = vmatprep.subr.mxu0 0.0
    %3909 = vmatpush1.msra.mxu0 0.0
    %3910 = vmatprep.subr.mxu0 0.0
    %3911 = vmatpush1.msra.mxu0 0.0
    %3912 = vmatprep.subr.mxu0 0.0
    %3913 = vmatpush1.msra.mxu0 0.0
    %3914 = vmatprep.subr.mxu0 0.0
    %3915 = vmatpush1.msra.mxu0 0.0
    %3916 = vmatprep.subr.mxu0 0.0
    %3917 = vmatpush1.msra.mxu0 0.0
    %3918 = vmatprep.subr.mxu0 0.0
    %3919 = vmatpush1.msra.mxu0 0.0
    %3920 = vmatprep.subr.mxu0 0.0
    %3921 = vmatpush1.msra.mxu0 0.0
    %3922 = vmatprep.mubr.f32.mxu0 0.0
    %3923 = vmatmul.mubr.f32.gmra.mrb[0].mxu0 %v3847
    %v3924 = vpop.f32.mrb[0].mxu0
    %v3925 = vadd.f32 0.0, %v3924
    %v3926 = vpop.f32.mrb[0].mxu0
    %3927 = vmatprep.mubr.f32.mxu0 0.0
    %3928 = vmatmul.mubr.f32.gmra.mrb[0].mxu0 %v3850
    %v3929 = vpop.f32.mrb[0].mxu0
    %v3930 = vadd.f32 0.0, %v3929
    %v3931 = vpop.f32.mrb[0].mxu0
    %3932 = vmatprep.mubr.f32.mxu0 0.0
    %3933 = vmatmul.mubr.f32.gmra.mrb[0].mxu0 %v3853
    %v3934 = vpop.f32.mrb[0].mxu0
    %v3935 = vadd.f32 0.0, %v3934
    %v3936 = vpop.f32.mrb[0].mxu0
    %3937 = vmatprep.mubr.f32.mxu0 0.0
    %3938 = vmatmul.mubr.f32.gmra.mrb[0].mxu0 %v3856
    %v3939 = vpop.f32.mrb[0].mxu0
    %v3940 = vadd.f32 0.0, %v3939
    %v3941 = vpop.f32.mrb[0].mxu0
    %3942 = vdwg.mxu0
    %v3944 = vsel %vm87, %v3815, 0
    %v3947 = vsel %vm87, %v3817, 0
    %v3950 = vsel %vm87, %v3819, 0
    %v3953 = vsel %vm87, %v3821, 0
    %3955 = vmatprep.subr.mxu0 0.0
    %3956 = vmatpush1.msra.mxu0 %v3538
    %3957 = vmatprep.subr.mxu0 0.0
    %3958 = vmatpush1.msra.mxu0 %v3543
    %3959 = vmatprep.subr.mxu0 0.0
    %3960 = vmatpush1.msra.mxu0 %v3548
    %3961 = vmatprep.subr.mxu0 0.0
    %3962 = vmatpush1.msra.mxu0 %v3553
    %3963 = vmatprep.subr.mxu0 0.0
    %3964 = vmatpush1.msra.mxu0 0.0
    %3965 = vmatprep.subr.mxu0 0.0
    %3966 = vmatpush1.msra.mxu0 0.0
    %3967 = vmatprep.subr.mxu0 0.0
    %3968 = vmatpush1.msra.mxu0 0.0
    %3969 = vmatprep.subr.mxu0 0.0
    %3970 = vmatpush1.msra.mxu0 0.0
    %3971 = vmatprep.subr.mxu0 0.0
    %3972 = vmatpush1.msra.mxu0 0.0
    %3973 = vmatprep.subr.mxu0 0.0
    %3974 = vmatpush1.msra.mxu0 0.0
    %3975 = vmatprep.subr.mxu0 0.0
    %3976 = vmatpush1.msra.mxu0 0.0
    %3977 = vmatprep.subr.mxu0 0.0
    %3978 = vmatpush1.msra.mxu0 0.0
    %3979 = vmatprep.subr.mxu0 0.0
    %3980 = vmatpush1.msra.mxu0 0.0
    %3981 = vmatprep.subr.mxu0 0.0
    %3982 = vmatpush1.msra.mxu0 0.0
    %3983 = vmatprep.subr.mxu0 0.0
    %3984 = vmatpush1.msra.mxu0 0.0
    %3985 = vmatprep.subr.mxu0 0.0
    %3986 = vmatpush1.msra.mxu0 0.0
    %3987 = vmatprep.subr.mxu0 0.0
    %3988 = vmatpush1.msra.mxu0 0.0
    %3989 = vmatprep.subr.mxu0 0.0
    %3990 = vmatpush1.msra.mxu0 0.0
    %3991 = vmatprep.subr.mxu0 0.0
    %3992 = vmatpush1.msra.mxu0 0.0
    %3993 = vmatprep.subr.mxu0 0.0
    %3994 = vmatpush1.msra.mxu0 0.0
    %3995 = vmatprep.subr.mxu0 0.0
    %3996 = vmatpush1.msra.mxu0 0.0
    %3997 = vmatprep.subr.mxu0 0.0
    %3998 = vmatpush1.msra.mxu0 0.0
    %3999 = vmatprep.subr.mxu0 0.0
    %4000 = vmatpush1.msra.mxu0 0.0
    %4001 = vmatprep.subr.mxu0 0.0
    %4002 = vmatpush1.msra.mxu0 0.0
    %4003 = vmatprep.subr.mxu0 0.0
    %4004 = vmatpush1.msra.mxu0 0.0
    %4005 = vmatprep.subr.mxu0 0.0
    %4006 = vmatpush1.msra.mxu0 0.0
    %4007 = vmatprep.subr.mxu0 0.0
    %4008 = vmatpush1.msra.mxu0 0.0
    %4009 = vmatprep.subr.mxu0 0.0
    %4010 = vmatpush1.msra.mxu0 0.0
    %4011 = vmatprep.subr.mxu0 0.0
    %4012 = vmatpush1.msra.mxu0 0.0
    %4013 = vmatprep.subr.mxu0 0.0
    %4014 = vmatpush1.msra.mxu0 0.0
    %4015 = vmatprep.subr.mxu0 0.0
    %4016 = vmatpush1.msra.mxu0 0.0
    %4017 = vmatprep.subr.mxu0 0.0
    %4018 = vmatpush1.msra.mxu0 0.0
    %4019 = vmatprep.mubr.f32.mxu0 0.0
    %4020 = vmatmul.mubr.f32.gmra.mrb[0].mxu0 %v3944
    %v4021 = vpop.f32.mrb[0].mxu0
    %v4022 = vadd.f32 0.0, %v4021
    %v4023 = vpop.f32.mrb[0].mxu0
    %4024 = vmatprep.mubr.f32.mxu0 0.0
    %4025 = vmatmul.mubr.f32.gmra.mrb[0].mxu0 %v3947
    %v4026 = vpop.f32.mrb[0].mxu0
    %v4027 = vadd.f32 0.0, %v4026
    %v4028 = vpop.f32.mrb[0].mxu0
    %4029 = vmatprep.mubr.f32.mxu0 0.0
    %4030 = vmatmul.mubr.f32.gmra.mrb[0].mxu0 %v3950
    %v4031 = vpop.f32.mrb[0].mxu0
    %v4032 = vadd.f32 0.0, %v4031
    %v4033 = vpop.f32.mrb[0].mxu0
    %4034 = vmatprep.mubr.f32.mxu0 0.0
    %4035 = vmatmul.mubr.f32.gmra.mrb[0].mxu0 %v3953
    %v4036 = vpop.f32.mrb[0].mxu0
    %v4037 = vadd.f32 0.0, %v4036
    %v4038 = vpop.f32.mrb[0].mxu0
    %4039 = vdwg.mxu0
    %v4040 = vrcp.pop %v3824
    %v4041 = vrcp.pop %v3827
    %v4042 = vrcp.pop %v3830
    %v4043 = vrcp.pop %v3833
    %v4044 = vrcp.pop %v3836
    %v4045 = vrcp.pop %v3839
    %v4046 = vrcp.pop %v3842
    %v4047 = vrcp.pop %v3845
    %v4048 = vmul.f32 %v3925, %v4040
    %v4049 = vmul.f32 %v3930, %v4041
    %v4050 = vmul.f32 %v3935, %v4042
    %v4051 = vmul.f32 %v3940, %v4043
    %v4052 = vmul.f32 %v4022, %v4044
    %v4053 = vmul.f32 %v4027, %v4045
    %v4054 = vmul.f32 %v4032, %v4046
    %v4055 = vmul.f32 %v4037, %v4047
    %s4056 = scalar_lea.vmem %s9, 24
    %v4057 = vld [vmem:[%s4056] sm:$0xff]
    %v4059 = vsel %vm593, %v4048, 0
    %v4062 = vsel %vm593, %v4049, 0
    %v4065 = vsel %vm593, %v4050, 0
    %v4068 = vsel %vm593, %v4051, 0
    %v4071 = vsel %vm593, %v4052, 0
    %v4074 = vsel %vm593, %v4053, 0
    %v4077 = vsel %vm593, %v4054, 0
    %v4080 = vsel %vm593, %v4055, 0
    %4082 = vmatprep.subr.mxu0 0.0
    %4083 = vmatpush1.msra.mxu0 %v4057
    %4084 = vmatprep.subr.mxu0 0.0
    %4085 = vmatpush1.msra.mxu0 0.0
    %4086 = vmatprep.subr.mxu0 0.0
    %4087 = vmatpush1.msra.mxu0 0.0
    %4088 = vmatprep.subr.mxu0 0.0
    %4089 = vmatpush1.msra.mxu0 0.0
    %4090 = vmatprep.subr.mxu0 0.0
    %4091 = vmatpush1.msra.mxu0 0.0
    %4092 = vmatprep.subr.mxu0 0.0
    %4093 = vmatpush1.msra.mxu0 0.0
    %4094 = vmatprep.subr.mxu0 0.0
    %4095 = vmatpush1.msra.mxu0 0.0
    %4096 = vmatprep.subr.mxu0 0.0
    %4097 = vmatpush1.msra.mxu0 0.0
    %4098 = vmatprep.subr.mxu0 0.0
    %4099 = vmatpush1.msra.mxu0 0.0
    %4100 = vmatprep.subr.mxu0 0.0
    %4101 = vmatpush1.msra.mxu0 0.0
    %4102 = vmatprep.subr.mxu0 0.0
    %4103 = vmatpush1.msra.mxu0 0.0
    %4104 = vmatprep.subr.mxu0 0.0
    %4105 = vmatpush1.msra.mxu0 0.0
    %4106 = vmatprep.subr.mxu0 0.0
    %4107 = vmatpush1.msra.mxu0 0.0
    %4108 = vmatprep.subr.mxu0 0.0
    %4109 = vmatpush1.msra.mxu0 0.0
    %4110 = vmatprep.subr.mxu0 0.0
    %4111 = vmatpush1.msra.mxu0 0.0
    %4112 = vmatprep.subr.mxu0 0.0
    %4113 = vmatpush1.msra.mxu0 0.0
    %4114 = vmatprep.subr.mxu0 0.0
    %4115 = vmatpush1.msra.mxu0 0.0
    %4116 = vmatprep.subr.mxu0 0.0
    %4117 = vmatpush1.msra.mxu0 0.0
    %4118 = vmatprep.subr.mxu0 0.0
    %4119 = vmatpush1.msra.mxu0 0.0
    %4120 = vmatprep.subr.mxu0 0.0
    %4121 = vmatpush1.msra.mxu0 0.0
    %4122 = vmatprep.subr.mxu0 0.0
    %4123 = vmatpush1.msra.mxu0 0.0
    %4124 = vmatprep.subr.mxu0 0.0
    %4125 = vmatpush1.msra.mxu0 0.0
    %4126 = vmatprep.subr.mxu0 0.0
    %4127 = vmatpush1.msra.mxu0 0.0
    %4128 = vmatprep.subr.mxu0 0.0
    %4129 = vmatpush1.msra.mxu0 0.0
    %4130 = vmatprep.subr.mxu0 0.0
    %4131 = vmatpush1.msra.mxu0 0.0
    %4132 = vmatprep.subr.mxu0 0.0
    %4133 = vmatpush1.msra.mxu0 0.0
    %4134 = vmatprep.subr.mxu0 0.0
    %4135 = vmatpush1.msra.mxu0 0.0
    %4136 = vmatprep.subr.mxu0 0.0
    %4137 = vmatpush1.msra.mxu0 0.0
    %4138 = vmatprep.subr.mxu0 0.0
    %4139 = vmatpush1.msra.mxu0 0.0
    %4140 = vmatprep.subr.mxu0 0.0
    %4141 = vmatpush1.msra.mxu0 0.0
    %4142 = vmatprep.subr.mxu0 0.0
    %4143 = vmatpush1.msra.mxu0 0.0
    %4144 = vmatprep.subr.mxu0 0.0
    %4145 = vmatpush1.msra.mxu0 0.0
    %4146 = vmatprep.mubr.f32.mxu0 0.0
    %4147 = vmatmul.mubr.f32.gmra.mrb[0].mxu0 %v4059
    %v4148 = vpop.f32.mrb[0].mxu0
    %v4149 = vadd.f32 0.0, %v4148
    %v4150 = vpop.f32.mrb[0].mxu0
    %4151 = vmatprep.mubr.f32.mxu0 0.0
    %4152 = vmatmul.mubr.f32.gmra.mrb[0].mxu0 %v4062
    %v4153 = vpop.f32.mrb[0].mxu0
    %v4154 = vadd.f32 0.0, %v4153
    %v4155 = vpop.f32.mrb[0].mxu0
    %4156 = vmatprep.mubr.f32.mxu0 0.0
    %4157 = vmatmul.mubr.f32.gmra.mrb[0].mxu0 %v4065
    %v4158 = vpop.f32.mrb[0].mxu0
    %v4159 = vadd.f32 0.0, %v4158
    %v4160 = vpop.f32.mrb[0].mxu0
    %4161 = vmatprep.mubr.f32.mxu0 0.0
    %4162 = vmatmul.mubr.f32.gmra.mrb[0].mxu0 %v4068
    %v4163 = vpop.f32.mrb[0].mxu0
    %v4164 = vadd.f32 0.0, %v4163
    %v4165 = vpop.f32.mrb[0].mxu0
    %4166 = vmatprep.mubr.f32.mxu0 0.0
    %4167 = vmatmul.mubr.f32.gmra.mrb[0].mxu0 %v4071
    %v4168 = vpop.f32.mrb[0].mxu0
    %v4169 = vadd.f32 0.0, %v4168
    %v4170 = vpop.f32.mrb[0].mxu0
    %4171 = vmatprep.mubr.f32.mxu0 0.0
    %4172 = vmatmul.mubr.f32.gmra.mrb[0].mxu0 %v4074
    %v4173 = vpop.f32.mrb[0].mxu0
    %v4174 = vadd.f32 0.0, %v4173
    %v4175 = vpop.f32.mrb[0].mxu0
    %4176 = vmatprep.mubr.f32.mxu0 0.0
    %4177 = vmatmul.mubr.f32.gmra.mrb[0].mxu0 %v4077
    %v4178 = vpop.f32.mrb[0].mxu0
    %v4179 = vadd.f32 0.0, %v4178
    %v4180 = vpop.f32.mrb[0].mxu0
    %4181 = vmatprep.mubr.f32.mxu0 0.0
    %4182 = vmatmul.mubr.f32.gmra.mrb[0].mxu0 %v4080
    %v4183 = vpop.f32.mrb[0].mxu0
    %v4184 = vadd.f32 0.0, %v4183
    %v4185 = vpop.f32.mrb[0].mxu0
    %4186 = vdwg.mxu0
    %v4187 = vadd.f32 %v3194, %v4149
    %v4188 = vadd.f32 %v3195, %v4154
    %v4189 = vadd.f32 %v3196, %v4159
    %v4190 = vadd.f32 %v3197, %v4164
    %v4191 = vadd.f32 %v3198, %v4169
    %v4192 = vadd.f32 %v3199, %v4174
    %v4193 = vadd.f32 %v3200, %v4179
    %v4194 = vadd.f32 %v3201, %v4184
    %v4195 = vadd.f32 %v57, %v4187
    %v4196 = vadd.f32 %v58, %v4188
    %v4197 = vadd.f32 %v59, %v4189
    %v4198 = vadd.f32 %v60, %v4190
    %v4199 = vadd.f32 %v61, %v4191
    %v4200 = vadd.f32 %v62, %v4192
    %v4201 = vadd.f32 %v63, %v4193
    %v4202 = vadd.f32 %v64, %v4194
    %v4203 = vld [vmem:[%s10] sm:$0x1]
    %v4205 = vlaneseq
    %v4206 = vshrl.u32 %v4205, 7
    %v4207 = vsub.s32 0, %v4206
    %v4208 = vrot.slane %v4203, %v4207
    %v4210 = vadd.f32 %v4195, %v4208
    %v4211 = vadd.f32 %v4196, %v4208
    %v4212 = vadd.f32 %v4197, %v4208
    %v4213 = vadd.f32 %v4198, %v4208
    %v4214 = vadd.f32 %v4199, %v4208
    %v4215 = vadd.f32 %v4200, %v4208
    %v4216 = vadd.f32 %v4201, %v4208
    %v4217 = vadd.f32 %v4202, %v4208
    %v4218 = vld [vmem:[%s11] sm:$0x1]
    %v4219 = vld [vmem:[%s12] sm:$0x1]
    %v4220 = vsel %vm87, %v4210, 0.0
    %4221 = vadd.xlane.f32.xlu0 %v4220
    %v4222 = vpop.xlane.xlu0 %4221
    %v4223 = vsel %vm87, %v4211, 0.0
    %4224 = vadd.xlane.f32.xlu0 %v4223
    %v4225 = vpop.xlane.xlu0 %4224
    %v4226 = vsel %vm87, %v4212, 0.0
    %4227 = vadd.xlane.f32.xlu0 %v4226
    %v4228 = vpop.xlane.xlu0 %4227
    %v4229 = vsel %vm87, %v4213, 0.0
    %4230 = vadd.xlane.f32.xlu0 %v4229
    %v4231 = vpop.xlane.xlu0 %4230
    %v4232 = vsel %vm87, %v4214, 0.0
    %4233 = vadd.xlane.f32.xlu0 %v4232
    %v4234 = vpop.xlane.xlu0 %4233
    %v4235 = vsel %vm87, %v4215, 0.0
    %4236 = vadd.xlane.f32.xlu0 %v4235
    %v4237 = vpop.xlane.xlu0 %4236
    %v4238 = vsel %vm87, %v4216, 0.0
    %4239 = vadd.xlane.f32.xlu0 %v4238
    %v4240 = vpop.xlane.xlu0 %4239
    %v4241 = vsel %vm87, %v4217, 0.0
    %4242 = vadd.xlane.f32.xlu0 %v4241
    %v4243 = vpop.xlane.xlu0 %4242
    %v4244 = vmul.f32 %v4222, %v112
    %v4245 = vmul.f32 %v4225, %v112
    %v4246 = vmul.f32 %v4228, %v112
    %v4247 = vmul.f32 %v4231, %v112
    %v4248 = vmul.f32 %v4234, %v112
    %v4249 = vmul.f32 %v4237, %v112
    %v4250 = vmul.f32 %v4240, %v112
    %v4251 = vmul.f32 %v4243, %v112
    %v4252 = vsub.f32 %v4210, %v4244
    %v4253 = vsub.f32 %v4211, %v4245
    %v4254 = vsub.f32 %v4212, %v4246
    %v4255 = vsub.f32 %v4213, %v4247
    %v4256 = vsub.f32 %v4214, %v4248
    %v4257 = vsub.f32 %v4215, %v4249
    %v4258 = vsub.f32 %v4216, %v4250
    %v4259 = vsub.f32 %v4217, %v4251
    %v4260 = vmul.f32 %v4252, %v4252
    %v4261 = vmul.f32 %v4253, %v4253
    %v4262 = vmul.f32 %v4254, %v4254
    %v4263 = vmul.f32 %v4255, %v4255
    %v4264 = vmul.f32 %v4256, %v4256
    %v4265 = vmul.f32 %v4257, %v4257
    %v4266 = vmul.f32 %v4258, %v4258
    %v4267 = vmul.f32 %v4259, %v4259
    %v4268 = vsel %vm87, %v4260, 0.0
    %4269 = vadd.xlane.f32.xlu0 %v4268
    %v4270 = vpop.xlane.xlu0 %4269
    %v4271 = vsel %vm87, %v4261, 0.0
    %4272 = vadd.xlane.f32.xlu0 %v4271
    %v4273 = vpop.xlane.xlu0 %4272
    %v4274 = vsel %vm87, %v4262, 0.0
    %4275 = vadd.xlane.f32.xlu0 %v4274
    %v4276 = vpop.xlane.xlu0 %4275
    %v4277 = vsel %vm87, %v4263, 0.0
    %4278 = vadd.xlane.f32.xlu0 %v4277
    %v4279 = vpop.xlane.xlu0 %4278
    %v4280 = vsel %vm87, %v4264, 0.0
    %4281 = vadd.xlane.f32.xlu0 %v4280
    %v4282 = vpop.xlane.xlu0 %4281
    %v4283 = vsel %vm87, %v4265, 0.0
    %4284 = vadd.xlane.f32.xlu0 %v4283
    %v4285 = vpop.xlane.xlu0 %4284
    %v4286 = vsel %vm87, %v4266, 0.0
    %4287 = vadd.xlane.f32.xlu0 %v4286
    %v4288 = vpop.xlane.xlu0 %4287
    %v4289 = vsel %vm87, %v4267, 0.0
    %4290 = vadd.xlane.f32.xlu0 %v4289
    %v4291 = vpop.xlane.xlu0 %4290
    %v4292 = vmul.f32 %v4270, %v112
    %v4293 = vmul.f32 %v4273, %v112
    %v4294 = vmul.f32 %v4276, %v112
    %v4295 = vmul.f32 %v4279, %v112
    %v4296 = vmul.f32 %v4282, %v112
    %v4297 = vmul.f32 %v4285, %v112
    %v4298 = vmul.f32 %v4288, %v112
    %v4299 = vmul.f32 %v4291, %v112
    %v4300 = vadd.f32 %v4292, 1e-05
    %v4301 = vadd.f32 %v4293, 1e-05
    %v4302 = vadd.f32 %v4294, 1e-05
    %v4303 = vadd.f32 %v4295, 1e-05
    %v4304 = vadd.f32 %v4296, 1e-05
    %v4305 = vadd.f32 %v4297, 1e-05
    %v4306 = vadd.f32 %v4298, 1e-05
    %v4307 = vadd.f32 %v4299, 1e-05
    %v4308 = vrsqrt.pop %v4300
    %v4309 = vrsqrt.pop %v4301
    %v4310 = vrsqrt.pop %v4302
    %v4311 = vrsqrt.pop %v4303
    %v4312 = vrsqrt.pop %v4304
    %v4313 = vrsqrt.pop %v4305
    %v4314 = vrsqrt.pop %v4306
    %v4315 = vrsqrt.pop %v4307
    %v4316 = vmul.f32 %v4252, %v4308
    %v4317 = vmul.f32 %v4253, %v4309
    %v4318 = vmul.f32 %v4254, %v4310
    %v4319 = vmul.f32 %v4255, %v4311
    %v4320 = vmul.f32 %v4256, %v4312
    %v4321 = vmul.f32 %v4257, %v4313
    %v4322 = vmul.f32 %v4258, %v4314
    %v4323 = vmul.f32 %v4259, %v4315
    %v4325 = vlaneseq
    %v4326 = vshrl.u32 %v4325, 7
    %v4327 = vsub.s32 0, %v4326
    %v4328 = vrot.slane %v4218, %v4327
    %v4330 = vmul.f32 %v4316, %v4328
    %v4331 = vmul.f32 %v4317, %v4328
    %v4332 = vmul.f32 %v4318, %v4328
    %v4333 = vmul.f32 %v4319, %v4328
    %v4334 = vmul.f32 %v4320, %v4328
    %v4335 = vmul.f32 %v4321, %v4328
    %v4336 = vmul.f32 %v4322, %v4328
    %v4337 = vmul.f32 %v4323, %v4328
    %v4339 = vlaneseq
    %v4340 = vshrl.u32 %v4339, 7
    %v4341 = vsub.s32 0, %v4340
    %v4342 = vrot.slane %v4219, %v4341
    %v4344 = vadd.f32 %v4330, %v4342
    %v4345 = vadd.f32 %v4331, %v4342
    %v4346 = vadd.f32 %v4332, %v4342
    %v4347 = vadd.f32 %v4333, %v4342
    %v4348 = vadd.f32 %v4334, %v4342
    %v4349 = vadd.f32 %v4335, %v4342
    %v4350 = vadd.f32 %v4336, %v4342
    %v4351 = vadd.f32 %v4337, %v4342
    %v4352 = vld [vmem:[%s13] sm:$0xff]
    %v4353 = vld [vmem:[%s13 + $0x8] sm:$0xff]
    %v4354 = vld [vmem:[%s13 + $0x10] sm:$0xff]
    %v4355 = vld [vmem:[%s13 + $0x18] sm:$0xff]
    %v4356 = vld [vmem:[%s14] sm:$0x1]
    %v4358 = vlaneseq
    %v4359 = vshrl.u32 %v4358, 7
    %v4360 = vsub.s32 0, %v4359
    %v4361 = vrot.slane %v4356, %v4360
    %v4364 = vsel %vm87, %v4344, 0
    %v4367 = vsel %vm87, %v4345, 0
    %v4370 = vsel %vm87, %v4346, 0
    %v4373 = vsel %vm87, %v4347, 0
    %v4376 = vsel %vm87, %v4348, 0
    %v4379 = vsel %vm87, %v4349, 0
    %v4382 = vsel %vm87, %v4350, 0
    %v4385 = vsel %vm87, %v4351, 0
    %4387 = vmatprep.subr.mxu0 0.0
    %4388 = vmatpush1.msra.mxu0 %v4352
    %4389 = vmatprep.subr.mxu0 0.0
    %4390 = vmatpush1.msra.mxu0 %v4353
    %4391 = vmatprep.subr.mxu0 0.0
    %4392 = vmatpush1.msra.mxu0 %v4354
    %4393 = vmatprep.subr.mxu0 0.0
    %4394 = vmatpush1.msra.mxu0 %v4355
    %4395 = vmatprep.subr.mxu0 0.0
    %4396 = vmatpush1.msra.mxu0 0.0
    %4397 = vmatprep.subr.mxu0 0.0
    %4398 = vmatpush1.msra.mxu0 0.0
    %4399 = vmatprep.subr.mxu0 0.0
    %4400 = vmatpush1.msra.mxu0 0.0
    %4401 = vmatprep.subr.mxu0 0.0
    %4402 = vmatpush1.msra.mxu0 0.0
    %4403 = vmatprep.subr.mxu0 0.0
    %4404 = vmatpush1.msra.mxu0 0.0
    %4405 = vmatprep.subr.mxu0 0.0
    %4406 = vmatpush1.msra.mxu0 0.0
    %4407 = vmatprep.subr.mxu0 0.0
    %4408 = vmatpush1.msra.mxu0 0.0
    %4409 = vmatprep.subr.mxu0 0.0
    %4410 = vmatpush1.msra.mxu0 0.0
    %4411 = vmatprep.subr.mxu0 0.0
    %4412 = vmatpush1.msra.mxu0 0.0
    %4413 = vmatprep.subr.mxu0 0.0
    %4414 = vmatpush1.msra.mxu0 0.0
    %4415 = vmatprep.subr.mxu0 0.0
    %4416 = vmatpush1.msra.mxu0 0.0
    %4417 = vmatprep.subr.mxu0 0.0
    %4418 = vmatpush1.msra.mxu0 0.0
    %4419 = vmatprep.subr.mxu0 0.0
    %4420 = vmatpush1.msra.mxu0 0.0
    %4421 = vmatprep.subr.mxu0 0.0
    %4422 = vmatpush1.msra.mxu0 0.0
    %4423 = vmatprep.subr.mxu0 0.0
    %4424 = vmatpush1.msra.mxu0 0.0
    %4425 = vmatprep.subr.mxu0 0.0
    %4426 = vmatpush1.msra.mxu0 0.0
    %4427 = vmatprep.subr.mxu0 0.0
    %4428 = vmatpush1.msra.mxu0 0.0
    %4429 = vmatprep.subr.mxu0 0.0
    %4430 = vmatpush1.msra.mxu0 0.0
    %4431 = vmatprep.subr.mxu0 0.0
    %4432 = vmatpush1.msra.mxu0 0.0
    %4433 = vmatprep.subr.mxu0 0.0
    %4434 = vmatpush1.msra.mxu0 0.0
    %4435 = vmatprep.subr.mxu0 0.0
    %4436 = vmatpush1.msra.mxu0 0.0
    %4437 = vmatprep.subr.mxu0 0.0
    %4438 = vmatpush1.msra.mxu0 0.0
    %4439 = vmatprep.subr.mxu0 0.0
    %4440 = vmatpush1.msra.mxu0 0.0
    %4441 = vmatprep.subr.mxu0 0.0
    %4442 = vmatpush1.msra.mxu0 0.0
    %4443 = vmatprep.subr.mxu0 0.0
    %4444 = vmatpush1.msra.mxu0 0.0
    %4445 = vmatprep.subr.mxu0 0.0
    %4446 = vmatpush1.msra.mxu0 0.0
    %4447 = vmatprep.subr.mxu0 0.0
    %4448 = vmatpush1.msra.mxu0 0.0
    %4449 = vmatprep.subr.mxu0 0.0
    %4450 = vmatpush1.msra.mxu0 0.0
    %4451 = vmatprep.mubr.f32.mxu0 0.0
    %4452 = vmatmul.mubr.f32.gmra.mrb[0].mxu0 %v4364
    %v4453 = vpop.f32.mrb[0].mxu0
    %v4454 = vadd.f32 %v4361, %v4453
    %v4455 = vpop.f32.mrb[0].mxu0
    %4456 = vmatprep.mubr.f32.mxu0 0.0
    %4457 = vmatmul.mubr.f32.gmra.mrb[0].mxu0 %v4367
    %v4458 = vpop.f32.mrb[0].mxu0
    %v4459 = vadd.f32 %v4361, %v4458
    %v4460 = vpop.f32.mrb[0].mxu0
    %4461 = vmatprep.mubr.f32.mxu0 0.0
    %4462 = vmatmul.mubr.f32.gmra.mrb[0].mxu0 %v4370
    %v4463 = vpop.f32.mrb[0].mxu0
    %v4464 = vadd.f32 %v4361, %v4463
    %v4465 = vpop.f32.mrb[0].mxu0
    %4466 = vmatprep.mubr.f32.mxu0 0.0
    %4467 = vmatmul.mubr.f32.gmra.mrb[0].mxu0 %v4373
    %v4468 = vpop.f32.mrb[0].mxu0
    %v4469 = vadd.f32 %v4361, %v4468
    %v4470 = vpop.f32.mrb[0].mxu0
    %4471 = vmatprep.mubr.f32.mxu0 0.0
    %4472 = vmatmul.mubr.f32.gmra.mrb[0].mxu0 %v4376
    %v4473 = vpop.f32.mrb[0].mxu0
    %v4474 = vadd.f32 %v4361, %v4473
    %v4475 = vpop.f32.mrb[0].mxu0
    %4476 = vmatprep.mubr.f32.mxu0 0.0
    %4477 = vmatmul.mubr.f32.gmra.mrb[0].mxu0 %v4379
    %v4478 = vpop.f32.mrb[0].mxu0
    %v4479 = vadd.f32 %v4361, %v4478
    %v4480 = vpop.f32.mrb[0].mxu0
    %4481 = vmatprep.mubr.f32.mxu0 0.0
    %4482 = vmatmul.mubr.f32.gmra.mrb[0].mxu0 %v4382
    %v4483 = vpop.f32.mrb[0].mxu0
    %v4484 = vadd.f32 %v4361, %v4483
    %v4485 = vpop.f32.mrb[0].mxu0
    %4486 = vmatprep.mubr.f32.mxu0 0.0
    %4487 = vmatmul.mubr.f32.gmra.mrb[0].mxu0 %v4385
    %v4488 = vpop.f32.mrb[0].mxu0
    %v4489 = vadd.f32 %v4361, %v4488
    %v4490 = vpop.f32.mrb[0].mxu0
    %4491 = vdwg.mxu0
    %v4492 = vmul.f32 %v4454, 0.5
    %v4493 = vmul.f32 %v4459, 0.5
    %v4494 = vmul.f32 %v4464, 0.5
    %v4495 = vmul.f32 %v4469, 0.5
    %v4496 = vmul.f32 %v4474, 0.5
    %v4497 = vmul.f32 %v4479, 0.5
    %v4498 = vmul.f32 %v4484, 0.5
    %v4499 = vmul.f32 %v4489, 0.5
    %v4500 = vmul.f32 %v4454, %v4454
    %v4501 = vmul.f32 %v4459, %v4459
    %v4502 = vmul.f32 %v4464, %v4464
    %v4503 = vmul.f32 %v4469, %v4469
    %v4504 = vmul.f32 %v4474, %v4474
    %v4505 = vmul.f32 %v4479, %v4479
    %v4506 = vmul.f32 %v4484, %v4484
    %v4507 = vmul.f32 %v4489, %v4489
    %v4508 = vmul.f32 %v4454, %v4500
    %v4509 = vmul.f32 %v4459, %v4501
    %v4510 = vmul.f32 %v4464, %v4502
    %v4511 = vmul.f32 %v4469, %v4503
    %v4512 = vmul.f32 %v4474, %v4504
    %v4513 = vmul.f32 %v4479, %v4505
    %v4514 = vmul.f32 %v4484, %v4506
    %v4515 = vmul.f32 %v4489, %v4507
    %v4516 = vmul.f32 %v4508, 0.044715
    %v4517 = vmul.f32 %v4509, 0.044715
    %v4518 = vmul.f32 %v4510, 0.044715
    %v4519 = vmul.f32 %v4511, 0.044715
    %v4520 = vmul.f32 %v4512, 0.044715
    %v4521 = vmul.f32 %v4513, 0.044715
    %v4522 = vmul.f32 %v4514, 0.044715
    %v4523 = vmul.f32 %v4515, 0.044715
    %v4524 = vadd.f32 %v4454, %v4516
    %v4525 = vadd.f32 %v4459, %v4517
    %v4526 = vadd.f32 %v4464, %v4518
    %v4527 = vadd.f32 %v4469, %v4519
    %v4528 = vadd.f32 %v4474, %v4520
    %v4529 = vadd.f32 %v4479, %v4521
    %v4530 = vadd.f32 %v4484, %v4522
    %v4531 = vadd.f32 %v4489, %v4523
    %v4532 = vmul.f32 %v4524, 0.7978846
    %v4533 = vmul.f32 %v4525, 0.7978846
    %v4534 = vmul.f32 %v4526, 0.7978846
    %v4535 = vmul.f32 %v4527, 0.7978846
    %v4536 = vmul.f32 %v4528, 0.7978846
    %v4537 = vmul.f32 %v4529, 0.7978846
    %v4538 = vmul.f32 %v4530, 0.7978846
    %v4539 = vmul.f32 %v4531, 0.7978846
    %v4540 = vtanh.pop %v4532
    %v4541 = vtanh.pop %v4533
    %v4542 = vtanh.pop %v4534
    %v4543 = vtanh.pop %v4535
    %v4544 = vtanh.pop %v4536
    %v4545 = vtanh.pop %v4537
    %v4546 = vtanh.pop %v4538
    %v4547 = vtanh.pop %v4539
    %v4548 = vadd.f32 %v4540, 1.0
    %v4549 = vadd.f32 %v4541, 1.0
    %v4550 = vadd.f32 %v4542, 1.0
    %v4551 = vadd.f32 %v4543, 1.0
    %v4552 = vadd.f32 %v4544, 1.0
    %v4553 = vadd.f32 %v4545, 1.0
    %v4554 = vadd.f32 %v4546, 1.0
    %v4555 = vadd.f32 %v4547, 1.0
    %v4556 = vmul.f32 %v4492, %v4548
    %v4557 = vmul.f32 %v4493, %v4549
    %v4558 = vmul.f32 %v4494, %v4550
    %v4559 = vmul.f32 %v4495, %v4551
    %v4560 = vmul.f32 %v4496, %v4552
    %v4561 = vmul.f32 %v4497, %v4553
    %v4562 = vmul.f32 %v4498, %v4554
    %v4563 = vmul.f32 %v4499, %v4555
    %v4564 = vld [vmem:[%s15] sm:$0xff]
    %v4565 = vld [vmem:[%s15 + $0x8] sm:$0xff]
    %v4566 = vld [vmem:[%s15 + $0x10] sm:$0xff]
    %v4567 = vld [vmem:[%s15 + $0x18] sm:$0xff]
    %v4568 = vld [vmem:[%s15 + $0x20] sm:$0xff]
    %v4569 = vld [vmem:[%s15 + $0x28] sm:$0xff]
    %v4570 = vld [vmem:[%s15 + $0x30] sm:$0xff]
    %v4571 = vld [vmem:[%s15 + $0x38] sm:$0xff]
    %v4572 = vld [vmem:[%s15 + $0x40] sm:$0xff]
    %v4573 = vld [vmem:[%s15 + $0x48] sm:$0xff]
    %v4574 = vld [vmem:[%s15 + $0x50] sm:$0xff]
    %v4575 = vld [vmem:[%s15 + $0x58] sm:$0xff]
    %v4576 = vld [vmem:[%s15 + $0x60] sm:$0xff]
    %v4577 = vld [vmem:[%s15 + $0x68] sm:$0xff]
    %v4578 = vld [vmem:[%s15 + $0x70] sm:$0xff]
    %v4579 = vld [vmem:[%s15 + $0x78] sm:$0xff]
    %v4580 = vld [vmem:[%s16] sm:$0x1]
    %v4582 = vlaneseq
    %v4583 = vshrl.u32 %v4582, 7
    %v4584 = vsub.s32 0, %v4583
    %v4585 = vrot.slane %v4580, %v4584
    %4587 = vmatprep.subr.mxu0 0.0
    %4588 = vmatpush1.msra.mxu0 %v4564
    %4589 = vmatprep.subr.mxu0 0.0
    %4590 = vmatpush1.msra.mxu0 %v4565
    %4591 = vmatprep.subr.mxu0 0.0
    %4592 = vmatpush1.msra.mxu0 %v4566
    %4593 = vmatprep.subr.mxu0 0.0
    %4594 = vmatpush1.msra.mxu0 %v4567
    %4595 = vmatprep.subr.mxu0 0.0
    %4596 = vmatpush1.msra.mxu0 %v4568
    %4597 = vmatprep.subr.mxu0 0.0
    %4598 = vmatpush1.msra.mxu0 %v4569
    %4599 = vmatprep.subr.mxu0 0.0
    %4600 = vmatpush1.msra.mxu0 %v4570
    %4601 = vmatprep.subr.mxu0 0.0
    %4602 = vmatpush1.msra.mxu0 %v4571
    %4603 = vmatprep.subr.mxu0 0.0
    %4604 = vmatpush1.msra.mxu0 %v4572
    %4605 = vmatprep.subr.mxu0 0.0
    %4606 = vmatpush1.msra.mxu0 %v4573
    %4607 = vmatprep.subr.mxu0 0.0
    %4608 = vmatpush1.msra.mxu0 %v4574
    %4609 = vmatprep.subr.mxu0 0.0
    %4610 = vmatpush1.msra.mxu0 %v4575
    %4611 = vmatprep.subr.mxu0 0.0
    %4612 = vmatpush1.msra.mxu0 %v4576
    %4613 = vmatprep.subr.mxu0 0.0
    %4614 = vmatpush1.msra.mxu0 %v4577
    %4615 = vmatprep.subr.mxu0 0.0
    %4616 = vmatpush1.msra.mxu0 %v4578
    %4617 = vmatprep.subr.mxu0 0.0
    %4618 = vmatpush1.msra.mxu0 %v4579
    %4619 = vmatprep.subr.mxu0 0.0
    %4620 = vmatpush1.msra.mxu0 0.0
    %4621 = vmatprep.subr.mxu0 0.0
    %4622 = vmatpush1.msra.mxu0 0.0
    %4623 = vmatprep.subr.mxu0 0.0
    %4624 = vmatpush1.msra.mxu0 0.0
    %4625 = vmatprep.subr.mxu0 0.0
    %4626 = vmatpush1.msra.mxu0 0.0
    %4627 = vmatprep.subr.mxu0 0.0
    %4628 = vmatpush1.msra.mxu0 0.0
    %4629 = vmatprep.subr.mxu0 0.0
    %4630 = vmatpush1.msra.mxu0 0.0
    %4631 = vmatprep.subr.mxu0 0.0
    %4632 = vmatpush1.msra.mxu0 0.0
    %4633 = vmatprep.subr.mxu0 0.0
    %4634 = vmatpush1.msra.mxu0 0.0
    %4635 = vmatprep.subr.mxu0 0.0
    %4636 = vmatpush1.msra.mxu0 0.0
    %4637 = vmatprep.subr.mxu0 0.0
    %4638 = vmatpush1.msra.mxu0 0.0
    %4639 = vmatprep.subr.mxu0 0.0
    %4640 = vmatpush1.msra.mxu0 0.0
    %4641 = vmatprep.subr.mxu0 0.0
    %4642 = vmatpush1.msra.mxu0 0.0
    %4643 = vmatprep.subr.mxu0 0.0
    %4644 = vmatpush1.msra.mxu0 0.0
    %4645 = vmatprep.subr.mxu0 0.0
    %4646 = vmatpush1.msra.mxu0 0.0
    %4647 = vmatprep.subr.mxu0 0.0
    %4648 = vmatpush1.msra.mxu0 0.0
    %4649 = vmatprep.subr.mxu0 0.0
    %4650 = vmatpush1.msra.mxu0 0.0
    %4651 = vmatprep.mubr.f32.mxu0 0.0
    %4652 = vmatmul.mubr.f32.gmra.mrb[0].mxu0 %v4556
    %v4653 = vpop.f32.mrb[0].mxu0
    %v4654 = vadd.f32 %v4585, %v4653
    %v4655 = vpop.f32.mrb[0].mxu0
    %4656 = vmatprep.mubr.f32.mxu0 0.0
    %4657 = vmatmul.mubr.f32.gmra.mrb[0].mxu0 %v4557
    %v4658 = vpop.f32.mrb[0].mxu0
    %v4659 = vadd.f32 %v4585, %v4658
    %v4660 = vpop.f32.mrb[0].mxu0
    %4661 = vmatprep.mubr.f32.mxu0 0.0
    %4662 = vmatmul.mubr.f32.gmra.mrb[0].mxu0 %v4558
    %v4663 = vpop.f32.mrb[0].mxu0
    %v4664 = vadd.f32 %v4585, %v4663
    %v4665 = vpop.f32.mrb[0].mxu0
    %4666 = vmatprep.mubr.f32.mxu0 0.0
    %4667 = vmatmul.mubr.f32.gmra.mrb[0].mxu0 %v4559
    %v4668 = vpop.f32.mrb[0].mxu0
    %v4669 = vadd.f32 %v4585, %v4668
    %v4670 = vpop.f32.mrb[0].mxu0
    %4671 = vmatprep.mubr.f32.mxu0 0.0
    %4672 = vmatmul.mubr.f32.gmra.mrb[0].mxu0 %v4560
    %v4673 = vpop.f32.mrb[0].mxu0
    %v4674 = vadd.f32 %v4585, %v4673
    %v4675 = vpop.f32.mrb[0].mxu0
    %4676 = vmatprep.mubr.f32.mxu0 0.0
    %4677 = vmatmul.mubr.f32.gmra.mrb[0].mxu0 %v4561
    %v4678 = vpop.f32.mrb[0].mxu0
    %v4679 = vadd.f32 %v4585, %v4678
    %v4680 = vpop.f32.mrb[0].mxu0
    %4681 = vmatprep.mubr.f32.mxu0 0.0
    %4682 = vmatmul.mubr.f32.gmra.mrb[0].mxu0 %v4562
    %v4683 = vpop.f32.mrb[0].mxu0
    %v4684 = vadd.f32 %v4585, %v4683
    %v4685 = vpop.f32.mrb[0].mxu0
    %4686 = vmatprep.mubr.f32.mxu0 0.0
    %4687 = vmatmul.mubr.f32.gmra.mrb[0].mxu0 %v4563
    %v4688 = vpop.f32.mrb[0].mxu0
    %v4689 = vadd.f32 %v4585, %v4688
    %v4690 = vpop.f32.mrb[0].mxu0
    %4691 = vdwg.mxu0
    %v4692 = vadd.f32 %v4210, %v4654
    %v4693 = vadd.f32 %v4211, %v4659
    %v4694 = vadd.f32 %v4212, %v4664
    %v4695 = vadd.f32 %v4213, %v4669
    %v4696 = vadd.f32 %v4214, %v4674
    %v4697 = vadd.f32 %v4215, %v4679
    %v4698 = vadd.f32 %v4216, %v4684
    %v4699 = vadd.f32 %v4217, %v4689
    %4700 = vst.msk [vmem:[#allocation2] sm:$0xff] %vm87, %v4692
    %4701 = vst.msk [vmem:[#allocation2 + $0x8] sm:$0xff] %vm87, %v4693
    %4702 = vst.msk [vmem:[#allocation2 + $0x10] sm:$0xff] %vm87, %v4694
    %4703 = vst.msk [vmem:[#allocation2 + $0x18] sm:$0xff] %vm87, %v4695
    %4704 = vst.msk [vmem:[#allocation2 + $0x20] sm:$0xff] %vm87, %v4696
    %4705 = vst.msk [vmem:[#allocation2 + $0x28] sm:$0xff] %vm87, %v4697
    %4706 = vst.msk [vmem:[#allocation2 + $0x30] sm:$0xff] %vm87, %v4698
    %4707 = vst.msk [vmem:[#allocation2 + $0x38] sm:$0xff] %vm87, %v4699
    // Predicated region
    $region70: #{tpu_custom_call.1} parent=1 // pred_check
      _
    $region71: #{tpu_custom_call.1} parent=1 // pred_check_branch
      %4709 = sbr.rel (0) target = $region73
    $region72: #{tpu_custom_call.1} parent=1 // pred_region
      %s4711 = ssub.s32 1024, 1024
      %4712 = vsyncadd [#allocation3], %s4711
      %s4713 = sshll.u32 [#allocation2], 4
      %s4714 = int_to_ptr.vmem [resolvable:$true] %s4713
      %4719 = dma.vmem_to_hbm [thread:$0]  %s4714, 1024, %s17, [#allocation3], 128, 128, 8
    $region73: #{tpu_custom_call.1} parent=1 // pred_fallthru
      _
    // Predicated region
    $region74: #{tpu_custom_call.1} parent=1 // pred_check
      _
    $region75: #{tpu_custom_call.1} parent=1 // pred_check_branch
      %4721 = sbr.rel (0) target = $region77
    $region76: #{tpu_custom_call.1} parent=1 // pred_region
      %4722 = dma.done [#allocation3], 1024
    $region77: #{tpu_custom_call.1} parent=1 // pred_fallthru
      _
    %4723 = vsyncpa [#allocation3], 1

</llo_original>
